<compile_context>
chip_gen: v5e
topology: v5e:2x2
jax: 0.10.0
libtpu: 0.0.40
codegen_flags: <defaults>
</compile_context>

<pallas_src>
import jax
import jax.numpy as jnp
from jax.experimental import pallas as pl
from jax.experimental.pallas import tpu as pltpu


# ---------------------------------------------------------------------------
# kernels
# ---------------------------------------------------------------------------
def _conv_bias_stats_kernel(p_ref, w_ref, b_ref, y_ref, st_ref):
    # p_ref : (TR, K)  bf16 im2col patches (K = 9*Cin, lane-dense)
    # w_ref : (K, Cp)  bf16 stacked conv weights (Cout padded to Cp)
    # b_ref : (1, Cp)  f32 bias
    # y_ref : (TR, Cp) f32 conv + bias output tile (lane-dense stores)
    # st_ref: (8, Cp)  f32 per-tile stats; row0 = sum, row1 = sum of squares
    acc = jnp.dot(p_ref[...], w_ref[...], preferred_element_type=jnp.float32)
    y = acc + b_ref[...]
    y_ref[...] = y
    st_ref[...] = jnp.zeros(st_ref.shape, jnp.float32)
    st_ref[0:1, :] = jnp.sum(y, axis=0, keepdims=True)
    st_ref[1:2, :] = jnp.sum(y * y, axis=0, keepdims=True)


def _bn_relu_pool_kernel(y_ref, sc_ref, sh_ref, a_ref, o_ref):
    # y_ref : (1, 2*TPH, W, Cp) conv+bias tile
    # sc_ref: (1, Cp) fused BN scale   sh_ref: (1, Cp) fused BN shift
    # a_ref : (W//2, W) 2x2-average-pool matrix (0.25 weights)
    # o_ref : (1, TPH, W//2, Cp)
    sc = sc_ref[...]
    sh = sh_ref[...]
    a = a_ref[...]
    tph = o_ref.shape[1]
    for p in range(tph):                       # static unroll (tph <= 4)
        top = y_ref[0, 2 * p, :, :]            # (W, Cp)
        bot = y_ref[0, 2 * p + 1, :, :]        # (W, Cp)
        t = jnp.maximum(top * sc + sh, 0.0)    # BN + ReLU on the VPU
        b = jnp.maximum(bot * sc + sh, 0.0)
        # 2x2 avg pool: H-pair summed on the VPU, W-pairs via tiny MXU matmul.
        o_ref[0, p, :, :] = jnp.dot(a, t + b, preferred_element_type=jnp.float32)


# ---------------------------------------------------------------------------
# wrappers
# ---------------------------------------------------------------------------
def _pick_divisor(n, target, multiple=1):
    """Largest d <= target with d % multiple == 0 and n % d == 0; fallback n."""
    for d in range(min(n, target), 0, -1):
        if n % d == 0 and d % multiple == 0:
            return d
    return n


_VMEM_LIMIT = 32 * 1024 * 1024  # safe on v5e/v6e/v7x; tiles stay far below this
_ROW_TILE_TARGET = 256          # multiple of 8; raise to 512+ for production v5e


def down_block2d_nhwc(x_nhwc, weight, bias, gamma, beta, *, eps=1e-5):
    """One DownBlock2d. x_nhwc: (N,H,W,Cin) f32; weight: (Cout,Cin,3,3) PyTorch layout.
    Returns pooled output in NHWC: (N, H//2, W//2, Cout)."""
    N, H, W, Cin = x_nhwc.shape
    Cout, Cin_w, KH, KW = weight.shape
    assert Cin_w == Cin and (KH, KW) == (3, 3)
    assert H % 2 == 0 and W % 2 == 0, "AvgPool2d(2,2) path assumes even H, W"

    K = KH * KW * Cin
    Cp = ((Cout + 127) // 128) * 128           # lane-dense padded channel count

    # ---- glue: zero-pad + im2col patches (K on the last / lane axis) -------------
    xp = jnp.pad(x_nhwc, ((0, 0), (1, 1), (1, 1), (0, 0)))
    cols = [xp[:, kh:kh + H, kw:kw + W, :] for kh in range(KH) for kw in range(KW)]
    patches = jnp.concatenate(cols, axis=-1).reshape(N * H * W, K).astype(jnp.bfloat16)

    w_mat = jnp.transpose(weight, (2, 3, 1, 0)).reshape(K, Cout).astype(jnp.float32)
    w_mat = jnp.pad(w_mat, ((0, 0), (0, Cp - Cout))).astype(jnp.bfloat16)
    b_row = jnp.pad(bias.astype(jnp.float32), (0, Cp - Cout)).reshape(1, Cp)

    R = N * H * W
    TR = _pick_divisor(R, _ROW_TILE_TARGET, multiple=8)
    n_tiles = R // TR

    # ---- phase 1: conv (single fused matmul) + bias + partial BN stats -----------
    y_flat, stats = pl.pallas_call(
        _conv_bias_stats_kernel,
        out_shape=(jax.ShapeDtypeStruct((R, Cp), jnp.float32),
                   jax.ShapeDtypeStruct((n_tiles * 8, Cp), jnp.float32)),
        grid=(n_tiles,),
        in_specs=[
            pl.BlockSpec((TR, K), lambda i: (i, 0)),
            pl.BlockSpec((K, Cp), lambda i: (0, 0)),
            pl.BlockSpec((1, Cp), lambda i: (0, 0)),
        ],
        out_specs=(
            pl.BlockSpec((TR, Cp), lambda i: (i, 0)),
            pl.BlockSpec((8, Cp), lambda i: (i, 0)),
        ),
        compiler_params=pltpu.CompilerParams(
            dimension_semantics=("parallel",),
            vmem_limit_bytes=_VMEM_LIMIT),
    )(patches, w_mat, b_row)

    # ---- glue: finish training-mode BN stats (tiny: n_tiles x Cp) ----------------
    st = stats.reshape(n_tiles, 8, Cp)
    mean = jnp.sum(st[:, 0, :], axis=0) / R
    var = jnp.sum(st[:, 1, :], axis=0) / R - mean * mean          # biased variance
    inv = jax.lax.rsqrt(var + eps)
    g_p = jnp.pad(gamma.astype(jnp.float32), (0, Cp - Cout))
    bt_p = jnp.pad(beta.astype(jnp.float32), (0, Cp - Cout))
    scale = (g_p * inv).reshape(1, Cp)
    shift = (bt_p - mean * g_p * inv).reshape(1, Cp)

    # ---- phase 2: BN scale/shift + ReLU + 2x2 avg pool ---------------------------
    Hh, Wh = H // 2, W // 2
    TPH = _pick_divisor(Hh, 4)                  # H row-pairs handled per grid step
    n_row_tiles = Hh // TPH
    pool_mat = jnp.repeat(jnp.eye(Wh, dtype=jnp.float32), 2, axis=1) * 0.25  # (Wh, W)

    y4 = y_flat.reshape(N, H, W, Cp)            # metadata-only reshape

    out = pl.pallas_call(
        _bn_relu_pool_kernel,
        out_shape=jax.ShapeDtypeStruct((N, Hh, Wh, Cp), jnp.float32),
        grid=(N, n_row_tiles),
        in_specs=[
            pl.BlockSpec((1, 2 * TPH, W, Cp), lambda n, t: (n, t, 0, 0)),
            pl.BlockSpec((1, Cp), lambda n, t: (0, 0)),
            pl.BlockSpec((1, Cp), lambda n, t: (0, 0)),
            pl.BlockSpec((Wh, W), lambda n, t: (0, 0)),
        ],
        out_specs=pl.BlockSpec((1, TPH, Wh, Cp), lambda n, t: (n, t, 0, 0)),
        compiler_params=pltpu.CompilerParams(
            dimension_semantics=("parallel", "parallel"),
            vmem_limit_bytes=_VMEM_LIMIT),
    )(y4, scale, shift, pool_mat)

    return out[..., :Cout]                      # drop channel padding


def encoder_forward(x_nchw, params):
    """Encoder.forward: params = [(weight OIHW, bias, gamma, beta), ...].
    Returns [x, out_1, ..., out_B] in NCHW (PyTorch convention)."""
    outs = [x_nchw]
    cur = jnp.transpose(x_nchw, (0, 2, 3, 1)).astype(jnp.float32)   # NHWC internally
    for (w, b, g, bt) in params:
        cur = down_block2d_nhwc(cur, w, b, g, bt)
        outs.append(jnp.transpose(cur, (0, 3, 1, 2)))
    return outs


# ---------------------------------------------------------------------------
# pure-JAX reference (for a correctness sanity check)
# ---------------------------------------------------------------------------
def _reference_encoder(x, params, eps=1e-5):
    outs = [x]
    for (w, b, g, bt) in params:
        y = jax.lax.conv_general_dilated(
            outs[-1].astype(jnp.float32), w.astype(jnp.float32),
            window_strides=(1, 1), padding=[(1, 1), (1, 1)],
            dimension_numbers=("NCHW", "OIHW", "NCHW"))
        y = y + b.reshape(1, -1, 1, 1)
        mean = jnp.mean(y, axis=(0, 2, 3), keepdims=True)
        var = jnp.mean((y - mean) ** 2, axis=(0, 2, 3), keepdims=True)
        y = (y - mean) * jax.lax.rsqrt(var + eps)
        y = y * g.reshape(1, -1, 1, 1) + bt.reshape(1, -1, 1, 1)
        y = jnp.maximum(y, 0.0)
        N, C, H, W = y.shape
        y = y.reshape(N, C, H // 2, 2, W // 2, 2).mean(axis=(3, 5))
        outs.append(y)
    return outs


# ---------------------------------------------------------------------------
if __name__ == "__main__":
    # Encoder(block_expansion=8, in_features=4, num_blocks=3, max_features=64)
    block_expansion, in_features, num_blocks, max_features = 8, 4, 3, 64
    N, H, W = 2, 16, 16

    key = jax.random.PRNGKey(0)
    kx, key = jax.random.split(key)
    x = jax.random.normal(kx, (N, in_features, H, W), dtype=jnp.float32)

    params = []
    cin = in_features
    for i in range(num_blocks):
        cout = min(max_features, block_expansion * 2 ** (i + 1))
        kw_, kb_, kg_, kbt_, key = jax.random.split(key, 5)
        weight = 0.1 * jax.random.normal(kw_, (cout, cin, 3, 3), dtype=jnp.float32)
        bias = 0.1 * jax.random.normal(kb_, (cout,), dtype=jnp.float32)
        gamma = 1.0 + 0.1 * jax.random.normal(kg_, (cout,), dtype=jnp.float32)
        beta = 0.1 * jax.random.normal(kbt_, (cout,), dtype=jnp.float32)
        params.append((weight, bias, gamma, beta))
        cin = cout

    outs = jax.jit(encoder_forward)(x, params)
    outs = jax.block_until_ready(outs)

    refs = _reference_encoder(x, params)
    assert len(outs) == num_blocks + 1
    for o, r in zip(outs, refs):
        assert o.shape == r.shape, (o.shape, r.shape)
        err = float(jnp.max(jnp.abs(o - r)))
        # bf16 MXU operands with f32 accumulation, cascaded over 3 blocks
        assert err < 5e-2, f"mismatch vs JAX reference: max abs err = {err}"

    print("KERNEL_OK")
</pallas_src>

<mosaic_0001>
module attributes {stable_mosaic.version = 11 : i64} {
  func.func @_conv_bias_stats_kernel(%arg0: i32, %arg1: memref<256x36xbf16, #tpu.memory_space<vmem>>, %arg2: memref<36x128xbf16, #tpu.memory_space<vmem>>, %arg3: memref<1x128xf32, #tpu.memory_space<vmem>>, %arg4: memref<256x128xf32, #tpu.memory_space<vmem>>, %arg5: memref<8x128xf32, #tpu.memory_space<vmem>>) attributes {dimension_semantics = [#tpu.dimension_semantics<parallel>], iteration_bounds = array<i64: 2>, scalar_prefetch = 0 : i64, scratch_operands = 0 : i64, tpu.core_type = #tpu.core_type<tc>, window_params = [{transform_indices = @transform_0, window_bounds = array<i64: 256, 36>}, {pipeline_mode = #tpu.pipeline_mode<synchronous>, transform_indices = @transform_1, window_bounds = array<i64: 36, 128>}, {pipeline_mode = #tpu.pipeline_mode<synchronous>, transform_indices = @transform_2, window_bounds = array<i64: 1, 128>}, {transform_indices = @transform_3, window_bounds = array<i64: 256, 128>}, {transform_indices = @transform_4, window_bounds = array<i64: 8, 128>}]} {
    %c0 = arith.constant 0 : index
    %c0_0 = arith.constant 0 : index
    %0 = vector.load %arg1[%c0, %c0_0] : memref<256x36xbf16, #tpu.memory_space<vmem>>, vector<256x36xbf16>
    %c0_1 = arith.constant 0 : index
    %c0_2 = arith.constant 0 : index
    %1 = vector.load %arg2[%c0_1, %c0_2] : memref<36x128xbf16, #tpu.memory_space<vmem>>, vector<36x128xbf16>
    %cst = arith.constant dense<0.000000e+00> : vector<256x128xf32>
    %2 = tpu.matmul %0, %1, %cst {dimension_numbers = #tpu.dot_dimension_numbers<[1], [0], [0], [1], [0, 0, 1, 1], [], []>} : vector<256x36xbf16>, vector<36x128xbf16>, vector<256x128xf32> -> vector<256x128xf32>
    %c0_3 = arith.constant 0 : index
    %c0_4 = arith.constant 0 : index
    %3 = vector.load %arg3[%c0_3, %c0_4] : memref<1x128xf32, #tpu.memory_space<vmem>>, vector<1x128xf32>
    %4 = vector.broadcast %3 : vector<1x128xf32> to vector<256x128xf32>
    %5 = arith.addf %2, %4 : vector<256x128xf32>
    %c0_5 = arith.constant 0 : index
    %c0_6 = arith.constant 0 : index
    %6 = vector.load %arg4[%c0_5, %c0_6] : memref<256x128xf32, #tpu.memory_space<vmem>>, vector<256x128xf32>
    tpu.vector_store %arg4[%c0_5, %c0_6], %5 {strides = array<i32>} : memref<256x128xf32, #tpu.memory_space<vmem>>, vector<256x128xf32>,
    %cst_7 = arith.constant 0.000000e+00 : f32
    %7 = vector.broadcast %cst_7 : f32 to vector<8x128xf32>
    %c0_8 = arith.constant 0 : index
    %c0_9 = arith.constant 0 : index
    %8 = vector.load %arg5[%c0_8, %c0_9] : memref<8x128xf32, #tpu.memory_space<vmem>>, vector<8x128xf32>
    tpu.vector_store %arg5[%c0_8, %c0_9], %7 {strides = array<i32>} : memref<8x128xf32, #tpu.memory_space<vmem>>, vector<8x128xf32>,
    %cst_10 = arith.constant dense<0.000000e+00> : vector<128xf32>
    %9 = vector.multi_reduction <add>, %5, %cst_10 [0] : vector<256x128xf32> to vector<128xf32>
    %10 = vector.shape_cast %9 : vector<128xf32> to vector<1x128xf32>
    %c0_11 = arith.constant 0 : index
    %c0_12 = arith.constant 0 : index
    %11 = vector.load %arg5[%c0_11, %c0_12] : memref<8x128xf32, #tpu.memory_space<vmem>>, vector<1x128xf32>
    tpu.vector_store %arg5[%c0_11, %c0_12], %10 {strides = array<i32>} : memref<8x128xf32, #tpu.memory_space<vmem>>, vector<1x128xf32>,
    %12 = arith.mulf %5, %5 : vector<256x128xf32>
    %cst_13 = arith.constant dense<0.000000e+00> : vector<128xf32>
    %13 = vector.multi_reduction <add>, %12, %cst_13 [0] : vector<256x128xf32> to vector<128xf32>
    %14 = vector.shape_cast %13 : vector<128xf32> to vector<1x128xf32>
    %c1 = arith.constant 1 : index
    %c0_14 = arith.constant 0 : index
    %15 = vector.load %arg5[%c1, %c0_14] : memref<8x128xf32, #tpu.memory_space<vmem>>, vector<1x128xf32>
    tpu.vector_store %arg5[%c1, %c0_14], %14 {strides = array<i32>} : memref<8x128xf32, #tpu.memory_space<vmem>>, vector<1x128xf32>,
    return
  }
  func.func @transform_0(%arg0: i32) -> (i32, i32) {
    %c0_i32 = arith.constant 0 : i32
    %c0_i32_0 = arith.constant 0 : i32
    return %arg0, %c0_i32 : i32, i32
  }
  func.func @transform_1(%arg0: i32) -> (i32, i32) {
    %c0_i32 = arith.constant 0 : i32
    %c0_i32_0 = arith.constant 0 : i32
    %c0_i32_1 = arith.constant 0 : i32
    return %c0_i32, %c0_i32_0 : i32, i32
  }
  func.func @transform_2(%arg0: i32) -> (i32, i32) {
    %c0_i32 = arith.constant 0 : i32
    %c0_i32_0 = arith.constant 0 : i32
    %c0_i32_1 = arith.constant 0 : i32
    return %c0_i32, %c0_i32_0 : i32, i32
  }
  func.func @transform_3(%arg0: i32) -> (i32, i32) {
    %c0_i32 = arith.constant 0 : i32
    %c0_i32_0 = arith.constant 0 : i32
    return %arg0, %c0_i32 : i32, i32
  }
  func.func @transform_4(%arg0: i32) -> (i32, i32) {
    %c0_i32 = arith.constant 0 : i32
    %c0_i32_0 = arith.constant 0 : i32
    return %arg0, %c0_i32 : i32, i32
  }
}

module attributes {stable_mosaic.version = 11 : i64} {
  func.func @_bn_relu_pool_kernel(%arg0: i32, %arg1: i32, %arg2: memref<1x8x16x128xf32, #tpu.memory_space<vmem>>, %arg3: memref<1x128xf32, #tpu.memory_space<vmem>>, %arg4: memref<1x128xf32, #tpu.memory_space<vmem>>, %arg5: memref<8x16xf32, #tpu.memory_space<vmem>>, %arg6: memref<1x4x8x128xf32, #tpu.memory_space<vmem>>) attributes {dimension_semantics = [#tpu.dimension_semantics<parallel>, #tpu.dimension_semantics<parallel>], iteration_bounds = array<i64: 2, 2>, scalar_prefetch = 0 : i64, scratch_operands = 0 : i64, tpu.core_type = #tpu.core_type<tc>, window_params = [{transform_indices = @transform_0, window_bounds = array<i64: 1, 8, 16, 128>}, {pipeline_mode = #tpu.pipeline_mode<synchronous>, transform_indices = @transform_1, window_bounds = array<i64: 1, 128>}, {pipeline_mode = #tpu.pipeline_mode<synchronous>, transform_indices = @transform_2, window_bounds = array<i64: 1, 128>}, {pipeline_mode = #tpu.pipeline_mode<synchronous>, transform_indices = @transform_3, window_bounds = array<i64: 8, 16>}, {transform_indices = @transform_4, window_bounds = array<i64: 1, 4, 8, 128>}]} {
    %c0 = arith.constant 0 : index
    %c0_0 = arith.constant 0 : index
    %0 = vector.load %arg3[%c0, %c0_0] : memref<1x128xf32, #tpu.memory_space<vmem>>, vector<1x128xf32>
    %c0_1 = arith.constant 0 : index
    %c0_2 = arith.constant 0 : index
    %1 = vector.load %arg4[%c0_1, %c0_2] : memref<1x128xf32, #tpu.memory_space<vmem>>, vector<1x128xf32>
    %c0_3 = arith.constant 0 : index
    %c0_4 = arith.constant 0 : index
    %2 = vector.load %arg5[%c0_3, %c0_4] : memref<8x16xf32, #tpu.memory_space<vmem>>, vector<8x16xf32>
    %c0_5 = arith.constant 0 : index
    %c0_6 = arith.constant 0 : index
    %c0_7 = arith.constant 0 : index
    %c0_8 = arith.constant 0 : index
    %3 = vector.load %arg2[%c0_5, %c0_6, %c0_7, %c0_8] : memref<1x8x16x128xf32, #tpu.memory_space<vmem>>, vector<1x1x16x128xf32>
    %4 = vector.shape_cast %3 : vector<1x1x16x128xf32> to vector<16x128xf32>
    %c0_9 = arith.constant 0 : index
    %c1 = arith.constant 1 : index
    %c0_10 = arith.constant 0 : index
    %c0_11 = arith.constant 0 : index
    %5 = vector.load %arg2[%c0_9, %c1, %c0_10, %c0_11] : memref<1x8x16x128xf32, #tpu.memory_space<vmem>>, vector<1x1x16x128xf32>
    %6 = vector.shape_cast %5 : vector<1x1x16x128xf32> to vector<16x128xf32>
    %7 = vector.broadcast %0 : vector<1x128xf32> to vector<16x128xf32>
    %8 = arith.mulf %4, %7 : vector<16x128xf32>
    %9 = vector.broadcast %1 : vector<1x128xf32> to vector<16x128xf32>
    %10 = arith.addf %8, %9 : vector<16x128xf32>
    %cst = arith.constant 0.000000e+00 : f32
    %11 = vector.broadcast %cst : f32 to vector<16x128xf32>
    %12 = arith.maximumf %10, %11 : vector<16x128xf32>
    %13 = vector.broadcast %0 : vector<1x128xf32> to vector<16x128xf32>
    %14 = arith.mulf %6, %13 : vector<16x128xf32>
    %15 = vector.broadcast %1 : vector<1x128xf32> to vector<16x128xf32>
    %16 = arith.addf %14, %15 : vector<16x128xf32>
    %cst_12 = arith.constant 0.000000e+00 : f32
    %17 = vector.broadcast %cst_12 : f32 to vector<16x128xf32>
    %18 = arith.maximumf %16, %17 : vector<16x128xf32>
    %19 = arith.addf %12, %18 : vector<16x128xf32>
    %cst_13 = arith.constant dense<0.000000e+00> : vector<8x128xf32>
    %20 = tpu.matmul %2, %19, %cst_13 {dimension_numbers = #tpu.dot_dimension_numbers<[1], [0], [0], [1], [0, 0, 1, 1], [], []>} : vector<8x16xf32>, vector<16x128xf32>, vector<8x128xf32> -> vector<8x128xf32>
    %c0_14 = arith.constant 0 : index
    %c0_15 = arith.constant 0 : index
    %c0_16 = arith.constant 0 : index
    %c0_17 = arith.constant 0 : index
    %21 = vector.load %arg6[%c0_14, %c0_15, %c0_16, %c0_17] : memref<1x4x8x128xf32, #tpu.memory_space<vmem>>, vector<1x1x8x128xf32>
    %22 = vector.shape_cast %21 : vector<1x1x8x128xf32> to vector<8x128xf32>
    %23 = vector.shape_cast %20 : vector<8x128xf32> to vector<1x1x8x128xf32>
    tpu.vector_store %arg6[%c0_14, %c0_15, %c0_16, %c0_17], %23 {strides = array<i32>} : memref<1x4x8x128xf32, #tpu.memory_space<vmem>>, vector<1x1x8x128xf32>,
    %c0_18 = arith.constant 0 : index
    %c2 = arith.constant 2 : index
    %c0_19 = arith.constant 0 : index
    %c0_20 = arith.constant 0 : index
    %24 = vector.load %arg2[%c0_18, %c2, %c0_19, %c0_20] : memref<1x8x16x128xf32, #tpu.memory_space<vmem>>, vector<1x1x16x128xf32>
    %25 = vector.shape_cast %24 : vector<1x1x16x128xf32> to vector<16x128xf32>
    %c0_21 = arith.constant 0 : index
    %c3 = arith.constant 3 : index
    %c0_22 = arith.constant 0 : index
    %c0_23 = arith.constant 0 : index
    %26 = vector.load %arg2[%c0_21, %c3, %c0_22, %c0_23] : memref<1x8x16x128xf32, #tpu.memory_space<vmem>>, vector<1x1x16x128xf32>
    %27 = vector.shape_cast %26 : vector<1x1x16x128xf32> to vector<16x128xf32>
    %28 = vector.broadcast %0 : vector<1x128xf32> to vector<16x128xf32>
    %29 = arith.mulf %25, %28 : vector<16x128xf32>
    %30 = vector.broadcast %1 : vector<1x128xf32> to vector<16x128xf32>
    %31 = arith.addf %29, %30 : vector<16x128xf32>
    %cst_24 = arith.constant 0.000000e+00 : f32
    %32 = vector.broadcast %cst_24 : f32 to vector<16x128xf32>
    %33 = arith.maximumf %31, %32 : vector<16x128xf32>
    %34 = vector.broadcast %0 : vector<1x128xf32> to vector<16x128xf32>
    %35 = arith.mulf %27, %34 : vector<16x128xf32>
    %36 = vector.broadcast %1 : vector<1x128xf32> to vector<16x128xf32>
    %37 = arith.addf %35, %36 : vector<16x128xf32>
    %cst_25 = arith.constant 0.000000e+00 : f32
    %38 = vector.broadcast %cst_25 : f32 to vector<16x128xf32>
    %39 = arith.maximumf %37, %38 : vector<16x128xf32>
    %40 = arith.addf %33, %39 : vector<16x128xf32>
    %cst_26 = arith.constant dense<0.000000e+00> : vector<8x128xf32>
    %41 = tpu.matmul %2, %40, %cst_26 {dimension_numbers = #tpu.dot_dimension_numbers<[1], [0], [0], [1], [0, 0, 1, 1], [], []>} : vector<8x16xf32>, vector<16x128xf32>, vector<8x128xf32> -> vector<8x128xf32>
    %c0_27 = arith.constant 0 : index
    %c1_28 = arith.constant 1 : index
    %c0_29 = arith.constant 0 : index
    %c0_30 = arith.constant 0 : index
    %42 = vector.load %arg6[%c0_27, %c1_28, %c0_29, %c0_30] : memref<1x4x8x128xf32, #tpu.memory_space<vmem>>, vector<1x1x8x128xf32>
    %43 = vector.shape_cast %42 : vector<1x1x8x128xf32> to vector<8x128xf32>
    %44 = vector.shape_cast %41 : vector<8x128xf32> to vector<1x1x8x128xf32>
    tpu.vector_store %arg6[%c0_27, %c1_28, %c0_29, %c0_30], %44 {strides = array<i32>} : memref<1x4x8x128xf32, #tpu.memory_space<vmem>>, vector<1x1x8x128xf32>,
    %c0_31 = arith.constant 0 : index
    %c4 = arith.constant 4 : index
    %c0_32 = arith.constant 0 : index
    %c0_33 = arith.constant 0 : index
    %45 = vector.load %arg2[%c0_31, %c4, %c0_32, %c0_33] : memref<1x8x16x128xf32, #tpu.memory_space<vmem>>, vector<1x1x16x128xf32>
    %46 = vector.shape_cast %45 : vector<1x1x16x128xf32> to vector<16x128xf32>
    %c0_34 = arith.constant 0 : index
    %c5 = arith.constant 5 : index
    %c0_35 = arith.constant 0 : index
    %c0_36 = arith.constant 0 : index
    %47 = vector.load %arg2[%c0_34, %c5, %c0_35, %c0_36] : memref<1x8x16x128xf32, #tpu.memory_space<vmem>>, vector<1x1x16x128xf32>
    %48 = vector.shape_cast %47 : vector<1x1x16x128xf32> to vector<16x128xf32>
    %49 = vector.broadcast %0 : vector<1x128xf32> to vector<16x128xf32>
    %50 = arith.mulf %46, %49 : vector<16x128xf32>
    %51 = vector.broadcast %1 : vector<1x128xf32> to vector<16x128xf32>
    %52 = arith.addf %50, %51 : vector<16x128xf32>
    %cst_37 = arith.constant 0.000000e+00 : f32
    %53 = vector.broadcast %cst_37 : f32 to vector<16x128xf32>
    %54 = arith.maximumf %52, %53 : vector<16x128xf32>
    %55 = vector.broadcast %0 : vector<1x128xf32> to vector<16x128xf32>
    %56 = arith.mulf %48, %55 : vector<16x128xf32>
    %57 = vector.broadcast %1 : vector<1x128xf32> to vector<16x128xf32>
    %58 = arith.addf %56, %57 : vector<16x128xf32>
    %cst_38 = arith.constant 0.000000e+00 : f32
    %59 = vector.broadcast %cst_38 : f32 to vector<16x128xf32>
    %60 = arith.maximumf %58, %59 : vector<16x128xf32>
    %61 = arith.addf %54, %60 : vector<16x128xf32>
    %cst_39 = arith.constant dense<0.000000e+00> : vector<8x128xf32>
    %62 = tpu.matmul %2, %61, %cst_39 {dimension_numbers = #tpu.dot_dimension_numbers<[1], [0], [0], [1], [0, 0, 1, 1], [], []>} : vector<8x16xf32>, vector<16x128xf32>, vector<8x128xf32> -> vector<8x128xf32>
    %c0_40 = arith.constant 0 : index
    %c2_41 = arith.constant 2 : index
    %c0_42 = arith.constant 0 : index
    %c0_43 = arith.constant 0 : index
    %63 = vector.load %arg6[%c0_40, %c2_41, %c0_42, %c0_43] : memref<1x4x8x128xf32, #tpu.memory_space<vmem>>, vector<1x1x8x128xf32>
    %64 = vector.shape_cast %63 : vector<1x1x8x128xf32> to vector<8x128xf32>
    %65 = vector.shape_cast %62 : vector<8x128xf32> to vector<1x1x8x128xf32>
    tpu.vector_store %arg6[%c0_40, %c2_41, %c0_42, %c0_43], %65 {strides = array<i32>} : memref<1x4x8x128xf32, #tpu.memory_space<vmem>>, vector<1x1x8x128xf32>,
    %c0_44 = arith.constant 0 : index
    %c6 = arith.constant 6 : index
    %c0_45 = arith.constant 0 : index
    %c0_46 = arith.constant 0 : index
    %66 = vector.load %arg2[%c0_44, %c6, %c0_45, %c0_46] : memref<1x8x16x128xf32, #tpu.memory_space<vmem>>, vector<1x1x16x128xf32>
    %67 = vector.shape_cast %66 : vector<1x1x16x128xf32> to vector<16x128xf32>
    %c0_47 = arith.constant 0 : index
    %c7 = arith.constant 7 : index
    %c0_48 = arith.constant 0 : index
    %c0_49 = arith.constant 0 : index
    %68 = vector.load %arg2[%c0_47, %c7, %c0_48, %c0_49] : memref<1x8x16x128xf32, #tpu.memory_space<vmem>>, vector<1x1x16x128xf32>
    %69 = vector.shape_cast %68 : vector<1x1x16x128xf32> to vector<16x128xf32>
    %70 = vector.broadcast %0 : vector<1x128xf32> to vector<16x128xf32>
    %71 = arith.mulf %67, %70 : vector<16x128xf32>
    %72 = vector.broadcast %1 : vector<1x128xf32> to vector<16x128xf32>
    %73 = arith.addf %71, %72 : vector<16x128xf32>
    %cst_50 = arith.constant 0.000000e+00 : f32
    %74 = vector.broadcast %cst_50 : f32 to vector<16x128xf32>
    %75 = arith.maximumf %73, %74 : vector<16x128xf32>
    %76 = vector.broadcast %0 : vector<1x128xf32> to vector<16x128xf32>
    %77 = arith.mulf %69, %76 : vector<16x128xf32>
    %78 = vector.broadcast %1 : vector<1x128xf32> to vector<16x128xf32>
    %79 = arith.addf %77, %78 : vector<16x128xf32>
    %cst_51 = arith.constant 0.000000e+00 : f32
    %80 = vector.broadcast %cst_51 : f32 to vector<16x128xf32>
    %81 = arith.maximumf %79, %80 : vector<16x128xf32>
    %82 = arith.addf %75, %81 : vector<16x128xf32>
    %cst_52 = arith.constant dense<0.000000e+00> : vector<8x128xf32>
    %83 = tpu.matmul %2, %82, %cst_52 {dimension_numbers = #tpu.dot_dimension_numbers<[1], [0], [0], [1], [0, 0, 1, 1], [], []>} : vector<8x16xf32>, vector<16x128xf32>, vector<8x128xf32> -> vector<8x128xf32>
    %c0_53 = arith.constant 0 : index
    %c3_54 = arith.constant 3 : index
    %c0_55 = arith.constant 0 : index
    %c0_56 = arith.constant 0 : index
    %84 = vector.load %arg6[%c0_53, %c3_54, %c0_55, %c0_56] : memref<1x4x8x128xf32, #tpu.memory_space<vmem>>, vector<1x1x8x128xf32>
    %85 = vector.shape_cast %84 : vector<1x1x8x128xf32> to vector<8x128xf32>
    %86 = vector.shape_cast %83 : vector<8x128xf32> to vector<1x1x8x128xf32>
    tpu.vector_store %arg6[%c0_53, %c3_54, %c0_55, %c0_56], %86 {strides = array<i32>} : memref<1x4x8x128xf32, #tpu.memory_space<vmem>>, vector<1x1x8x128xf32>,
    return
  }
  func.func @transform_0(%arg0: i32, %arg1: i32) -> (i32, i32, i32, i32) {
    %c0_i32 = arith.constant 0 : i32
    %c0_i32_0 = arith.constant 0 : i32
    %c0_i32_1 = arith.constant 0 : i32
    return %arg0, %arg1, %c0_i32, %c0_i32_0 : i32, i32, i32, i32
  }
  func.func @transform_1(%arg0: i32, %arg1: i32) -> (i32, i32) {
    %c0_i32 = arith.constant 0 : i32
    %c0_i32_0 = arith.constant 0 : i32
    %c0_i32_1 = arith.constant 0 : i32
    return %c0_i32, %c0_i32_0 : i32, i32
  }
  func.func @transform_2(%arg0: i32, %arg1: i32) -> (i32, i32) {
    %c0_i32 = arith.constant 0 : i32
    %c0_i32_0 = arith.constant 0 : i32
    %c0_i32_1 = arith.constant 0 : i32
    return %c0_i32, %c0_i32_0 : i32, i32
  }
  func.func @transform_3(%arg0: i32, %arg1: i32) -> (i32, i32) {
    %c0_i32 = arith.constant 0 : i32
    %c0_i32_0 = arith.constant 0 : i32
    %c0_i32_1 = arith.constant 0 : i32
    return %c0_i32, %c0_i32_0 : i32, i32
  }
  func.func @transform_4(%arg0: i32, %arg1: i32) -> (i32, i32, i32, i32) {
    %c0_i32 = arith.constant 0 : i32
    %c0_i32_0 = arith.constant 0 : i32
    %c0_i32_1 = arith.constant 0 : i32
    return %arg0, %arg1, %c0_i32, %c0_i32_0 : i32, i32, i32, i32
  }
}

module attributes {stable_mosaic.version = 11 : i64} {
  func.func @_conv_bias_stats_kernel(%arg0: i32, %arg1: memref<128x144xbf16, #tpu.memory_space<vmem>>, %arg2: memref<144x128xbf16, #tpu.memory_space<vmem>>, %arg3: memref<1x128xf32, #tpu.memory_space<vmem>>, %arg4: memref<128x128xf32, #tpu.memory_space<vmem>>, %arg5: memref<8x128xf32, #tpu.memory_space<vmem>>) attributes {dimension_semantics = [#tpu.dimension_semantics<parallel>], iteration_bounds = array<i64: 1>, scalar_prefetch = 0 : i64, scratch_operands = 0 : i64, tpu.core_type = #tpu.core_type<tc>, window_params = [{transform_indices = @transform_0, window_bounds = array<i64: 128, 144>}, {pipeline_mode = #tpu.pipeline_mode<synchronous>, transform_indices = @transform_1, window_bounds = array<i64: 144, 128>}, {pipeline_mode = #tpu.pipeline_mode<synchronous>, transform_indices = @transform_2, window_bounds = array<i64: 1, 128>}, {transform_indices = @transform_3, window_bounds = array<i64: 128, 128>}, {transform_indices = @transform_4, window_bounds = array<i64: 8, 128>}]} {
    %c0 = arith.constant 0 : index
    %c0_0 = arith.constant 0 : index
    %0 = vector.load %arg1[%c0, %c0_0] : memref<128x144xbf16, #tpu.memory_space<vmem>>, vector<128x144xbf16>
    %c0_1 = arith.constant 0 : index
    %c0_2 = arith.constant 0 : index
    %1 = vector.load %arg2[%c0_1, %c0_2] : memref<144x128xbf16, #tpu.memory_space<vmem>>, vector<144x128xbf16>
    %cst = arith.constant dense<0.000000e+00> : vector<128x128xf32>
    %2 = tpu.matmul %0, %1, %cst {dimension_numbers = #tpu.dot_dimension_numbers<[1], [0], [0], [1], [0, 0, 1, 1], [], []>} : vector<128x144xbf16>, vector<144x128xbf16>, vector<128x128xf32> -> vector<128x128xf32>
    %c0_3 = arith.constant 0 : index
    %c0_4 = arith.constant 0 : index
    %3 = vector.load %arg3[%c0_3, %c0_4] : memref<1x128xf32, #tpu.memory_space<vmem>>, vector<1x128xf32>
    %4 = vector.broadcast %3 : vector<1x128xf32> to vector<128x128xf32>
    %5 = arith.addf %2, %4 : vector<128x128xf32>
    %c0_5 = arith.constant 0 : index
    %c0_6 = arith.constant 0 : index
    %6 = vector.load %arg4[%c0_5, %c0_6] : memref<128x128xf32, #tpu.memory_space<vmem>>, vector<128x128xf32>
    tpu.vector_store %arg4[%c0_5, %c0_6], %5 {strides = array<i32>} : memref<128x128xf32, #tpu.memory_space<vmem>>, vector<128x128xf32>,
    %cst_7 = arith.constant 0.000000e+00 : f32
    %7 = vector.broadcast %cst_7 : f32 to vector<8x128xf32>
    %c0_8 = arith.constant 0 : index
    %c0_9 = arith.constant 0 : index
    %8 = vector.load %arg5[%c0_8, %c0_9] : memref<8x128xf32, #tpu.memory_space<vmem>>, vector<8x128xf32>
    tpu.vector_store %arg5[%c0_8, %c0_9], %7 {strides = array<i32>} : memref<8x128xf32, #tpu.memory_space<vmem>>, vector<8x128xf32>,
    %cst_10 = arith.constant dense<0.000000e+00> : vector<128xf32>
    %9 = vector.multi_reduction <add>, %5, %cst_10 [0] : vector<128x128xf32> to vector<128xf32>
    %10 = vector.shape_cast %9 : vector<128xf32> to vector<1x128xf32>
    %c0_11 = arith.constant 0 : index
    %c0_12 = arith.constant 0 : index
    %11 = vector.load %arg5[%c0_11, %c0_12] : memref<8x128xf32, #tpu.memory_space<vmem>>, vector<1x128xf32>
    tpu.vector_store %arg5[%c0_11, %c0_12], %10 {strides = array<i32>} : memref<8x128xf32, #tpu.memory_space<vmem>>, vector<1x128xf32>,
    %12 = arith.mulf %5, %5 : vector<128x128xf32>
    %cst_13 = arith.constant dense<0.000000e+00> : vector<128xf32>
    %13 = vector.multi_reduction <add>, %12, %cst_13 [0] : vector<128x128xf32> to vector<128xf32>
    %14 = vector.shape_cast %13 : vector<128xf32> to vector<1x128xf32>
    %c1 = arith.constant 1 : index
    %c0_14 = arith.constant 0 : index
    %15 = vector.load %arg5[%c1, %c0_14] : memref<8x128xf32, #tpu.memory_space<vmem>>, vector<1x128xf32>
    tpu.vector_store %arg5[%c1, %c0_14], %14 {strides = array<i32>} : memref<8x128xf32, #tpu.memory_space<vmem>>, vector<1x128xf32>,
    return
  }
  func.func @transform_0(%arg0: i32) -> (i32, i32) {
    %c0_i32 = arith.constant 0 : i32
    %c0_i32_0 = arith.constant 0 : i32
    return %arg0, %c0_i32 : i32, i32
  }
  func.func @transform_1(%arg0: i32) -> (i32, i32) {
    %c0_i32 = arith.constant 0 : i32
    %c0_i32_0 = arith.constant 0 : i32
    %c0_i32_1 = arith.constant 0 : i32
    return %c0_i32, %c0_i32_0 : i32, i32
  }
  func.func @transform_2(%arg0: i32) -> (i32, i32) {
    %c0_i32 = arith.constant 0 : i32
    %c0_i32_0 = arith.constant 0 : i32
    %c0_i32_1 = arith.constant 0 : i32
    return %c0_i32, %c0_i32_0 : i32, i32
  }
  func.func @transform_3(%arg0: i32) -> (i32, i32) {
    %c0_i32 = arith.constant 0 : i32
    %c0_i32_0 = arith.constant 0 : i32
    return %arg0, %c0_i32 : i32, i32
  }
  func.func @transform_4(%arg0: i32) -> (i32, i32) {
    %c0_i32 = arith.constant 0 : i32
    %c0_i32_0 = arith.constant 0 : i32
    return %arg0, %c0_i32 : i32, i32
  }
}

module attributes {stable_mosaic.version = 11 : i64} {
  func.func @_bn_relu_pool_kernel(%arg0: i32, %arg1: i32, %arg2: memref<1x8x8x128xf32, #tpu.memory_space<vmem>>, %arg3: memref<1x128xf32, #tpu.memory_space<vmem>>, %arg4: memref<1x128xf32, #tpu.memory_space<vmem>>, %arg5: memref<4x8xf32, #tpu.memory_space<vmem>>, %arg6: memref<1x4x4x128xf32, #tpu.memory_space<vmem>>) attributes {dimension_semantics = [#tpu.dimension_semantics<parallel>, #tpu.dimension_semantics<parallel>], iteration_bounds = array<i64: 2, 1>, scalar_prefetch = 0 : i64, scratch_operands = 0 : i64, tpu.core_type = #tpu.core_type<tc>, window_params = [{transform_indices = @transform_0, window_bounds = array<i64: 1, 8, 8, 128>}, {pipeline_mode = #tpu.pipeline_mode<synchronous>, transform_indices = @transform_1, window_bounds = array<i64: 1, 128>}, {pipeline_mode = #tpu.pipeline_mode<synchronous>, transform_indices = @transform_2, window_bounds = array<i64: 1, 128>}, {pipeline_mode = #tpu.pipeline_mode<synchronous>, transform_indices = @transform_3, window_bounds = array<i64: 4, 8>}, {transform_indices = @transform_4, window_bounds = array<i64: 1, 4, 4, 128>}]} {
    %c0 = arith.constant 0 : index
    %c0_0 = arith.constant 0 : index
    %0 = vector.load %arg3[%c0, %c0_0] : memref<1x128xf32, #tpu.memory_space<vmem>>, vector<1x128xf32>
    %c0_1 = arith.constant 0 : index
    %c0_2 = arith.constant 0 : index
    %1 = vector.load %arg4[%c0_1, %c0_2] : memref<1x128xf32, #tpu.memory_space<vmem>>, vector<1x128xf32>
    %c0_3 = arith.constant 0 : index
    %c0_4 = arith.constant 0 : index
    %2 = vector.load %arg5[%c0_3, %c0_4] : memref<4x8xf32, #tpu.memory_space<vmem>>, vector<4x8xf32>
    %c0_5 = arith.constant 0 : index
    %c0_6 = arith.constant 0 : index
    %c0_7 = arith.constant 0 : index
    %c0_8 = arith.constant 0 : index
    %3 = vector.load %arg2[%c0_5, %c0_6, %c0_7, %c0_8] : memref<1x8x8x128xf32, #tpu.memory_space<vmem>>, vector<1x1x8x128xf32>
    %4 = vector.shape_cast %3 : vector<1x1x8x128xf32> to vector<8x128xf32>
    %c0_9 = arith.constant 0 : index
    %c1 = arith.constant 1 : index
    %c0_10 = arith.constant 0 : index
    %c0_11 = arith.constant 0 : index
    %5 = vector.load %arg2[%c0_9, %c1, %c0_10, %c0_11] : memref<1x8x8x128xf32, #tpu.memory_space<vmem>>, vector<1x1x8x128xf32>
    %6 = vector.shape_cast %5 : vector<1x1x8x128xf32> to vector<8x128xf32>
    %7 = vector.broadcast %0 : vector<1x128xf32> to vector<8x128xf32>
    %8 = arith.mulf %4, %7 : vector<8x128xf32>
    %9 = vector.broadcast %1 : vector<1x128xf32> to vector<8x128xf32>
    %10 = arith.addf %8, %9 : vector<8x128xf32>
    %cst = arith.constant 0.000000e+00 : f32
    %11 = vector.broadcast %cst : f32 to vector<8x128xf32>
    %12 = arith.maximumf %10, %11 : vector<8x128xf32>
    %13 = vector.broadcast %0 : vector<1x128xf32> to vector<8x128xf32>
    %14 = arith.mulf %6, %13 : vector<8x128xf32>
    %15 = vector.broadcast %1 : vector<1x128xf32> to vector<8x128xf32>
    %16 = arith.addf %14, %15 : vector<8x128xf32>
    %cst_12 = arith.constant 0.000000e+00 : f32
    %17 = vector.broadcast %cst_12 : f32 to vector<8x128xf32>
    %18 = arith.maximumf %16, %17 : vector<8x128xf32>
    %19 = arith.addf %12, %18 : vector<8x128xf32>
    %cst_13 = arith.constant dense<0.000000e+00> : vector<4x128xf32>
    %20 = tpu.matmul %2, %19, %cst_13 {dimension_numbers = #tpu.dot_dimension_numbers<[1], [0], [0], [1], [0, 0, 1, 1], [], []>} : vector<4x8xf32>, vector<8x128xf32>, vector<4x128xf32> -> vector<4x128xf32>
    %c0_14 = arith.constant 0 : index
    %c0_15 = arith.constant 0 : index
    %c0_16 = arith.constant 0 : index
    %c0_17 = arith.constant 0 : index
    %21 = vector.load %arg6[%c0_14, %c0_15, %c0_16, %c0_17] : memref<1x4x4x128xf32, #tpu.memory_space<vmem>>, vector<1x1x4x128xf32>
    %22 = vector.shape_cast %21 : vector<1x1x4x128xf32> to vector<4x128xf32>
    %23 = vector.shape_cast %20 : vector<4x128xf32> to vector<1x1x4x128xf32>
    tpu.vector_store %arg6[%c0_14, %c0_15, %c0_16, %c0_17], %23 {strides = array<i32>} : memref<1x4x4x128xf32, #tpu.memory_space<vmem>>, vector<1x1x4x128xf32>,
    %c0_18 = arith.constant 0 : index
    %c2 = arith.constant 2 : index
    %c0_19 = arith.constant 0 : index
    %c0_20 = arith.constant 0 : index
    %24 = vector.load %arg2[%c0_18, %c2, %c0_19, %c0_20] : memref<1x8x8x128xf32, #tpu.memory_space<vmem>>, vector<1x1x8x128xf32>
    %25 = vector.shape_cast %24 : vector<1x1x8x128xf32> to vector<8x128xf32>
    %c0_21 = arith.constant 0 : index
    %c3 = arith.constant 3 : index
    %c0_22 = arith.constant 0 : index
    %c0_23 = arith.constant 0 : index
    %26 = vector.load %arg2[%c0_21, %c3, %c0_22, %c0_23] : memref<1x8x8x128xf32, #tpu.memory_space<vmem>>, vector<1x1x8x128xf32>
    %27 = vector.shape_cast %26 : vector<1x1x8x128xf32> to vector<8x128xf32>
    %28 = vector.broadcast %0 : vector<1x128xf32> to vector<8x128xf32>
    %29 = arith.mulf %25, %28 : vector<8x128xf32>
    %30 = vector.broadcast %1 : vector<1x128xf32> to vector<8x128xf32>
    %31 = arith.addf %29, %30 : vector<8x128xf32>
    %cst_24 = arith.constant 0.000000e+00 : f32
    %32 = vector.broadcast %cst_24 : f32 to vector<8x128xf32>
    %33 = arith.maximumf %31, %32 : vector<8x128xf32>
    %34 = vector.broadcast %0 : vector<1x128xf32> to vector<8x128xf32>
    %35 = arith.mulf %27, %34 : vector<8x128xf32>
    %36 = vector.broadcast %1 : vector<1x128xf32> to vector<8x128xf32>
    %37 = arith.addf %35, %36 : vector<8x128xf32>
    %cst_25 = arith.constant 0.000000e+00 : f32
    %38 = vector.broadcast %cst_25 : f32 to vector<8x128xf32>
    %39 = arith.maximumf %37, %38 : vector<8x128xf32>
    %40 = arith.addf %33, %39 : vector<8x128xf32>
    %cst_26 = arith.constant dense<0.000000e+00> : vector<4x128xf32>
    %41 = tpu.matmul %2, %40, %cst_26 {dimension_numbers = #tpu.dot_dimension_numbers<[1], [0], [0], [1], [0, 0, 1, 1], [], []>} : vector<4x8xf32>, vector<8x128xf32>, vector<4x128xf32> -> vector<4x128xf32>
    %c0_27 = arith.constant 0 : index
    %c1_28 = arith.constant 1 : index
    %c0_29 = arith.constant 0 : index
    %c0_30 = arith.constant 0 : index
    %42 = vector.load %arg6[%c0_27, %c1_28, %c0_29, %c0_30] : memref<1x4x4x128xf32, #tpu.memory_space<vmem>>, vector<1x1x4x128xf32>
    %43 = vector.shape_cast %42 : vector<1x1x4x128xf32> to vector<4x128xf32>
    %44 = vector.shape_cast %41 : vector<4x128xf32> to vector<1x1x4x128xf32>
    tpu.vector_store %arg6[%c0_27, %c1_28, %c0_29, %c0_30], %44 {strides = array<i32>} : memref<1x4x4x128xf32, #tpu.memory_space<vmem>>, vector<1x1x4x128xf32>,
    %c0_31 = arith.constant 0 : index
    %c4 = arith.constant 4 : index
    %c0_32 = arith.constant 0 : index
    %c0_33 = arith.constant 0 : index
    %45 = vector.load %arg2[%c0_31, %c4, %c0_32, %c0_33] : memref<1x8x8x128xf32, #tpu.memory_space<vmem>>, vector<1x1x8x128xf32>
    %46 = vector.shape_cast %45 : vector<1x1x8x128xf32> to vector<8x128xf32>
    %c0_34 = arith.constant 0 : index
    %c5 = arith.constant 5 : index
    %c0_35 = arith.constant 0 : index
    %c0_36 = arith.constant 0 : index
    %47 = vector.load %arg2[%c0_34, %c5, %c0_35, %c0_36] : memref<1x8x8x128xf32, #tpu.memory_space<vmem>>, vector<1x1x8x128xf32>
    %48 = vector.shape_cast %47 : vector<1x1x8x128xf32> to vector<8x128xf32>
    %49 = vector.broadcast %0 : vector<1x128xf32> to vector<8x128xf32>
    %50 = arith.mulf %46, %49 : vector<8x128xf32>
    %51 = vector.broadcast %1 : vector<1x128xf32> to vector<8x128xf32>
    %52 = arith.addf %50, %51 : vector<8x128xf32>
    %cst_37 = arith.constant 0.000000e+00 : f32
    %53 = vector.broadcast %cst_37 : f32 to vector<8x128xf32>
    %54 = arith.maximumf %52, %53 : vector<8x128xf32>
    %55 = vector.broadcast %0 : vector<1x128xf32> to vector<8x128xf32>
    %56 = arith.mulf %48, %55 : vector<8x128xf32>
    %57 = vector.broadcast %1 : vector<1x128xf32> to vector<8x128xf32>
    %58 = arith.addf %56, %57 : vector<8x128xf32>
    %cst_38 = arith.constant 0.000000e+00 : f32
    %59 = vector.broadcast %cst_38 : f32 to vector<8x128xf32>
    %60 = arith.maximumf %58, %59 : vector<8x128xf32>
    %61 = arith.addf %54, %60 : vector<8x128xf32>
    %cst_39 = arith.constant dense<0.000000e+00> : vector<4x128xf32>
    %62 = tpu.matmul %2, %61, %cst_39 {dimension_numbers = #tpu.dot_dimension_numbers<[1], [0], [0], [1], [0, 0, 1, 1], [], []>} : vector<4x8xf32>, vector<8x128xf32>, vector<4x128xf32> -> vector<4x128xf32>
    %c0_40 = arith.constant 0 : index
    %c2_41 = arith.constant 2 : index
    %c0_42 = arith.constant 0 : index
    %c0_43 = arith.constant 0 : index
    %63 = vector.load %arg6[%c0_40, %c2_41, %c0_42, %c0_43] : memref<1x4x4x128xf32, #tpu.memory_space<vmem>>, vector<1x1x4x128xf32>
    %64 = vector.shape_cast %63 : vector<1x1x4x128xf32> to vector<4x128xf32>
    %65 = vector.shape_cast %62 : vector<4x128xf32> to vector<1x1x4x128xf32>
    tpu.vector_store %arg6[%c0_40, %c2_41, %c0_42, %c0_43], %65 {strides = array<i32>} : memref<1x4x4x128xf32, #tpu.memory_space<vmem>>, vector<1x1x4x128xf32>,
    %c0_44 = arith.constant 0 : index
    %c6 = arith.constant 6 : index
    %c0_45 = arith.constant 0 : index
    %c0_46 = arith.constant 0 : index
    %66 = vector.load %arg2[%c0_44, %c6, %c0_45, %c0_46] : memref<1x8x8x128xf32, #tpu.memory_space<vmem>>, vector<1x1x8x128xf32>
    %67 = vector.shape_cast %66 : vector<1x1x8x128xf32> to vector<8x128xf32>
    %c0_47 = arith.constant 0 : index
    %c7 = arith.constant 7 : index
    %c0_48 = arith.constant 0 : index
    %c0_49 = arith.constant 0 : index
    %68 = vector.load %arg2[%c0_47, %c7, %c0_48, %c0_49] : memref<1x8x8x128xf32, #tpu.memory_space<vmem>>, vector<1x1x8x128xf32>
    %69 = vector.shape_cast %68 : vector<1x1x8x128xf32> to vector<8x128xf32>
    %70 = vector.broadcast %0 : vector<1x128xf32> to vector<8x128xf32>
    %71 = arith.mulf %67, %70 : vector<8x128xf32>
    %72 = vector.broadcast %1 : vector<1x128xf32> to vector<8x128xf32>
    %73 = arith.addf %71, %72 : vector<8x128xf32>
    %cst_50 = arith.constant 0.000000e+00 : f32
    %74 = vector.broadcast %cst_50 : f32 to vector<8x128xf32>
    %75 = arith.maximumf %73, %74 : vector<8x128xf32>
    %76 = vector.broadcast %0 : vector<1x128xf32> to vector<8x128xf32>
    %77 = arith.mulf %69, %76 : vector<8x128xf32>
    %78 = vector.broadcast %1 : vector<1x128xf32> to vector<8x128xf32>
    %79 = arith.addf %77, %78 : vector<8x128xf32>
    %cst_51 = arith.constant 0.000000e+00 : f32
    %80 = vector.broadcast %cst_51 : f32 to vector<8x128xf32>
    %81 = arith.maximumf %79, %80 : vector<8x128xf32>
    %82 = arith.addf %75, %81 : vector<8x128xf32>
    %cst_52 = arith.constant dense<0.000000e+00> : vector<4x128xf32>
    %83 = tpu.matmul %2, %82, %cst_52 {dimension_numbers = #tpu.dot_dimension_numbers<[1], [0], [0], [1], [0, 0, 1, 1], [], []>} : vector<4x8xf32>, vector<8x128xf32>, vector<4x128xf32> -> vector<4x128xf32>
    %c0_53 = arith.constant 0 : index
    %c3_54 = arith.constant 3 : index
    %c0_55 = arith.constant 0 : index
    %c0_56 = arith.constant 0 : index
    %84 = vector.load %arg6[%c0_53, %c3_54, %c0_55, %c0_56] : memref<1x4x4x128xf32, #tpu.memory_space<vmem>>, vector<1x1x4x128xf32>
    %85 = vector.shape_cast %84 : vector<1x1x4x128xf32> to vector<4x128xf32>
    %86 = vector.shape_cast %83 : vector<4x128xf32> to vector<1x1x4x128xf32>
    tpu.vector_store %arg6[%c0_53, %c3_54, %c0_55, %c0_56], %86 {strides = array<i32>} : memref<1x4x4x128xf32, #tpu.memory_space<vmem>>, vector<1x1x4x128xf32>,
    return
  }
  func.func @transform_0(%arg0: i32, %arg1: i32) -> (i32, i32, i32, i32) {
    %c0_i32 = arith.constant 0 : i32
    %c0_i32_0 = arith.constant 0 : i32
    %c0_i32_1 = arith.constant 0 : i32
    return %arg0, %arg1, %c0_i32, %c0_i32_0 : i32, i32, i32, i32
  }
  func.func @transform_1(%arg0: i32, %arg1: i32) -> (i32, i32) {
    %c0_i32 = arith.constant 0 : i32
    %c0_i32_0 = arith.constant 0 : i32
    %c0_i32_1 = arith.constant 0 : i32
    return %c0_i32, %c0_i32_0 : i32, i32
  }
  func.func @transform_2(%arg0: i32, %arg1: i32) -> (i32, i32) {
    %c0_i32 = arith.constant 0 : i32
    %c0_i32_0 = arith.constant 0 : i32
    %c0_i32_1 = arith.constant 0 : i32
    return %c0_i32, %c0_i32_0 : i32, i32
  }
  func.func @transform_3(%arg0: i32, %arg1: i32) -> (i32, i32) {
    %c0_i32 = arith.constant 0 : i32
    %c0_i32_0 = arith.constant 0 : i32
    %c0_i32_1 = arith.constant 0 : i32
    return %c0_i32, %c0_i32_0 : i32, i32
  }
  func.func @transform_4(%arg0: i32, %arg1: i32) -> (i32, i32, i32, i32) {
    %c0_i32 = arith.constant 0 : i32
    %c0_i32_0 = arith.constant 0 : i32
    %c0_i32_1 = arith.constant 0 : i32
    return %arg0, %arg1, %c0_i32, %c0_i32_0 : i32, i32, i32, i32
  }
}

module attributes {stable_mosaic.version = 11 : i64} {
  func.func @_conv_bias_stats_kernel(%arg0: i32, %arg1: memref<32x288xbf16, #tpu.memory_space<vmem>>, %arg2: memref<288x128xbf16, #tpu.memory_space<vmem>>, %arg3: memref<1x128xf32, #tpu.memory_space<vmem>>, %arg4: memref<32x128xf32, #tpu.memory_space<vmem>>, %arg5: memref<8x128xf32, #tpu.memory_space<vmem>>) attributes {dimension_semantics = [#tpu.dimension_semantics<parallel>], iteration_bounds = array<i64: 1>, scalar_prefetch = 0 : i64, scratch_operands = 0 : i64, tpu.core_type = #tpu.core_type<tc>, window_params = [{transform_indices = @transform_0, window_bounds = array<i64: 32, 288>}, {pipeline_mode = #tpu.pipeline_mode<synchronous>, transform_indices = @transform_1, window_bounds = array<i64: 288, 128>}, {pipeline_mode = #tpu.pipeline_mode<synchronous>, transform_indices = @transform_2, window_bounds = array<i64: 1, 128>}, {transform_indices = @transform_3, window_bounds = array<i64: 32, 128>}, {transform_indices = @transform_4, window_bounds = array<i64: 8, 128>}]} {
    %c0 = arith.constant 0 : index
    %c0_0 = arith.constant 0 : index
    %0 = vector.load %arg1[%c0, %c0_0] : memref<32x288xbf16, #tpu.memory_space<vmem>>, vector<32x288xbf16>
    %c0_1 = arith.constant 0 : index
    %c0_2 = arith.constant 0 : index
    %1 = vector.load %arg2[%c0_1, %c0_2] : memref<288x128xbf16, #tpu.memory_space<vmem>>, vector<288x128xbf16>
    %cst = arith.constant dense<0.000000e+00> : vector<32x128xf32>
    %2 = tpu.matmul %0, %1, %cst {dimension_numbers = #tpu.dot_dimension_numbers<[1], [0], [0], [1], [0, 0, 1, 1], [], []>} : vector<32x288xbf16>, vector<288x128xbf16>, vector<32x128xf32> -> vector<32x128xf32>
    %c0_3 = arith.constant 0 : index
    %c0_4 = arith.constant 0 : index
    %3 = vector.load %arg3[%c0_3, %c0_4] : memref<1x128xf32, #tpu.memory_space<vmem>>, vector<1x128xf32>
    %4 = vector.broadcast %3 : vector<1x128xf32> to vector<32x128xf32>
    %5 = arith.addf %2, %4 : vector<32x128xf32>
    %c0_5 = arith.constant 0 : index
    %c0_6 = arith.constant 0 : index
    %6 = vector.load %arg4[%c0_5, %c0_6] : memref<32x128xf32, #tpu.memory_space<vmem>>, vector<32x128xf32>
    tpu.vector_store %arg4[%c0_5, %c0_6], %5 {strides = array<i32>} : memref<32x128xf32, #tpu.memory_space<vmem>>, vector<32x128xf32>,
    %cst_7 = arith.constant 0.000000e+00 : f32
    %7 = vector.broadcast %cst_7 : f32 to vector<8x128xf32>
    %c0_8 = arith.constant 0 : index
    %c0_9 = arith.constant 0 : index
    %8 = vector.load %arg5[%c0_8, %c0_9] : memref<8x128xf32, #tpu.memory_space<vmem>>, vector<8x128xf32>
    tpu.vector_store %arg5[%c0_8, %c0_9], %7 {strides = array<i32>} : memref<8x128xf32, #tpu.memory_space<vmem>>, vector<8x128xf32>,
    %cst_10 = arith.constant dense<0.000000e+00> : vector<128xf32>
    %9 = vector.multi_reduction <add>, %5, %cst_10 [0] : vector<32x128xf32> to vector<128xf32>
    %10 = vector.shape_cast %9 : vector<128xf32> to vector<1x128xf32>
    %c0_11 = arith.constant 0 : index
    %c0_12 = arith.constant 0 : index
    %11 = vector.load %arg5[%c0_11, %c0_12] : memref<8x128xf32, #tpu.memory_space<vmem>>, vector<1x128xf32>
    tpu.vector_store %arg5[%c0_11, %c0_12], %10 {strides = array<i32>} : memref<8x128xf32, #tpu.memory_space<vmem>>, vector<1x128xf32>,
    %12 = arith.mulf %5, %5 : vector<32x128xf32>
    %cst_13 = arith.constant dense<0.000000e+00> : vector<128xf32>
    %13 = vector.multi_reduction <add>, %12, %cst_13 [0] : vector<32x128xf32> to vector<128xf32>
    %14 = vector.shape_cast %13 : vector<128xf32> to vector<1x128xf32>
    %c1 = arith.constant 1 : index
    %c0_14 = arith.constant 0 : index
    %15 = vector.load %arg5[%c1, %c0_14] : memref<8x128xf32, #tpu.memory_space<vmem>>, vector<1x128xf32>
    tpu.vector_store %arg5[%c1, %c0_14], %14 {strides = array<i32>} : memref<8x128xf32, #tpu.memory_space<vmem>>, vector<1x128xf32>,
    return
  }
  func.func @transform_0(%arg0: i32) -> (i32, i32) {
    %c0_i32 = arith.constant 0 : i32
    %c0_i32_0 = arith.constant 0 : i32
    return %arg0, %c0_i32 : i32, i32
  }
  func.func @transform_1(%arg0: i32) -> (i32, i32) {
    %c0_i32 = arith.constant 0 : i32
    %c0_i32_0 = arith.constant 0 : i32
    %c0_i32_1 = arith.constant 0 : i32
    return %c0_i32, %c0_i32_0 : i32, i32
  }
  func.func @transform_2(%arg0: i32) -> (i32, i32) {
    %c0_i32 = arith.constant 0 : i32
    %c0_i32_0 = arith.constant 0 : i32
    %c0_i32_1 = arith.constant 0 : i32
    return %c0_i32, %c0_i32_0 : i32, i32
  }
  func.func @transform_3(%arg0: i32) -> (i32, i32) {
    %c0_i32 = arith.constant 0 : i32
    %c0_i32_0 = arith.constant 0 : i32
    return %arg0, %c0_i32 : i32, i32
  }
  func.func @transform_4(%arg0: i32) -> (i32, i32) {
    %c0_i32 = arith.constant 0 : i32
    %c0_i32_0 = arith.constant 0 : i32
    return %arg0, %c0_i32 : i32, i32
  }
}

module attributes {stable_mosaic.version = 11 : i64} {
  func.func @_bn_relu_pool_kernel(%arg0: i32, %arg1: i32, %arg2: memref<1x4x4x128xf32, #tpu.memory_space<vmem>>, %arg3: memref<1x128xf32, #tpu.memory_space<vmem>>, %arg4: memref<1x128xf32, #tpu.memory_space<vmem>>, %arg5: memref<2x4xf32, #tpu.memory_space<vmem>>, %arg6: memref<1x2x2x128xf32, #tpu.memory_space<vmem>>) attributes {dimension_semantics = [#tpu.dimension_semantics<parallel>, #tpu.dimension_semantics<parallel>], iteration_bounds = array<i64: 2, 1>, scalar_prefetch = 0 : i64, scratch_operands = 0 : i64, tpu.core_type = #tpu.core_type<tc>, window_params = [{transform_indices = @transform_0, window_bounds = array<i64: 1, 4, 4, 128>}, {pipeline_mode = #tpu.pipeline_mode<synchronous>, transform_indices = @transform_1, window_bounds = array<i64: 1, 128>}, {pipeline_mode = #tpu.pipeline_mode<synchronous>, transform_indices = @transform_2, window_bounds = array<i64: 1, 128>}, {pipeline_mode = #tpu.pipeline_mode<synchronous>, transform_indices = @transform_3, window_bounds = array<i64: 2, 4>}, {transform_indices = @transform_4, window_bounds = array<i64: 1, 2, 2, 128>}]} {
    %c0 = arith.constant 0 : index
    %c0_0 = arith.constant 0 : index
    %0 = vector.load %arg3[%c0, %c0_0] : memref<1x128xf32, #tpu.memory_space<vmem>>, vector<1x128xf32>
    %c0_1 = arith.constant 0 : index
    %c0_2 = arith.constant 0 : index
    %1 = vector.load %arg4[%c0_1, %c0_2] : memref<1x128xf32, #tpu.memory_space<vmem>>, vector<1x128xf32>
    %c0_3 = arith.constant 0 : index
    %c0_4 = arith.constant 0 : index
    %2 = vector.load %arg5[%c0_3, %c0_4] : memref<2x4xf32, #tpu.memory_space<vmem>>, vector<2x4xf32>
    %c0_5 = arith.constant 0 : index
    %c0_6 = arith.constant 0 : index
    %c0_7 = arith.constant 0 : index
    %c0_8 = arith.constant 0 : index
    %3 = vector.load %arg2[%c0_5, %c0_6, %c0_7, %c0_8] : memref<1x4x4x128xf32, #tpu.memory_space<vmem>>, vector<1x1x4x128xf32>
    %4 = vector.shape_cast %3 : vector<1x1x4x128xf32> to vector<4x128xf32>
    %c0_9 = arith.constant 0 : index
    %c1 = arith.constant 1 : index
    %c0_10 = arith.constant 0 : index
    %c0_11 = arith.constant 0 : index
    %5 = vector.load %arg2[%c0_9, %c1, %c0_10, %c0_11] : memref<1x4x4x128xf32, #tpu.memory_space<vmem>>, vector<1x1x4x128xf32>
    %6 = vector.shape_cast %5 : vector<1x1x4x128xf32> to vector<4x128xf32>
    %7 = vector.broadcast %0 : vector<1x128xf32> to vector<4x128xf32>
    %8 = arith.mulf %4, %7 : vector<4x128xf32>
    %9 = vector.broadcast %1 : vector<1x128xf32> to vector<4x128xf32>
    %10 = arith.addf %8, %9 : vector<4x128xf32>
    %cst = arith.constant 0.000000e+00 : f32
    %11 = vector.broadcast %cst : f32 to vector<4x128xf32>
    %12 = arith.maximumf %10, %11 : vector<4x128xf32>
    %13 = vector.broadcast %0 : vector<1x128xf32> to vector<4x128xf32>
    %14 = arith.mulf %6, %13 : vector<4x128xf32>
    %15 = vector.broadcast %1 : vector<1x128xf32> to vector<4x128xf32>
    %16 = arith.addf %14, %15 : vector<4x128xf32>
    %cst_12 = arith.constant 0.000000e+00 : f32
    %17 = vector.broadcast %cst_12 : f32 to vector<4x128xf32>
    %18 = arith.maximumf %16, %17 : vector<4x128xf32>
    %19 = arith.addf %12, %18 : vector<4x128xf32>
    %cst_13 = arith.constant dense<0.000000e+00> : vector<2x128xf32>
    %20 = tpu.matmul %2, %19, %cst_13 {dimension_numbers = #tpu.dot_dimension_numbers<[1], [0], [0], [1], [0, 0, 1, 1], [], []>} : vector<2x4xf32>, vector<4x128xf32>, vector<2x128xf32> -> vector<2x128xf32>
    %c0_14 = arith.constant 0 : index
    %c0_15 = arith.constant 0 : index
    %c0_16 = arith.constant 0 : index
    %c0_17 = arith.constant 0 : index
    %21 = vector.load %arg6[%c0_14, %c0_15, %c0_16, %c0_17] : memref<1x2x2x128xf32, #tpu.memory_space<vmem>>, vector<1x1x2x128xf32>
    %22 = vector.shape_cast %21 : vector<1x1x2x128xf32> to vector<2x128xf32>
    %23 = vector.shape_cast %20 : vector<2x128xf32> to vector<1x1x2x128xf32>
    tpu.vector_store %arg6[%c0_14, %c0_15, %c0_16, %c0_17], %23 {strides = array<i32>} : memref<1x2x2x128xf32, #tpu.memory_space<vmem>>, vector<1x1x2x128xf32>,
    %c0_18 = arith.constant 0 : index
    %c2 = arith.constant 2 : index
    %c0_19 = arith.constant 0 : index
    %c0_20 = arith.constant 0 : index
    %24 = vector.load %arg2[%c0_18, %c2, %c0_19, %c0_20] : memref<1x4x4x128xf32, #tpu.memory_space<vmem>>, vector<1x1x4x128xf32>
    %25 = vector.shape_cast %24 : vector<1x1x4x128xf32> to vector<4x128xf32>
    %c0_21 = arith.constant 0 : index
    %c3 = arith.constant 3 : index
    %c0_22 = arith.constant 0 : index
    %c0_23 = arith.constant 0 : index
    %26 = vector.load %arg2[%c0_21, %c3, %c0_22, %c0_23] : memref<1x4x4x128xf32, #tpu.memory_space<vmem>>, vector<1x1x4x128xf32>
    %27 = vector.shape_cast %26 : vector<1x1x4x128xf32> to vector<4x128xf32>
    %28 = vector.broadcast %0 : vector<1x128xf32> to vector<4x128xf32>
    %29 = arith.mulf %25, %28 : vector<4x128xf32>
    %30 = vector.broadcast %1 : vector<1x128xf32> to vector<4x128xf32>
    %31 = arith.addf %29, %30 : vector<4x128xf32>
    %cst_24 = arith.constant 0.000000e+00 : f32
    %32 = vector.broadcast %cst_24 : f32 to vector<4x128xf32>
    %33 = arith.maximumf %31, %32 : vector<4x128xf32>
    %34 = vector.broadcast %0 : vector<1x128xf32> to vector<4x128xf32>
    %35 = arith.mulf %27, %34 : vector<4x128xf32>
    %36 = vector.broadcast %1 : vector<1x128xf32> to vector<4x128xf32>
    %37 = arith.addf %35, %36 : vector<4x128xf32>
    %cst_25 = arith.constant 0.000000e+00 : f32
    %38 = vector.broadcast %cst_25 : f32 to vector<4x128xf32>
    %39 = arith.maximumf %37, %38 : vector<4x128xf32>
    %40 = arith.addf %33, %39 : vector<4x128xf32>
    %cst_26 = arith.constant dense<0.000000e+00> : vector<2x128xf32>
    %41 = tpu.matmul %2, %40, %cst_26 {dimension_numbers = #tpu.dot_dimension_numbers<[1], [0], [0], [1], [0, 0, 1, 1], [], []>} : vector<2x4xf32>, vector<4x128xf32>, vector<2x128xf32> -> vector<2x128xf32>
    %c0_27 = arith.constant 0 : index
    %c1_28 = arith.constant 1 : index
    %c0_29 = arith.constant 0 : index
    %c0_30 = arith.constant 0 : index
    %42 = vector.load %arg6[%c0_27, %c1_28, %c0_29, %c0_30] : memref<1x2x2x128xf32, #tpu.memory_space<vmem>>, vector<1x1x2x128xf32>
    %43 = vector.shape_cast %42 : vector<1x1x2x128xf32> to vector<2x128xf32>
    %44 = vector.shape_cast %41 : vector<2x128xf32> to vector<1x1x2x128xf32>
    tpu.vector_store %arg6[%c0_27, %c1_28, %c0_29, %c0_30], %44 {strides = array<i32>} : memref<1x2x2x128xf32, #tpu.memory_space<vmem>>, vector<1x1x2x128xf32>,
    return
  }
  func.func @transform_0(%arg0: i32, %arg1: i32) -> (i32, i32, i32, i32) {
    %c0_i32 = arith.constant 0 : i32
    %c0_i32_0 = arith.constant 0 : i32
    %c0_i32_1 = arith.constant 0 : i32
    return %arg0, %arg1, %c0_i32, %c0_i32_0 : i32, i32, i32, i32
  }
  func.func @transform_1(%arg0: i32, %arg1: i32) -> (i32, i32) {
    %c0_i32 = arith.constant 0 : i32
    %c0_i32_0 = arith.constant 0 : i32
    %c0_i32_1 = arith.constant 0 : i32
    return %c0_i32, %c0_i32_0 : i32, i32
  }
  func.func @transform_2(%arg0: i32, %arg1: i32) -> (i32, i32) {
    %c0_i32 = arith.constant 0 : i32
    %c0_i32_0 = arith.constant 0 : i32
    %c0_i32_1 = arith.constant 0 : i32
    return %c0_i32, %c0_i32_0 : i32, i32
  }
  func.func @transform_3(%arg0: i32, %arg1: i32) -> (i32, i32) {
    %c0_i32 = arith.constant 0 : i32
    %c0_i32_0 = arith.constant 0 : i32
    %c0_i32_1 = arith.constant 0 : i32
    return %c0_i32, %c0_i32_0 : i32, i32
  }
  func.func @transform_4(%arg0: i32, %arg1: i32) -> (i32, i32, i32, i32) {
    %c0_i32 = arith.constant 0 : i32
    %c0_i32_0 = arith.constant 0 : i32
    %c0_i32_1 = arith.constant 0 : i32
    return %arg0, %arg1, %c0_i32, %c0_i32_0 : i32, i32, i32, i32
  }
}

</mosaic_0001>

<llo_original>
// kernel: encoder_forward.7
$region0: #{encoder_forward.7}
  #allocation0 [shape = 'u32[]', space=smem, size = 0x4, offset = 0x4, fixed_abs, tag = 'smem constant byte address 0x4 - core index']
  #allocation1 [shape = 'u32[72,128]{1,0:T(1,128)}', space=vmem, size = 0x9000, scoped, tag = 'internal scratch']
  %s0 = inlined_call_operand.vmem [shape: f32[2,16,16,128], index: 0, kind: input, shape index: {}]
  %s1 = inlined_call_operand.vmem [shape: f32[1,128], index: 1, kind: input, shape index: {}]
  %s2 = inlined_call_operand.vmem [shape: f32[1,128], index: 2, kind: input, shape index: {}]
  %s3 = inlined_call_operand.vmem [shape: f32[8,16], index: 3, kind: input, shape index: {}]
  %s4 = inlined_call_operand.vmem [shape: f32[2,8,8,128], index: 4, kind: output, shape index: {}]
  %s5 = sld [smem:[#allocation0]]
  $region49: #{encoder_forward.7} parent=0
    _
  %s7 = ssub.s32 1, %s5
  %s8 = scalar_select 0, %s7, %s5
  loop: start=0, step=1, limit=6
  $region2: #{encoder_forward.7} parent=0 // loop_pre_header
    _
  $region3: #{encoder_forward.7} parent=0 // loop_header
    %s10 = sphi 0, %s14
    %p11 = scmp.ge.s32.totalorder %s10, 6
    %s17 = sphi 0, %s29
    %s18 = sphi 0, %s25
    %s19 = sphi 0, %s17
    %s20 = sphi 0, %s18
    %s21 = sphi 0, %s19
    %s22 = sphi 0, %s20
    %s34 = sphi 0, %s36
    %s37 = sphi 0, %s34
    %s38 = sphi 0, %s37
    %s54 = sphi 0, %s38
    %s58 = sphi 0, %s58
    %s60 = sphi 0, %s58
    %s61 = sphi 0, %s60
    %s75 = sphi 0, %s61
    %s79 = sphi 0, %s79
    %s81 = sphi 0, %s79
    %s82 = sphi 0, %s81
    %s96 = sphi 0, %s82
    %s100 = sphi 0, %s100
    %s102 = sphi 0, %s100
    %s103 = sphi 0, %s102
    %s117 = sphi 0, %s103
    %s125 = sphi 0, %s127
    %s128 = sphi 0, %s125
    %s129 = sphi 0, %s128
    %s145 = sphi 0, %s129
  $region4: #{encoder_forward.7} parent=0 // loop_header_branch
    %13 = sbr.rel (%p11) target = $region8
  $region5: #{encoder_forward.7} parent=0 // loop_body
    %s15 = ssub.s32 %s10, 1
    %s16 = ssub.s32 %s10, 2
    %s23 = sadd.s32 1, %s18
    %p24 = scmp.ge.s32.totalorder %s23, 2
    %s25 = scalar_select %p24, 0, %s23
    %s26 = sadd.s32 1, %s17
    %s27 = scalar_select %p24, %s26, %s17
    %p28 = scmp.ge.s32.totalorder %s27, 2
    %s29 = scalar_select %p28, 0, %s27
    %s30 = ssub.s32 %s17, %s29
    %s31 = ssub.s32 %s18, %s25
    %s32 = sor.u32 %s30, %s31
    %p33 = scmp.eq.s32.totalorder %s32, 0
    %s35 = sadd.s32 %s34, 1
    %s36 = scalar_select %p33, %s34, %s35
    %p39 = pneg %p33
    %p40 = scmp.eq.s32.totalorder %s10, 3
    %p41 = por %p39, %p40
    %p42 = scmp.ne.s32.totalorder %s34, %s37
    %p43 = scmp.eq.s32.totalorder %s10, 0
    %p44 = por %p42, %p43
    %p45 = scmp.ne.s32.totalorder %s34, %s37
    %p46 = scmp.eq.s32.totalorder %s15, 3
    %p47 = por %p45, %p46
    %p48 = scmp.ne.s32.totalorder %s37, %s38
    %p49 = scmp.eq.s32.totalorder %s15, 0
    %p50 = por %p48, %p49
    %p51 = scmp.ne.s32.totalorder %s37, %s38
    %p52 = scmp.eq.s32.totalorder %s16, 3
    %p53 = por %p51, %p52
    %p55 = scmp.ne.s32.totalorder %s38, %s54
    %p56 = scmp.eq.s32.totalorder %s16, 0
    %p57 = por %p55, %p56
    %s59 = sadd.s32 %s58, 1
    %p62 = scmp.eq.s32.totalorder %s10, 3
    %p63 = scmp.ne.s32.totalorder %s58, %s60
    %p64 = scmp.eq.s32.totalorder %s10, 0
    %p65 = por %p63, %p64
    %p66 = scmp.ne.s32.totalorder %s58, %s60
    %p67 = scmp.eq.s32.totalorder %s15, 3
    %p68 = por %p66, %p67
    %p69 = scmp.ne.s32.totalorder %s60, %s61
    %p70 = scmp.eq.s32.totalorder %s15, 0
    %p71 = por %p69, %p70
    %p72 = scmp.ne.s32.totalorder %s60, %s61
    %p73 = scmp.eq.s32.totalorder %s16, 3
    %p74 = por %p72, %p73
    %p76 = scmp.ne.s32.totalorder %s61, %s75
    %p77 = scmp.eq.s32.totalorder %s16, 0
    %p78 = por %p76, %p77
    %s80 = sadd.s32 %s79, 1
    %p83 = scmp.eq.s32.totalorder %s10, 3
    %p84 = scmp.ne.s32.totalorder %s79, %s81
    %p85 = scmp.eq.s32.totalorder %s10, 0
    %p86 = por %p84, %p85
    %p87 = scmp.ne.s32.totalorder %s79, %s81
    %p88 = scmp.eq.s32.totalorder %s15, 3
    %p89 = por %p87, %p88
    %p90 = scmp.ne.s32.totalorder %s81, %s82
    %p91 = scmp.eq.s32.totalorder %s15, 0
    %p92 = por %p90, %p91
    %p93 = scmp.ne.s32.totalorder %s81, %s82
    %p94 = scmp.eq.s32.totalorder %s16, 3
    %p95 = por %p93, %p94
    %p97 = scmp.ne.s32.totalorder %s82, %s96
    %p98 = scmp.eq.s32.totalorder %s16, 0
    %p99 = por %p97, %p98
    %s101 = sadd.s32 %s100, 1
    %p104 = scmp.eq.s32.totalorder %s10, 3
    %p105 = scmp.ne.s32.totalorder %s100, %s102
    %p106 = scmp.eq.s32.totalorder %s10, 0
    %p107 = por %p105, %p106
    %p108 = scmp.ne.s32.totalorder %s100, %s102
    %p109 = scmp.eq.s32.totalorder %s15, 3
    %p110 = por %p108, %p109
    %p111 = scmp.ne.s32.totalorder %s102, %s103
    %p112 = scmp.eq.s32.totalorder %s15, 0
    %p113 = por %p111, %p112
    %p114 = scmp.ne.s32.totalorder %s102, %s103
    %p115 = scmp.eq.s32.totalorder %s16, 3
    %p116 = por %p114, %p115
    %p118 = scmp.ne.s32.totalorder %s103, %s117
    %p119 = scmp.eq.s32.totalorder %s16, 0
    %p120 = por %p118, %p119
    %s121 = ssub.s32 %s17, %s29
    %s122 = ssub.s32 %s18, %s25
    %s123 = sor.u32 %s121, %s122
    %p124 = scmp.eq.s32.totalorder %s123, 0
    %s126 = sadd.s32 %s125, 1
    %s127 = scalar_select %p124, %s125, %s126
    %p130 = pneg %p124
    %p131 = scmp.eq.s32.totalorder %s10, 3
    %p132 = por %p130, %p131
    %p133 = scmp.ne.s32.totalorder %s125, %s128
    %p134 = scmp.eq.s32.totalorder %s10, 0
    %p135 = por %p133, %p134
    %p136 = scmp.ne.s32.totalorder %s125, %s128
    %p137 = scmp.eq.s32.totalorder %s15, 3
    %p138 = por %p136, %p137
    %p139 = scmp.ne.s32.totalorder %s128, %s129
    %p140 = scmp.eq.s32.totalorder %s15, 0
    %p141 = por %p139, %p140
    %p142 = scmp.ne.s32.totalorder %s128, %s129
    %p143 = scmp.eq.s32.totalorder %s16, 3
    %p144 = por %p142, %p143
    %p146 = scmp.ne.s32.totalorder %s129, %s145
    %p147 = scmp.eq.s32.totalorder %s16, 0
    %p148 = por %p146, %p147
    %p149 = scmp.le.s32.totalorder 1, %s10
    %p150 = scmp.lt.s32.totalorder %s10, 5
    %p151 = pnand %p149, %p150
    %p152 = pneg %p151
    // Predicated region
    $region9: #{encoder_forward.7} parent=5 // pred_check
      _
    $region10: #{encoder_forward.7} parent=5 // pred_check_branch
      %154 = sbr.rel (%p151) target = $region12
    $region11: #{encoder_forward.7} parent=5 // pred_region
      %s155 = ssub.s32 %s10, 1
      // Predicated region
      $region13: #{encoder_forward.7} parent=11 // pred_check
        %p156 = pneg %p71
      $region14: #{encoder_forward.7} parent=11 // pred_check_branch
        %158 = sbr.rel (%p156) target = $region16
      $region15: #{encoder_forward.7} parent=11 // pred_region
        _
      $region16: #{encoder_forward.7} parent=11 // pred_fallthru
        _
      // Predicated region
      $region17: #{encoder_forward.7} parent=11 // pred_check
        %p159 = pneg %p92
      $region18: #{encoder_forward.7} parent=11 // pred_check_branch
        %161 = sbr.rel (%p159) target = $region20
      $region19: #{encoder_forward.7} parent=11 // pred_region
        _
      $region20: #{encoder_forward.7} parent=11 // pred_fallthru
        _
      // Predicated region
      $region21: #{encoder_forward.7} parent=11 // pred_check
        %p162 = pneg %p113
      $region22: #{encoder_forward.7} parent=11 // pred_check_branch
        %164 = sbr.rel (%p162) target = $region24
      $region23: #{encoder_forward.7} parent=11 // pred_region
        _
      $region24: #{encoder_forward.7} parent=11 // pred_fallthru
        _
    $region12: #{encoder_forward.7} parent=5 // pred_fallthru
      _
    %p165 = scmp.lt.s32.totalorder %s10, 4
    // Predicated region
    $region25: #{encoder_forward.7} parent=5 // pred_check
      %p166 = pneg %p165
    $region26: #{encoder_forward.7} parent=5 // pred_check_branch
      %168 = sbr.rel (%p166) target = $region28
    $region27: #{encoder_forward.7} parent=5 // pred_region
      // Predicated region
      $region29: #{encoder_forward.7} parent=27 // pred_check
        %p169 = pneg %p44
      $region30: #{encoder_forward.7} parent=27 // pred_check_branch
        %171 = sbr.rel (%p169) target = $region32
      $region31: #{encoder_forward.7} parent=27 // pred_region
        %s172 = smul.u32 8, %s18
        %p173 = scmp.lt.s32.totalorder %s17, 1
        %s174 = scalar_select %p173, %s17, 1
        %p175 = scmp.lt.s32.totalorder %s172, 15
        %s176 = scalar_select %p175, %s172, 15
        %s177 = smul.addr %s176, 2
        %s178 = smul.addr %s174, 32
        %s179 = sadd.s32 %s177, %s178
        %s180 = smul.addr %s179, 8
        %s181 = scalar_lea.vmem %s0, %s180
        %s182 = smul.u32 8, %s18
      $region32: #{encoder_forward.7} parent=27 // pred_fallthru
        _
    $region28: #{encoder_forward.7} parent=5 // pred_fallthru
      _
    %p183 = scmp.le.s32.totalorder 1, %s10
    %p184 = scmp.lt.s32.totalorder %s10, 5
    %p185 = pnand %p183, %p184
    %p186 = pneg %p185
    // Predicated region
    $region33: #{encoder_forward.7} parent=5 // pred_check
      _
    $region34: #{encoder_forward.7} parent=5 // pred_check_branch
      %188 = sbr.rel (%p185) target = $region36
    $region35: #{encoder_forward.7} parent=5 // pred_region
      %s189 = ssub.s32 %s10, 1
      %s190 = smul.u32 8, %s20
      %p191 = scmp.lt.s32.totalorder %s19, 1
      %s192 = scalar_select %p191, %s19, 1
      %p193 = scmp.lt.s32.totalorder %s190, 15
      %s194 = scalar_select %p193, %s190, 15
      %s195 = smul.addr %s194, 2
      %s196 = smul.addr %s192, 32
      %s197 = sadd.s32 %s195, %s196
      %s198 = smul.addr %s197, 8
      %s199 = scalar_lea.vmem %s0, %s198
      %p200 = pneg %p50
      %p201 = pneg %p47
      %p202 = pneg %p71
      %p203 = pneg %p68
      %p204 = pneg %p92
      %p205 = pneg %p89
      %p206 = pneg %p113
      %p207 = pneg %p110
      %p208 = pneg %p141
      %p209 = pneg %p138
      %s210 = smul.u32 4, %s20
      %p211 = scmp.lt.s32.totalorder %s19, 1
      %s212 = scalar_select %p211, %s19, 1
      %p213 = scmp.lt.s32.totalorder %s210, 7
      %s214 = scalar_select %p213, %s210, 7
      %s215 = smul.addr %s212, 8
      %s216 = sadd.s32 %s214, %s215
      %s217 = smul.addr %s216, 8
      %s218 = scalar_lea.vmem %s4, %s217
      %s219 = smul.u32 8, %s20
      %p220 = scmp.lt.s32.totalorder %s19, 1
      %s221 = scalar_select %p220, %s19, 1
      %p222 = scmp.lt.s32.totalorder %s219, 15
      %s223 = scalar_select %p222, %s219, 15
      %s224 = smul.addr %s223, 2
      %s225 = smul.addr %s221, 32
      %s226 = sadd.s32 %s224, %s225
      %s227 = smul.addr %s226, 8
      %s228 = scalar_lea.vmem %s0, %s227
      %s229 = smul.u32 8, %s20
      %s230 = smul.u32 4, %s20
      %p231 = scmp.lt.s32.totalorder %s19, 1
      %s232 = scalar_select %p231, %s19, 1
      %p233 = scmp.lt.s32.totalorder %s230, 7
      %s234 = scalar_select %p233, %s230, 7
      %s235 = smul.addr %s232, 8
      %s236 = sadd.s32 %s234, %s235
      %s237 = smul.addr %s236, 8
      %s238 = scalar_lea.vmem %s4, %s237
      %s239 = smul.u32 4, %s20
      %v240 = vld [vmem:[%s1] sm:$0x1]
      %v241 = vld [vmem:[%s2] sm:$0x1]
      %v242 = vld [vmem:[%s3] sm:$0xff]
      %v243 = vld [vmem:[%s228] sm:$0xff]
      %v244 = vld [vmem:[%s228 + $0x8] sm:$0xff]
      %s245 = scalar_lea.vmem %s228, 16
      %v246 = vld [vmem:[%s245] sm:$0xff]
      %v247 = vld [vmem:[%s245 + $0x8] sm:$0xff]
      %v249 = vperm.slane %v240, 0
      %v251 = vmul.f32 %v243, %v249
      %v252 = vmul.f32 %v244, %v249
      %v254 = vperm.slane %v241, 0
      %v256 = vadd.f32 %v251, %v254
      %v257 = vadd.f32 %v252, %v254
      %v258 = vmax.f32 %v256, 0.0
      %v259 = vmax.f32 %v257, 0.0
      %v260 = vmul.f32 %v246, %v249
      %v261 = vmul.f32 %v247, %v249
      %v262 = vadd.f32 %v260, %v254
      %v263 = vadd.f32 %v261, %v254
      %v264 = vmax.f32 %v262, 0.0
      %v265 = vmax.f32 %v263, 0.0
      %v266 = vadd.f32 %v258, %v264
      %v267 = vadd.f32 %v259, %v265
      %vm268 = vcmask 130048
      %v270 = vsel %vm268, %v242, 0
      %272 = vmatpush.msra.mxu0 0.0
      %273 = vmatpush.msra.mxu0 0.0
      %274 = vmatpush.msra.mxu0 0.0
      %275 = vmatpush.msra.mxu0 0.0
      %276 = vmatpush.msra.mxu0 0.0
      %277 = vmatpush.msra.mxu0 0.0
      %278 = vmatpush.msra.mxu0 0.0
      %279 = vmatpush.msra.mxu0 0.0
      %280 = vmatpush.msra.mxu0 0.0
      %281 = vmatpush.msra.mxu0 0.0
      %282 = vmatpush.msra.mxu0 0.0
      %283 = vmatpush.msra.mxu0 0.0
      %284 = vmatpush.msra.mxu0 0.0
      %285 = vmatpush.msra.mxu0 0.0
      %286 = vmatpush.msra.mxu0 %v267
      %287 = vmatpush.msra.mxu0 %v266
      %288 = vmatmul.f32.gmra.mxu0 %v270
      %v289 = vpop.f32.mrf.mxu0
      %v290 = vadd.f32 0.0, %v289
      %291 = vdwg.mxu0
      %292 = vst [vmem:[%s238] sm:$0xff] %v290
      %s293 = scalar_lea.vmem %s228, 32
      %v294 = vld [vmem:[%s293] sm:$0xff]
      %v295 = vld [vmem:[%s293 + $0x8] sm:$0xff]
      %s296 = scalar_lea.vmem %s228, 48
      %v297 = vld [vmem:[%s296] sm:$0xff]
      %v298 = vld [vmem:[%s296 + $0x8] sm:$0xff]
      %v299 = vmul.f32 %v294, %v249
      %v300 = vmul.f32 %v295, %v249
      %v301 = vadd.f32 %v299, %v254
      %v302 = vadd.f32 %v300, %v254
      %v303 = vmax.f32 %v301, 0.0
      %v304 = vmax.f32 %v302, 0.0
      %v305 = vmul.f32 %v297, %v249
      %v306 = vmul.f32 %v298, %v249
      %v307 = vadd.f32 %v305, %v254
      %v308 = vadd.f32 %v306, %v254
      %v309 = vmax.f32 %v307, 0.0
      %v310 = vmax.f32 %v308, 0.0
      %v311 = vadd.f32 %v303, %v309
      %v312 = vadd.f32 %v304, %v310
      %313 = vmatpush.msra.mxu0 0.0
      %314 = vmatpush.msra.mxu0 0.0
      %315 = vmatpush.msra.mxu0 0.0
      %316 = vmatpush.msra.mxu0 0.0
      %317 = vmatpush.msra.mxu0 0.0
      %318 = vmatpush.msra.mxu0 0.0
      %319 = vmatpush.msra.mxu0 0.0
      %320 = vmatpush.msra.mxu0 0.0
      %321 = vmatpush.msra.mxu0 0.0
      %322 = vmatpush.msra.mxu0 0.0
      %323 = vmatpush.msra.mxu0 0.0
      %324 = vmatpush.msra.mxu0 0.0
      %325 = vmatpush.msra.mxu0 0.0
      %326 = vmatpush.msra.mxu0 0.0
      %327 = vmatpush.msra.mxu0 %v312
      %328 = vmatpush.msra.mxu0 %v311
      %329 = vmatmul.f32.gmra.mxu0 %v270
      %v330 = vpop.f32.mrf.mxu0
      %v331 = vadd.f32 0.0, %v330
      %332 = vdwg.mxu0
      %s333 = scalar_lea.vmem %s238, 8
      %334 = vst [vmem:[%s333] sm:$0xff] %v331
      %s335 = scalar_lea.vmem %s228, 64
      %v336 = vld [vmem:[%s335] sm:$0xff]
      %v337 = vld [vmem:[%s335 + $0x8] sm:$0xff]
      %s338 = scalar_lea.vmem %s228, 80
      %v339 = vld [vmem:[%s338] sm:$0xff]
      %v340 = vld [vmem:[%s338 + $0x8] sm:$0xff]
      %v341 = vmul.f32 %v336, %v249
      %v342 = vmul.f32 %v337, %v249
      %v343 = vadd.f32 %v341, %v254
      %v344 = vadd.f32 %v342, %v254
      %v345 = vmax.f32 %v343, 0.0
      %v346 = vmax.f32 %v344, 0.0
      %v347 = vmul.f32 %v339, %v249
      %v348 = vmul.f32 %v340, %v249
      %v349 = vadd.f32 %v347, %v254
      %v350 = vadd.f32 %v348, %v254
      %v351 = vmax.f32 %v349, 0.0
      %v352 = vmax.f32 %v350, 0.0
      %v353 = vadd.f32 %v345, %v351
      %v354 = vadd.f32 %v346, %v352
      %355 = vmatpush.msra.mxu0 0.0
      %356 = vmatpush.msra.mxu0 0.0
      %357 = vmatpush.msra.mxu0 0.0
      %358 = vmatpush.msra.mxu0 0.0
      %359 = vmatpush.msra.mxu0 0.0
      %360 = vmatpush.msra.mxu0 0.0
      %361 = vmatpush.msra.mxu0 0.0
      %362 = vmatpush.msra.mxu0 0.0
      %363 = vmatpush.msra.mxu0 0.0
      %364 = vmatpush.msra.mxu0 0.0
      %365 = vmatpush.msra.mxu0 0.0
      %366 = vmatpush.msra.mxu0 0.0
      %367 = vmatpush.msra.mxu0 0.0
      %368 = vmatpush.msra.mxu0 0.0
      %369 = vmatpush.msra.mxu0 %v354
      %370 = vmatpush.msra.mxu0 %v353
      %371 = vmatmul.f32.gmra.mxu0 %v270
      %v372 = vpop.f32.mrf.mxu0
      %v373 = vadd.f32 0.0, %v372
      %374 = vdwg.mxu0
      %s375 = scalar_lea.vmem %s238, 16
      %376 = vst [vmem:[%s375] sm:$0xff] %v373
      %s377 = scalar_lea.vmem %s228, 96
      %v378 = vld [vmem:[%s377] sm:$0xff]
      %v379 = vld [vmem:[%s377 + $0x8] sm:$0xff]
      %s380 = scalar_lea.vmem %s228, 112
      %v381 = vld [vmem:[%s380] sm:$0xff]
      %v382 = vld [vmem:[%s380 + $0x8] sm:$0xff]
      %v383 = vmul.f32 %v378, %v249
      %v384 = vmul.f32 %v379, %v249
      %v385 = vadd.f32 %v383, %v254
      %v386 = vadd.f32 %v384, %v254
      %v387 = vmax.f32 %v385, 0.0
      %v388 = vmax.f32 %v386, 0.0
      %v389 = vmul.f32 %v381, %v249
      %v390 = vmul.f32 %v382, %v249
      %v391 = vadd.f32 %v389, %v254
      %v392 = vadd.f32 %v390, %v254
      %v393 = vmax.f32 %v391, 0.0
      %v394 = vmax.f32 %v392, 0.0
      %v395 = vadd.f32 %v387, %v393
      %v396 = vadd.f32 %v388, %v394
      %397 = vmatpush.msra.mxu0 0.0
      %398 = vmatpush.msra.mxu0 0.0
      %399 = vmatpush.msra.mxu0 0.0
      %400 = vmatpush.msra.mxu0 0.0
      %401 = vmatpush.msra.mxu0 0.0
      %402 = vmatpush.msra.mxu0 0.0
      %403 = vmatpush.msra.mxu0 0.0
      %404 = vmatpush.msra.mxu0 0.0
      %405 = vmatpush.msra.mxu0 0.0
      %406 = vmatpush.msra.mxu0 0.0
      %407 = vmatpush.msra.mxu0 0.0
      %408 = vmatpush.msra.mxu0 0.0
      %409 = vmatpush.msra.mxu0 0.0
      %410 = vmatpush.msra.mxu0 0.0
      %411 = vmatpush.msra.mxu0 %v396
      %412 = vmatpush.msra.mxu0 %v395
      %413 = vmatmul.f32.gmra.mxu0 %v270
      %v414 = vpop.f32.mrf.mxu0
      %v415 = vadd.f32 0.0, %v414
      %416 = vdwg.mxu0
      %s417 = scalar_lea.vmem %s238, 24
      %418 = vst [vmem:[%s417] sm:$0xff] %v415
      %s419 = smul.u32 4, %s20
      %p420 = scmp.lt.s32.totalorder %s19, 1
      %s421 = scalar_select %p420, %s19, 1
      %p422 = scmp.lt.s32.totalorder %s419, 7
      %s423 = scalar_select %p422, %s419, 7
      %s424 = smul.addr %s421, 8
      %s425 = sadd.s32 %s423, %s424
      %s426 = smul.addr %s425, 8
      %s427 = scalar_lea.vmem %s4, %s426
      // Predicated region
      $region37: #{encoder_forward.7} parent=35 // pred_check
        %p428 = pneg %p138
      $region38: #{encoder_forward.7} parent=35 // pred_check_branch
        %430 = sbr.rel (%p428) target = $region40
      $region39: #{encoder_forward.7} parent=35 // pred_region
        %s431 = smul.u32 4, %s20
      $region40: #{encoder_forward.7} parent=35 // pred_fallthru
        _
    $region36: #{encoder_forward.7} parent=5 // pred_fallthru
      _
    %p432 = scmp.le.s32.totalorder 2, %s10
    // Predicated region
    $region41: #{encoder_forward.7} parent=5 // pred_check
      %p433 = pneg %p432
    $region42: #{encoder_forward.7} parent=5 // pred_check_branch
      %435 = sbr.rel (%p433) target = $region44
    $region43: #{encoder_forward.7} parent=5 // pred_region
      %s436 = ssub.s32 %s10, 2
      // Predicated region
      $region45: #{encoder_forward.7} parent=43 // pred_check
        %p437 = pneg %p144
      $region46: #{encoder_forward.7} parent=43 // pred_check_branch
        %439 = sbr.rel (%p437) target = $region48
      $region47: #{encoder_forward.7} parent=43 // pred_region
        %s440 = smul.u32 4, %s22
        %p441 = scmp.lt.s32.totalorder %s21, 1
        %s442 = scalar_select %p441, %s21, 1
        %p443 = scmp.lt.s32.totalorder %s440, 7
        %s444 = scalar_select %p443, %s440, 7
        %s445 = smul.addr %s442, 8
        %s446 = sadd.s32 %s444, %s445
        %s447 = smul.addr %s446, 8
        %s448 = scalar_lea.vmem %s4, %s447
      $region48: #{encoder_forward.7} parent=43 // pred_fallthru
        _
    $region44: #{encoder_forward.7} parent=5 // pred_fallthru
      _
  $region6: #{encoder_forward.7} parent=0 // loop_footer
    %s14 = sadd.s32 1, %s10
  $region7: #{encoder_forward.7} parent=0 // loop_footer_branch
    %9 = sbr.rel target = $region3
  $region8: #{encoder_forward.7} parent=0 // loop_exit
    _

// kernel: encoder_forward.6
$region0: #{encoder_forward.6}
  #allocation0 [shape = 'u32[]', space=smem, size = 0x4, offset = 0x4, fixed_abs, tag = 'smem constant byte address 0x4 - core index']
  #allocation1 [shape = 'u32[72,128]{1,0:T(1,128)}', space=vmem, size = 0x9000, scoped, tag = 'internal scratch']
  %s0 = inlined_call_operand.vmem [shape: bf16[512,36], index: 0, kind: input, shape index: {}]
  %s1 = inlined_call_operand.vmem [shape: bf16[36,128], index: 1, kind: input, shape index: {}]
  %s2 = inlined_call_operand.vmem [shape: f32[1,128], index: 2, kind: input, shape index: {}]
  %s3 = inlined_call_operand.vmem [shape: f32[512,128], index: 3, kind: output, shape index: {0}]
  %s4 = inlined_call_operand.vmem [shape: f32[16,128], index: 4, kind: output, shape index: {1}]
  %5 = xla_tuple %s3, %s4
  %s6 = sld [smem:[#allocation0]]
  $region53: #{encoder_forward.6} parent=0
    _
  %s8 = ssub.s32 1, %s6
  %s9 = scalar_select 0, %s8, %s6
  loop: start=0, step=1, limit=4
  $region2: #{encoder_forward.6} parent=0 // loop_pre_header
    _
  $region3: #{encoder_forward.6} parent=0 // loop_header
    %s11 = sphi 0, %s15
    %p12 = scmp.ge.s32.totalorder %s11, 4
    %s21 = sphi 0, %s23
    %s24 = sphi 0, %s21
    %s25 = sphi 0, %s24
    %s41 = sphi 0, %s25
    %s45 = sphi 0, %s45
    %s47 = sphi 0, %s45
    %s48 = sphi 0, %s47
    %s62 = sphi 0, %s48
    %s66 = sphi 0, %s66
    %s68 = sphi 0, %s66
    %s69 = sphi 0, %s68
    %s83 = sphi 0, %s69
    %s89 = sphi 0, %s91
    %s92 = sphi 0, %s89
    %s93 = sphi 0, %s92
    %s109 = sphi 0, %s93
    %s115 = sphi 0, %s117
    %s118 = sphi 0, %s115
    %s119 = sphi 0, %s118
    %s135 = sphi 0, %s119
  $region4: #{encoder_forward.6} parent=0 // loop_header_branch
    %14 = sbr.rel (%p12) target = $region8
  $region5: #{encoder_forward.6} parent=0 // loop_body
    %s16 = ssub.s32 %s11, 1
    %s17 = ssub.s32 %s11, 2
    %s18 = sadd.s32 %s11, 1
    %s19 = ssub.s32 %s11, %s18
    %p20 = scmp.eq.s32.totalorder %s19, 0
    %s22 = sadd.s32 %s21, 1
    %s23 = scalar_select %p20, %s21, %s22
    %p26 = pneg %p20
    %p27 = scmp.eq.s32.totalorder %s11, 1
    %p28 = por %p26, %p27
    %p29 = scmp.ne.s32.totalorder %s21, %s24
    %p30 = scmp.eq.s32.totalorder %s11, 0
    %p31 = por %p29, %p30
    %p32 = scmp.ne.s32.totalorder %s21, %s24
    %p33 = scmp.eq.s32.totalorder %s16, 1
    %p34 = por %p32, %p33
    %p35 = scmp.ne.s32.totalorder %s24, %s25
    %p36 = scmp.eq.s32.totalorder %s16, 0
    %p37 = por %p35, %p36
    %p38 = scmp.ne.s32.totalorder %s24, %s25
    %p39 = scmp.eq.s32.totalorder %s17, 1
    %p40 = por %p38, %p39
    %p42 = scmp.ne.s32.totalorder %s25, %s41
    %p43 = scmp.eq.s32.totalorder %s17, 0
    %p44 = por %p42, %p43
    %s46 = sadd.s32 %s45, 1
    %p49 = scmp.eq.s32.totalorder %s11, 1
    %p50 = scmp.ne.s32.totalorder %s45, %s47
    %p51 = scmp.eq.s32.totalorder %s11, 0
    %p52 = por %p50, %p51
    %p53 = scmp.ne.s32.totalorder %s45, %s47
    %p54 = scmp.eq.s32.totalorder %s16, 1
    %p55 = por %p53, %p54
    %p56 = scmp.ne.s32.totalorder %s47, %s48
    %p57 = scmp.eq.s32.totalorder %s16, 0
    %p58 = por %p56, %p57
    %p59 = scmp.ne.s32.totalorder %s47, %s48
    %p60 = scmp.eq.s32.totalorder %s17, 1
    %p61 = por %p59, %p60
    %p63 = scmp.ne.s32.totalorder %s48, %s62
    %p64 = scmp.eq.s32.totalorder %s17, 0
    %p65 = por %p63, %p64
    %s67 = sadd.s32 %s66, 1
    %p70 = scmp.eq.s32.totalorder %s11, 1
    %p71 = scmp.ne.s32.totalorder %s66, %s68
    %p72 = scmp.eq.s32.totalorder %s11, 0
    %p73 = por %p71, %p72
    %p74 = scmp.ne.s32.totalorder %s66, %s68
    %p75 = scmp.eq.s32.totalorder %s16, 1
    %p76 = por %p74, %p75
    %p77 = scmp.ne.s32.totalorder %s68, %s69
    %p78 = scmp.eq.s32.totalorder %s16, 0
    %p79 = por %p77, %p78
    %p80 = scmp.ne.s32.totalorder %s68, %s69
    %p81 = scmp.eq.s32.totalorder %s17, 1
    %p82 = por %p80, %p81
    %p84 = scmp.ne.s32.totalorder %s69, %s83
    %p85 = scmp.eq.s32.totalorder %s17, 0
    %p86 = por %p84, %p85
    %s87 = ssub.s32 %s11, %s18
    %p88 = scmp.eq.s32.totalorder %s87, 0
    %s90 = sadd.s32 %s89, 1
    %s91 = scalar_select %p88, %s89, %s90
    %p94 = pneg %p88
    %p95 = scmp.eq.s32.totalorder %s11, 1
    %p96 = por %p94, %p95
    %p97 = scmp.ne.s32.totalorder %s89, %s92
    %p98 = scmp.eq.s32.totalorder %s11, 0
    %p99 = por %p97, %p98
    %p100 = scmp.ne.s32.totalorder %s89, %s92
    %p101 = scmp.eq.s32.totalorder %s16, 1
    %p102 = por %p100, %p101
    %p103 = scmp.ne.s32.totalorder %s92, %s93
    %p104 = scmp.eq.s32.totalorder %s16, 0
    %p105 = por %p103, %p104
    %p106 = scmp.ne.s32.totalorder %s92, %s93
    %p107 = scmp.eq.s32.totalorder %s17, 1
    %p108 = por %p106, %p107
    %p110 = scmp.ne.s32.totalorder %s93, %s109
    %p111 = scmp.eq.s32.totalorder %s17, 0
    %p112 = por %p110, %p111
    %s113 = ssub.s32 %s11, %s18
    %p114 = scmp.eq.s32.totalorder %s113, 0
    %s116 = sadd.s32 %s115, 1
    %s117 = scalar_select %p114, %s115, %s116
    %p120 = pneg %p114
    %p121 = scmp.eq.s32.totalorder %s11, 1
    %p122 = por %p120, %p121
    %p123 = scmp.ne.s32.totalorder %s115, %s118
    %p124 = scmp.eq.s32.totalorder %s11, 0
    %p125 = por %p123, %p124
    %p126 = scmp.ne.s32.totalorder %s115, %s118
    %p127 = scmp.eq.s32.totalorder %s16, 1
    %p128 = por %p126, %p127
    %p129 = scmp.ne.s32.totalorder %s118, %s119
    %p130 = scmp.eq.s32.totalorder %s16, 0
    %p131 = por %p129, %p130
    %p132 = scmp.ne.s32.totalorder %s118, %s119
    %p133 = scmp.eq.s32.totalorder %s17, 1
    %p134 = por %p132, %p133
    %p136 = scmp.ne.s32.totalorder %s119, %s135
    %p137 = scmp.eq.s32.totalorder %s17, 0
    %p138 = por %p136, %p137
    %p139 = scmp.le.s32.totalorder 1, %s11
    %p140 = scmp.lt.s32.totalorder %s11, 3
    %p141 = pnand %p139, %p140
    %p142 = pneg %p141
    // Predicated region
    $region9: #{encoder_forward.6} parent=5 // pred_check
      _
    $region10: #{encoder_forward.6} parent=5 // pred_check_branch
      %144 = sbr.rel (%p141) target = $region12
    $region11: #{encoder_forward.6} parent=5 // pred_region
      %s145 = ssub.s32 %s11, 1
      // Predicated region
      $region13: #{encoder_forward.6} parent=11 // pred_check
        %p146 = pneg %p58
      $region14: #{encoder_forward.6} parent=11 // pred_check_branch
        %148 = sbr.rel (%p146) target = $region16
      $region15: #{encoder_forward.6} parent=11 // pred_region
        _
      $region16: #{encoder_forward.6} parent=11 // pred_fallthru
        _
      // Predicated region
      $region17: #{encoder_forward.6} parent=11 // pred_check
        %p149 = pneg %p79
      $region18: #{encoder_forward.6} parent=11 // pred_check_branch
        %151 = sbr.rel (%p149) target = $region20
      $region19: #{encoder_forward.6} parent=11 // pred_region
        _
      $region20: #{encoder_forward.6} parent=11 // pred_fallthru
        _
    $region12: #{encoder_forward.6} parent=5 // pred_fallthru
      _
    %p152 = scmp.lt.s32.totalorder %s11, 2
    // Predicated region
    $region21: #{encoder_forward.6} parent=5 // pred_check
      %p153 = pneg %p152
    $region22: #{encoder_forward.6} parent=5 // pred_check_branch
      %155 = sbr.rel (%p153) target = $region24
    $region23: #{encoder_forward.6} parent=5 // pred_region
      // Predicated region
      $region25: #{encoder_forward.6} parent=23 // pred_check
        %p156 = pneg %p31
      $region26: #{encoder_forward.6} parent=23 // pred_check_branch
        %158 = sbr.rel (%p156) target = $region28
      $region27: #{encoder_forward.6} parent=23 // pred_region
        %s159 = smul.u32 32, %s11
        %p160 = scmp.lt.s32.totalorder %s159, 63
        %s161 = scalar_select %p160, %s159, 63
        %s162 = smul.addr %s161, 4
        %s163 = scalar_lea.vmem %s0, %s162
        %s164 = smul.u32 32, %s11
      $region28: #{encoder_forward.6} parent=23 // pred_fallthru
        _
    $region24: #{encoder_forward.6} parent=5 // pred_fallthru
      _
    %p165 = scmp.le.s32.totalorder 1, %s11
    %p166 = scmp.lt.s32.totalorder %s11, 3
    %p167 = pnand %p165, %p166
    %p168 = pneg %p167
    // Predicated region
    $region29: #{encoder_forward.6} parent=5 // pred_check
      _
    $region30: #{encoder_forward.6} parent=5 // pred_check_branch
      %170 = sbr.rel (%p167) target = $region32
    $region31: #{encoder_forward.6} parent=5 // pred_region
      %s171 = ssub.s32 %s11, 1
      %s172 = smul.u32 32, %s16
      %p173 = scmp.lt.s32.totalorder %s172, 63
      %s174 = scalar_select %p173, %s172, 63
      %s175 = smul.addr %s174, 4
      %s176 = scalar_lea.vmem %s0, %s175
      %p177 = pneg %p37
      %p178 = pneg %p34
      %p179 = pneg %p58
      %p180 = pneg %p55
      %p181 = pneg %p79
      %p182 = pneg %p76
      %p183 = pneg %p105
      %p184 = pneg %p102
      %s185 = smul.u32 32, %s16
      %p186 = scmp.lt.s32.totalorder %s185, 63
      %s187 = scalar_select %p186, %s185, 63
      %s188 = smul.addr %s187, 8
      %s189 = scalar_lea.vmem %s3, %s188
      %p190 = pneg %p131
      %p191 = pneg %p128
      %p192 = scmp.lt.s32.totalorder %s16, 1
      %s193 = scalar_select %p192, %s16, 1
      %s194 = smul.addr %s193, 8
      %s195 = scalar_lea.vmem %s4, %s194
      %s196 = smul.u32 32, %s16
      %p197 = scmp.lt.s32.totalorder %s196, 63
      %s198 = scalar_select %p197, %s196, 63
      %s199 = smul.addr %s198, 4
      %s200 = scalar_lea.vmem %s0, %s199
      %s201 = smul.u32 32, %s16
      %s202 = smul.u32 32, %s16
      %p203 = scmp.lt.s32.totalorder %s202, 63
      %s204 = scalar_select %p203, %s202, 63
      %s205 = smul.addr %s204, 8
      %s206 = scalar_lea.vmem %s3, %s205
      %s207 = smul.u32 32, %s16
      %p208 = scmp.lt.s32.totalorder %s16, 1
      %s209 = scalar_select %p208, %s16, 1
      %s210 = smul.addr %s209, 8
      %s211 = scalar_lea.vmem %s4, %s210
      %v213 = vld [vmem:[%s200] sm:$0xf]
      %v214 = vld [vmem:[%s200 + $0x4] sm:$0xf]
      %v215 = vld [vmem:[%s200 + $0x8] sm:$0xf]
      %v216 = vld [vmem:[%s200 + $0xc] sm:$0xf]
      %v217 = vld [vmem:[%s200 + $0x10] sm:$0xf]
      %v218 = vld [vmem:[%s200 + $0x14] sm:$0xf]
      %v219 = vld [vmem:[%s200 + $0x18] sm:$0xf]
      %v220 = vld [vmem:[%s200 + $0x1c] sm:$0xf]
      %v221 = vld [vmem:[%s200 + $0x20] sm:$0xf]
      %v222 = vld [vmem:[%s200 + $0x24] sm:$0xf]
      %v223 = vld [vmem:[%s200 + $0x28] sm:$0xf]
      %v224 = vld [vmem:[%s200 + $0x2c] sm:$0xf]
      %v225 = vld [vmem:[%s200 + $0x30] sm:$0xf]
      %v226 = vld [vmem:[%s200 + $0x34] sm:$0xf]
      %v227 = vld [vmem:[%s200 + $0x38] sm:$0xf]
      %v228 = vld [vmem:[%s200 + $0x3c] sm:$0xf]
      %v229 = vld [vmem:[%s200 + $0x40] sm:$0xf]
      %v230 = vld [vmem:[%s200 + $0x44] sm:$0xf]
      %v231 = vld [vmem:[%s200 + $0x48] sm:$0xf]
      %v232 = vld [vmem:[%s200 + $0x4c] sm:$0xf]
      %v233 = vld [vmem:[%s200 + $0x50] sm:$0xf]
      %v234 = vld [vmem:[%s200 + $0x54] sm:$0xf]
      %v235 = vld [vmem:[%s200 + $0x58] sm:$0xf]
      %v236 = vld [vmem:[%s200 + $0x5c] sm:$0xf]
      %v237 = vld [vmem:[%s200 + $0x60] sm:$0xf]
      %v238 = vld [vmem:[%s200 + $0x64] sm:$0xf]
      %v239 = vld [vmem:[%s200 + $0x68] sm:$0xf]
      %v240 = vld [vmem:[%s200 + $0x6c] sm:$0xf]
      %v241 = vld [vmem:[%s200 + $0x70] sm:$0xf]
      %v242 = vld [vmem:[%s200 + $0x74] sm:$0xf]
      %v243 = vld [vmem:[%s200 + $0x78] sm:$0xf]
      %v244 = vld [vmem:[%s200 + $0x7c] sm:$0xf]
      %v245 = vld [vmem:[%s1] sm:$0xf]
      %v246 = vld [vmem:[%s1 + $0x4] sm:$0xf]
      %v247 = vld [vmem:[%s1 + $0x8] sm:$0xf]
      %v248 = vld [vmem:[%s1 + $0xc] sm:$0xf]
      %v249 = vld [vmem:[%s1 + $0x10] sm:$0x3]
      %v250 = vld [vmem:[%s2] sm:$0x1]
      %v252 = vperm.slane %v250, 0
      %v286 = vunpack.c.l.b16 %v213
      %v287 = vunpack.c.l.b16 %v214
      %v288 = vunpack.c.l.b16 %v215
      %v289 = vunpack.c.l.b16 %v216
      %v290 = vunpack.c.l.b16 %v217
      %v291 = vunpack.c.l.b16 %v218
      %v292 = vunpack.c.l.b16 %v219
      %v293 = vunpack.c.l.b16 %v220
      %v294 = vunpack.c.l.b16 %v221
      %v295 = vunpack.c.l.b16 %v222
      %v296 = vunpack.c.l.b16 %v223
      %v297 = vunpack.c.l.b16 %v224
      %v298 = vunpack.c.l.b16 %v225
      %v299 = vunpack.c.l.b16 %v226
      %v300 = vunpack.c.l.b16 %v227
      %v301 = vunpack.c.l.b16 %v228
      %v302 = vunpack.c.l.b16 %v229
      %v303 = vunpack.c.l.b16 %v230
      %v304 = vunpack.c.l.b16 %v231
      %v305 = vunpack.c.l.b16 %v232
      %v306 = vunpack.c.l.b16 %v233
      %v307 = vunpack.c.l.b16 %v234
      %v308 = vunpack.c.l.b16 %v235
      %v309 = vunpack.c.l.b16 %v236
      %v310 = vunpack.c.l.b16 %v237
      %v311 = vunpack.c.l.b16 %v238
      %v312 = vunpack.c.l.b16 %v239
      %v313 = vunpack.c.l.b16 %v240
      %v314 = vunpack.c.l.b16 %v241
      %v315 = vunpack.c.l.b16 %v242
      %v316 = vunpack.c.l.b16 %v243
      %v317 = vunpack.c.l.b16 %v244
      %v318 = vpack.c.b16 %v287, %v286
      %v319 = vpack.c.b16 %v289, %v288
      %v320 = vpack.c.b16 %v291, %v290
      %v321 = vpack.c.b16 %v293, %v292
      %v322 = vpack.c.b16 %v295, %v294
      %v323 = vpack.c.b16 %v297, %v296
      %v324 = vpack.c.b16 %v299, %v298
      %v325 = vpack.c.b16 %v301, %v300
      %v326 = vpack.c.b16 %v303, %v302
      %v327 = vpack.c.b16 %v305, %v304
      %v328 = vpack.c.b16 %v307, %v306
      %v329 = vpack.c.b16 %v309, %v308
      %v330 = vpack.c.b16 %v311, %v310
      %v331 = vpack.c.b16 %v313, %v312
      %v332 = vpack.c.b16 %v315, %v314
      %v333 = vpack.c.b16 %v317, %v316
      %v339 = vunpack.c.l.b16 %v245
      %v340 = vunpack.c.l.b16 %v246
      %v341 = vunpack.c.l.b16 %v247
      %v342 = vunpack.c.l.b16 %v248
      %v343 = vunpack.c.l.b16 %v249
      %v344 = vpack.c.b16 %v340, %v339
      %v345 = vpack.c.b16 %v342, %v341
      %v346 = vpack.c.b16 %v343, %v343
      %vm349 = vcmask 293888
      %v351 = vsel %vm349, %v318, 0
      %v354 = vsel %vm349, %v319, 0
      %v357 = vsel %vm349, %v320, 0
      %v360 = vsel %vm349, %v321, 0
      %v363 = vsel %vm349, %v322, 0
      %v366 = vsel %vm349, %v323, 0
      %v369 = vsel %vm349, %v324, 0
      %v372 = vsel %vm349, %v325, 0
      %v375 = vsel %vm349, %v326, 0
      %v378 = vsel %vm349, %v327, 0
      %v381 = vsel %vm349, %v328, 0
      %v384 = vsel %vm349, %v329, 0
      %v387 = vsel %vm349, %v330, 0
      %v390 = vsel %vm349, %v331, 0
      %v393 = vsel %vm349, %v332, 0
      %v396 = vsel %vm349, %v333, 0
      %vm398 = vcmask 1041408
      %v400 = vsel %vm398, %v346, 0
      %402 = vmatpush.bf16.msra.mxu0 0
      %403 = vmatpush.bf16.msra.mxu0 0
      %404 = vmatpush.bf16.msra.mxu0 0
      %405 = vmatpush.bf16.msra.mxu0 0
      %406 = vmatpush.bf16.msra.mxu0 0
      %407 = vmatpush.bf16.msra.mxu0 %v400
      %408 = vmatpush.bf16.msra.mxu0 %v345
      %409 = vmatpush.bf16.msra.mxu0 %v344
      %410 = vmatmul.bf16.gmra.mxu0 %v351
      %v411 = vpop.f32.mrf.mxu0
      %v412 = vadd.f32 %v252, %v411
      %v413 = vpop.f32.mrf.mxu0
      %v414 = vadd.f32 %v252, %v413
      %415 = vmatmul.bf16.gmra.mxu0 %v354
      %v416 = vpop.f32.mrf.mxu0
      %v417 = vadd.f32 %v252, %v416
      %v418 = vpop.f32.mrf.mxu0
      %v419 = vadd.f32 %v252, %v418
      %420 = vmatmul.bf16.gmra.mxu0 %v357
      %v421 = vpop.f32.mrf.mxu0
      %v422 = vadd.f32 %v252, %v421
      %v423 = vpop.f32.mrf.mxu0
      %v424 = vadd.f32 %v252, %v423
      %425 = vmatmul.bf16.gmra.mxu0 %v360
      %v426 = vpop.f32.mrf.mxu0
      %v427 = vadd.f32 %v252, %v426
      %v428 = vpop.f32.mrf.mxu0
      %v429 = vadd.f32 %v252, %v428
      %430 = vmatmul.bf16.gmra.mxu0 %v363
      %v431 = vpop.f32.mrf.mxu0
      %v432 = vadd.f32 %v252, %v431
      %v433 = vpop.f32.mrf.mxu0
      %v434 = vadd.f32 %v252, %v433
      %435 = vmatmul.bf16.gmra.mxu0 %v366
      %v436 = vpop.f32.mrf.mxu0
      %v437 = vadd.f32 %v252, %v436
      %v438 = vpop.f32.mrf.mxu0
      %v439 = vadd.f32 %v252, %v438
      %440 = vmatmul.bf16.gmra.mxu0 %v369
      %v441 = vpop.f32.mrf.mxu0
      %v442 = vadd.f32 %v252, %v441
      %v443 = vpop.f32.mrf.mxu0
      %v444 = vadd.f32 %v252, %v443
      %445 = vmatmul.bf16.gmra.mxu0 %v372
      %v446 = vpop.f32.mrf.mxu0
      %v447 = vadd.f32 %v252, %v446
      %v448 = vpop.f32.mrf.mxu0
      %v449 = vadd.f32 %v252, %v448
      %450 = vmatmul.bf16.gmra.mxu0 %v375
      %v451 = vpop.f32.mrf.mxu0
      %v452 = vadd.f32 %v252, %v451
      %v453 = vpop.f32.mrf.mxu0
      %v454 = vadd.f32 %v252, %v453
      %455 = vmatmul.bf16.gmra.mxu0 %v378
      %v456 = vpop.f32.mrf.mxu0
      %v457 = vadd.f32 %v252, %v456
      %v458 = vpop.f32.mrf.mxu0
      %v459 = vadd.f32 %v252, %v458
      %460 = vmatmul.bf16.gmra.mxu0 %v381
      %v461 = vpop.f32.mrf.mxu0
      %v462 = vadd.f32 %v252, %v461
      %v463 = vpop.f32.mrf.mxu0
      %v464 = vadd.f32 %v252, %v463
      %465 = vmatmul.bf16.gmra.mxu0 %v384
      %v466 = vpop.f32.mrf.mxu0
      %v467 = vadd.f32 %v252, %v466
      %v468 = vpop.f32.mrf.mxu0
      %v469 = vadd.f32 %v252, %v468
      %470 = vmatmul.bf16.gmra.mxu0 %v387
      %v471 = vpop.f32.mrf.mxu0
      %v472 = vadd.f32 %v252, %v471
      %v473 = vpop.f32.mrf.mxu0
      %v474 = vadd.f32 %v252, %v473
      %475 = vmatmul.bf16.gmra.mxu0 %v390
      %v476 = vpop.f32.mrf.mxu0
      %v477 = vadd.f32 %v252, %v476
      %v478 = vpop.f32.mrf.mxu0
      %v479 = vadd.f32 %v252, %v478
      %480 = vmatmul.bf16.gmra.mxu0 %v393
      %v481 = vpop.f32.mrf.mxu0
      %v482 = vadd.f32 %v252, %v481
      %v483 = vpop.f32.mrf.mxu0
      %v484 = vadd.f32 %v252, %v483
      %485 = vmatmul.bf16.gmra.mxu0 %v396
      %v486 = vpop.f32.mrf.mxu0
      %v487 = vadd.f32 %v252, %v486
      %v488 = vpop.f32.mrf.mxu0
      %v489 = vadd.f32 %v252, %v488
      %490 = vdwg.mxu0
      %491 = vst [vmem:[%s206] sm:$0xff] %v412
      %492 = vst [vmem:[%s206 + $0x8] sm:$0xff] %v414
      %493 = vst [vmem:[%s206 + $0x10] sm:$0xff] %v417
      %494 = vst [vmem:[%s206 + $0x18] sm:$0xff] %v419
      %495 = vst [vmem:[%s206 + $0x20] sm:$0xff] %v422
      %496 = vst [vmem:[%s206 + $0x28] sm:$0xff] %v424
      %497 = vst [vmem:[%s206 + $0x30] sm:$0xff] %v427
      %498 = vst [vmem:[%s206 + $0x38] sm:$0xff] %v429
      %499 = vst [vmem:[%s206 + $0x40] sm:$0xff] %v432
      %500 = vst [vmem:[%s206 + $0x48] sm:$0xff] %v434
      %501 = vst [vmem:[%s206 + $0x50] sm:$0xff] %v437
      %502 = vst [vmem:[%s206 + $0x58] sm:$0xff] %v439
      %503 = vst [vmem:[%s206 + $0x60] sm:$0xff] %v442
      %504 = vst [vmem:[%s206 + $0x68] sm:$0xff] %v444
      %505 = vst [vmem:[%s206 + $0x70] sm:$0xff] %v447
      %506 = vst [vmem:[%s206 + $0x78] sm:$0xff] %v449
      %507 = vst [vmem:[%s206 + $0x80] sm:$0xff] %v452
      %508 = vst [vmem:[%s206 + $0x88] sm:$0xff] %v454
      %509 = vst [vmem:[%s206 + $0x90] sm:$0xff] %v457
      %510 = vst [vmem:[%s206 + $0x98] sm:$0xff] %v459
      %511 = vst [vmem:[%s206 + $0xa0] sm:$0xff] %v462
      %512 = vst [vmem:[%s206 + $0xa8] sm:$0xff] %v464
      %513 = vst [vmem:[%s206 + $0xb0] sm:$0xff] %v467
      %514 = vst [vmem:[%s206 + $0xb8] sm:$0xff] %v469
      %515 = vst [vmem:[%s206 + $0xc0] sm:$0xff] %v472
      %516 = vst [vmem:[%s206 + $0xc8] sm:$0xff] %v474
      %517 = vst [vmem:[%s206 + $0xd0] sm:$0xff] %v477
      %518 = vst [vmem:[%s206 + $0xd8] sm:$0xff] %v479
      %519 = vst [vmem:[%s206 + $0xe0] sm:$0xff] %v482
      %520 = vst [vmem:[%s206 + $0xe8] sm:$0xff] %v484
      %521 = vst [vmem:[%s206 + $0xf0] sm:$0xff] %v487
      %522 = vst [vmem:[%s206 + $0xf8] sm:$0xff] %v489
      %523 = vst [vmem:[%s211] sm:$0xff] 0.0
      %v524 = vadd.f32 %v412, %v414
      %v525 = vadd.f32 %v524, %v417
      %v526 = vadd.f32 %v525, %v419
      %v527 = vadd.f32 %v526, %v422
      %v528 = vadd.f32 %v527, %v424
      %v529 = vadd.f32 %v528, %v427
      %v530 = vadd.f32 %v529, %v429
      %v531 = vadd.f32 %v530, %v432
      %v532 = vadd.f32 %v531, %v434
      %v533 = vadd.f32 %v532, %v437
      %v534 = vadd.f32 %v533, %v439
      %v535 = vadd.f32 %v534, %v442
      %v536 = vadd.f32 %v535, %v444
      %v537 = vadd.f32 %v536, %v447
      %v538 = vadd.f32 %v537, %v449
      %v539 = vadd.f32 %v538, %v452
      %v540 = vadd.f32 %v539, %v454
      %v541 = vadd.f32 %v540, %v457
      %v542 = vadd.f32 %v541, %v459
      %v543 = vadd.f32 %v542, %v462
      %v544 = vadd.f32 %v543, %v464
      %v545 = vadd.f32 %v544, %v467
      %v546 = vadd.f32 %v545, %v469
      %v547 = vadd.f32 %v546, %v472
      %v548 = vadd.f32 %v547, %v474
      %v549 = vadd.f32 %v548, %v477
      %v550 = vadd.f32 %v549, %v479
      %v551 = vadd.f32 %v550, %v482
      %v552 = vadd.f32 %v551, %v484
      %v553 = vadd.f32 %v552, %v487
      %v554 = vadd.f32 %v553, %v489
      %v555 = vrot.slane %v554, 4
      %v556 = vadd.f32 %v554, %v555
      %v557 = vrot.slane %v556, 2
      %v558 = vadd.f32 %v556, %v557
      %v559 = vrot.slane %v558, 1
      %v560 = vadd.f32 %v558, %v559
      %561 = vst [vmem:[%s211] sm:$0x1] %v560
      %v562 = vmul.f32 %v412, %v412
      %v563 = vmul.f32 %v414, %v414
      %v564 = vmul.f32 %v417, %v417
      %v565 = vmul.f32 %v419, %v419
      %v566 = vmul.f32 %v422, %v422
      %v567 = vmul.f32 %v424, %v424
      %v568 = vmul.f32 %v427, %v427
      %v569 = vmul.f32 %v429, %v429
      %v570 = vmul.f32 %v432, %v432
      %v571 = vmul.f32 %v434, %v434
      %v572 = vmul.f32 %v437, %v437
      %v573 = vmul.f32 %v439, %v439
      %v574 = vmul.f32 %v442, %v442
      %v575 = vmul.f32 %v444, %v444
      %v576 = vmul.f32 %v447, %v447
      %v577 = vmul.f32 %v449, %v449
      %v578 = vmul.f32 %v452, %v452
      %v579 = vmul.f32 %v454, %v454
      %v580 = vmul.f32 %v457, %v457
      %v581 = vmul.f32 %v459, %v459
      %v582 = vmul.f32 %v462, %v462
      %v583 = vmul.f32 %v464, %v464
      %v584 = vmul.f32 %v467, %v467
      %v585 = vmul.f32 %v469, %v469
      %v586 = vmul.f32 %v472, %v472
      %v587 = vmul.f32 %v474, %v474
      %v588 = vmul.f32 %v477, %v477
      %v589 = vmul.f32 %v479, %v479
      %v590 = vmul.f32 %v482, %v482
      %v591 = vmul.f32 %v484, %v484
      %v592 = vmul.f32 %v487, %v487
      %v593 = vmul.f32 %v489, %v489
      %v594 = vadd.f32 %v562, %v563
      %v595 = vadd.f32 %v594, %v564
      %v596 = vadd.f32 %v595, %v565
      %v597 = vadd.f32 %v596, %v566
      %v598 = vadd.f32 %v597, %v567
      %v599 = vadd.f32 %v598, %v568
      %v600 = vadd.f32 %v599, %v569
      %v601 = vadd.f32 %v600, %v570
      %v602 = vadd.f32 %v601, %v571
      %v603 = vadd.f32 %v602, %v572
      %v604 = vadd.f32 %v603, %v573
      %v605 = vadd.f32 %v604, %v574
      %v606 = vadd.f32 %v605, %v575
      %v607 = vadd.f32 %v606, %v576
      %v608 = vadd.f32 %v607, %v577
      %v609 = vadd.f32 %v608, %v578
      %v610 = vadd.f32 %v609, %v579
      %v611 = vadd.f32 %v610, %v580
      %v612 = vadd.f32 %v611, %v581
      %v613 = vadd.f32 %v612, %v582
      %v614 = vadd.f32 %v613, %v583
      %v615 = vadd.f32 %v614, %v584
      %v616 = vadd.f32 %v615, %v585
      %v617 = vadd.f32 %v616, %v586
      %v618 = vadd.f32 %v617, %v587
      %v619 = vadd.f32 %v618, %v588
      %v620 = vadd.f32 %v619, %v589
      %v621 = vadd.f32 %v620, %v590
      %v622 = vadd.f32 %v621, %v591
      %v623 = vadd.f32 %v622, %v592
      %v624 = vadd.f32 %v623, %v593
      %v625 = vrot.slane %v624, 4
      %v626 = vadd.f32 %v624, %v625
      %v627 = vrot.slane %v626, 2
      %v628 = vadd.f32 %v626, %v627
      %v629 = vrot.slane %v628, 1
      %v630 = vadd.f32 %v628, %v629
      %631 = vst [vmem:[%s211 + $0x1] sm:$0x1] %v630
      %s632 = smul.u32 32, %s16
      %p633 = scmp.lt.s32.totalorder %s632, 63
      %s634 = scalar_select %p633, %s632, 63
      %s635 = smul.addr %s634, 8
      %s636 = scalar_lea.vmem %s3, %s635
      %p637 = scmp.lt.s32.totalorder %s16, 1
      %s638 = scalar_select %p637, %s16, 1
      %s639 = smul.addr %s638, 8
      %s640 = scalar_lea.vmem %s4, %s639
      // Predicated region
      $region33: #{encoder_forward.6} parent=31 // pred_check
        %p641 = pneg %p102
      $region34: #{encoder_forward.6} parent=31 // pred_check_branch
        %643 = sbr.rel (%p641) target = $region36
      $region35: #{encoder_forward.6} parent=31 // pred_region
        %s644 = smul.u32 32, %s16
      $region36: #{encoder_forward.6} parent=31 // pred_fallthru
        _
      // Predicated region
      $region37: #{encoder_forward.6} parent=31 // pred_check
        %p645 = pneg %p128
      $region38: #{encoder_forward.6} parent=31 // pred_check_branch
        %647 = sbr.rel (%p645) target = $region40
      $region39: #{encoder_forward.6} parent=31 // pred_region
        _
      $region40: #{encoder_forward.6} parent=31 // pred_fallthru
        _
    $region32: #{encoder_forward.6} parent=5 // pred_fallthru
      _
    %p648 = scmp.le.s32.totalorder 2, %s11
    // Predicated region
    $region41: #{encoder_forward.6} parent=5 // pred_check
      %p649 = pneg %p648
    $region42: #{encoder_forward.6} parent=5 // pred_check_branch
      %651 = sbr.rel (%p649) target = $region44
    $region43: #{encoder_forward.6} parent=5 // pred_region
      %s652 = ssub.s32 %s11, 2
      // Predicated region
      $region45: #{encoder_forward.6} parent=43 // pred_check
        %p653 = pneg %p108
      $region46: #{encoder_forward.6} parent=43 // pred_check_branch
        %655 = sbr.rel (%p653) target = $region48
      $region47: #{encoder_forward.6} parent=43 // pred_region
        %s656 = smul.u32 32, %s17
        %p657 = scmp.lt.s32.totalorder %s656, 63
        %s658 = scalar_select %p657, %s656, 63
        %s659 = smul.addr %s658, 8
        %s660 = scalar_lea.vmem %s3, %s659
      $region48: #{encoder_forward.6} parent=43 // pred_fallthru
        _
      // Predicated region
      $region49: #{encoder_forward.6} parent=43 // pred_check
        %p661 = pneg %p134
      $region50: #{encoder_forward.6} parent=43 // pred_check_branch
        %663 = sbr.rel (%p661) target = $region52
      $region51: #{encoder_forward.6} parent=43 // pred_region
        %p664 = scmp.lt.s32.totalorder %s17, 1
        %s665 = scalar_select %p664, %s17, 1
        %s666 = smul.addr %s665, 8
        %s667 = scalar_lea.vmem %s4, %s666
      $region52: #{encoder_forward.6} parent=43 // pred_fallthru
        _
    $region44: #{encoder_forward.6} parent=5 // pred_fallthru
      _
  $region6: #{encoder_forward.6} parent=0 // loop_footer
    %s15 = sadd.s32 1, %s11
  $region7: #{encoder_forward.6} parent=0 // loop_footer_branch
    %10 = sbr.rel target = $region3
  $region8: #{encoder_forward.6} parent=0 // loop_exit
    _

// kernel: encoder_forward.8
$region0: #{encoder_forward.8}
  #allocation0 [shape = 'u32[]', space=smem, size = 0x4, offset = 0x4, fixed_abs, tag = 'smem constant byte address 0x4 - core index']
  #allocation1 [shape = 'u32[72,128]{1,0:T(1,128)}', space=vmem, size = 0x9000, scoped, tag = 'internal scratch']
  %s0 = inlined_call_operand.vmem [shape: bf16[128,144], index: 0, kind: input, shape index: {}]
  %s1 = inlined_call_operand.vmem [shape: bf16[144,128], index: 1, kind: input, shape index: {}]
  %s2 = inlined_call_operand.vmem [shape: f32[1,128], index: 2, kind: input, shape index: {}]
  %s3 = inlined_call_operand.vmem [shape: f32[128,128], index: 3, kind: output, shape index: {0}]
  %s4 = inlined_call_operand.vmem [shape: f32[8,128], index: 4, kind: output, shape index: {1}]
  %5 = xla_tuple %s3, %s4
  %s6 = sld [smem:[#allocation0]]
  $region30: #{encoder_forward.8} parent=0
    _
  %s8 = ssub.s32 1, %s6
  %s9 = scalar_select 0, %s8, %s6
  // Predicated region
  $region2: #{encoder_forward.8} parent=0 // pred_check
    _
  $region3: #{encoder_forward.8} parent=0 // pred_check_branch
    %11 = sbr.rel (0) target = $region5
  $region4: #{encoder_forward.8} parent=0 // pred_region
    _
  $region5: #{encoder_forward.8} parent=0 // pred_fallthru
    _
  // Predicated region
  $region6: #{encoder_forward.8} parent=0 // pred_check
    _
  $region7: #{encoder_forward.8} parent=0 // pred_check_branch
    %13 = sbr.rel (0) target = $region9
  $region8: #{encoder_forward.8} parent=0 // pred_region
    _
  $region9: #{encoder_forward.8} parent=0 // pred_fallthru
    _
  // Predicated region
  $region10: #{encoder_forward.8} parent=0 // pred_check
    _
  $region11: #{encoder_forward.8} parent=0 // pred_check_branch
    %15 = sbr.rel (0) target = $region13
  $region12: #{encoder_forward.8} parent=0 // pred_region
    _
  $region13: #{encoder_forward.8} parent=0 // pred_fallthru
    _
  %v17 = vld [vmem:[%s0] sm:$0xff]
  %v18 = vld [vmem:[%s0 + $0x8] sm:$0xff]
  %v19 = vld [vmem:[%s0 + $0x10] sm:$0xff]
  %v20 = vld [vmem:[%s0 + $0x18] sm:$0xff]
  %v21 = vld [vmem:[%s0 + $0x20] sm:$0xff]
  %v22 = vld [vmem:[%s0 + $0x28] sm:$0xff]
  %v23 = vld [vmem:[%s0 + $0x30] sm:$0xff]
  %v24 = vld [vmem:[%s0 + $0x38] sm:$0xff]
  %v25 = vld [vmem:[%s0 + $0x40] sm:$0xff]
  %v26 = vld [vmem:[%s0 + $0x48] sm:$0xff]
  %v27 = vld [vmem:[%s0 + $0x50] sm:$0xff]
  %v28 = vld [vmem:[%s0 + $0x58] sm:$0xff]
  %v29 = vld [vmem:[%s0 + $0x60] sm:$0xff]
  %v30 = vld [vmem:[%s0 + $0x68] sm:$0xff]
  %v31 = vld [vmem:[%s0 + $0x70] sm:$0xff]
  %v32 = vld [vmem:[%s0 + $0x78] sm:$0xff]
  %v33 = vld [vmem:[%s1] sm:$0xf]
  %v34 = vld [vmem:[%s1 + $0x4] sm:$0xf]
  %v35 = vld [vmem:[%s1 + $0x8] sm:$0xf]
  %v36 = vld [vmem:[%s1 + $0xc] sm:$0xf]
  %v37 = vld [vmem:[%s1 + $0x10] sm:$0xf]
  %v38 = vld [vmem:[%s1 + $0x14] sm:$0xf]
  %v39 = vld [vmem:[%s1 + $0x18] sm:$0xf]
  %v40 = vld [vmem:[%s1 + $0x1c] sm:$0xf]
  %v41 = vld [vmem:[%s1 + $0x20] sm:$0xf]
  %v42 = vld [vmem:[%s1 + $0x24] sm:$0xf]
  %v43 = vld [vmem:[%s1 + $0x28] sm:$0xf]
  %v44 = vld [vmem:[%s1 + $0x2c] sm:$0xf]
  %v45 = vld [vmem:[%s1 + $0x30] sm:$0xf]
  %v46 = vld [vmem:[%s1 + $0x34] sm:$0xf]
  %v47 = vld [vmem:[%s1 + $0x38] sm:$0xf]
  %v48 = vld [vmem:[%s1 + $0x3c] sm:$0xf]
  %v49 = vld [vmem:[%s1 + $0x40] sm:$0xf]
  %v50 = vld [vmem:[%s1 + $0x44] sm:$0xf]
  %v51 = vld [vmem:[%s2] sm:$0x1]
  %v53 = vperm.slane %v51, 0
  %v71 = vunpack.c.l.b16 %v17
  %v72 = vunpack.c.h.b16 %v17
  %v73 = vunpack.c.l.b16 %v18
  %v74 = vunpack.c.h.b16 %v18
  %v75 = vunpack.c.l.b16 %v19
  %v76 = vunpack.c.h.b16 %v19
  %v77 = vunpack.c.l.b16 %v20
  %v78 = vunpack.c.h.b16 %v20
  %v79 = vunpack.c.l.b16 %v21
  %v80 = vunpack.c.h.b16 %v21
  %v81 = vunpack.c.l.b16 %v22
  %v82 = vunpack.c.h.b16 %v22
  %v83 = vunpack.c.l.b16 %v23
  %v84 = vunpack.c.h.b16 %v23
  %v85 = vunpack.c.l.b16 %v24
  %v86 = vunpack.c.h.b16 %v24
  %v87 = vunpack.c.l.b16 %v25
  %v88 = vunpack.c.h.b16 %v25
  %v89 = vunpack.c.l.b16 %v26
  %v90 = vunpack.c.h.b16 %v26
  %v91 = vunpack.c.l.b16 %v27
  %v92 = vunpack.c.h.b16 %v27
  %v93 = vunpack.c.l.b16 %v28
  %v94 = vunpack.c.h.b16 %v28
  %v95 = vunpack.c.l.b16 %v29
  %v96 = vunpack.c.h.b16 %v29
  %v97 = vunpack.c.l.b16 %v30
  %v98 = vunpack.c.h.b16 %v30
  %v99 = vunpack.c.l.b16 %v31
  %v100 = vunpack.c.h.b16 %v31
  %v101 = vunpack.c.l.b16 %v32
  %v102 = vunpack.c.h.b16 %v32
  %v103 = vpack.c.b16 %v73, %v71
  %v104 = vpack.c.b16 %v74, %v72
  %v105 = vpack.c.b16 %v77, %v75
  %v106 = vpack.c.b16 %v78, %v76
  %v107 = vpack.c.b16 %v81, %v79
  %v108 = vpack.c.b16 %v82, %v80
  %v109 = vpack.c.b16 %v85, %v83
  %v110 = vpack.c.b16 %v86, %v84
  %v111 = vpack.c.b16 %v89, %v87
  %v112 = vpack.c.b16 %v90, %v88
  %v113 = vpack.c.b16 %v93, %v91
  %v114 = vpack.c.b16 %v94, %v92
  %v115 = vpack.c.b16 %v97, %v95
  %v116 = vpack.c.b16 %v98, %v96
  %v117 = vpack.c.b16 %v101, %v99
  %v118 = vpack.c.b16 %v102, %v100
  %v145 = vunpack.c.l.b16 %v33
  %v146 = vunpack.c.l.b16 %v34
  %v147 = vunpack.c.l.b16 %v35
  %v148 = vunpack.c.l.b16 %v36
  %v149 = vunpack.c.l.b16 %v37
  %v150 = vunpack.c.l.b16 %v38
  %v151 = vunpack.c.l.b16 %v39
  %v152 = vunpack.c.l.b16 %v40
  %v153 = vunpack.c.l.b16 %v41
  %v154 = vunpack.c.l.b16 %v42
  %v155 = vunpack.c.l.b16 %v43
  %v156 = vunpack.c.l.b16 %v44
  %v157 = vunpack.c.l.b16 %v45
  %v158 = vunpack.c.l.b16 %v46
  %v159 = vunpack.c.l.b16 %v47
  %v160 = vunpack.c.l.b16 %v48
  %v161 = vunpack.c.l.b16 %v49
  %v162 = vunpack.c.l.b16 %v50
  %v163 = vpack.c.b16 %v146, %v145
  %v164 = vpack.c.b16 %v148, %v147
  %v165 = vpack.c.b16 %v150, %v149
  %v166 = vpack.c.b16 %v152, %v151
  %v167 = vpack.c.b16 %v154, %v153
  %v168 = vpack.c.b16 %v156, %v155
  %v169 = vpack.c.b16 %v158, %v157
  %v170 = vpack.c.b16 %v160, %v159
  %v171 = vpack.c.b16 %v162, %v161
  %vm181 = vcmask 130048
  %v183 = vsel %vm181, %v104, 0
  %v186 = vsel %vm181, %v106, 0
  %v189 = vsel %vm181, %v108, 0
  %v192 = vsel %vm181, %v110, 0
  %v195 = vsel %vm181, %v112, 0
  %v198 = vsel %vm181, %v114, 0
  %v201 = vsel %vm181, %v116, 0
  %v204 = vsel %vm181, %v118, 0
  %206 = vmatpush.bf16.msra.mxu0 %v170
  %207 = vmatpush.bf16.msra.mxu0 %v169
  %208 = vmatpush.bf16.msra.mxu0 %v168
  %209 = vmatpush.bf16.msra.mxu0 %v167
  %210 = vmatpush.bf16.msra.mxu0 %v166
  %211 = vmatpush.bf16.msra.mxu0 %v165
  %212 = vmatpush.bf16.msra.mxu0 %v164
  %213 = vmatpush.bf16.msra.mxu0 %v163
  %214 = vmatmul.bf16.gmra.mxu0 %v103
  %v215 = vpop.f32.mrf.mxu0
  %v216 = vadd.f32 %v53, %v215
  %v217 = vpop.f32.mrf.mxu0
  %v218 = vadd.f32 %v53, %v217
  %219 = vmatmul.bf16.gmra.mxu0 %v105
  %v220 = vpop.f32.mrf.mxu0
  %v221 = vadd.f32 %v53, %v220
  %v222 = vpop.f32.mrf.mxu0
  %v223 = vadd.f32 %v53, %v222
  %224 = vmatmul.bf16.gmra.mxu0 %v107
  %v225 = vpop.f32.mrf.mxu0
  %v226 = vadd.f32 %v53, %v225
  %v227 = vpop.f32.mrf.mxu0
  %v228 = vadd.f32 %v53, %v227
  %229 = vmatmul.bf16.gmra.mxu0 %v109
  %v230 = vpop.f32.mrf.mxu0
  %v231 = vadd.f32 %v53, %v230
  %v232 = vpop.f32.mrf.mxu0
  %v233 = vadd.f32 %v53, %v232
  %234 = vmatmul.bf16.gmra.mxu0 %v111
  %v235 = vpop.f32.mrf.mxu0
  %v236 = vadd.f32 %v53, %v235
  %v237 = vpop.f32.mrf.mxu0
  %v238 = vadd.f32 %v53, %v237
  %239 = vmatmul.bf16.gmra.mxu0 %v113
  %v240 = vpop.f32.mrf.mxu0
  %v241 = vadd.f32 %v53, %v240
  %v242 = vpop.f32.mrf.mxu0
  %v243 = vadd.f32 %v53, %v242
  %244 = vmatmul.bf16.gmra.mxu0 %v115
  %v245 = vpop.f32.mrf.mxu0
  %v246 = vadd.f32 %v53, %v245
  %v247 = vpop.f32.mrf.mxu0
  %v248 = vadd.f32 %v53, %v247
  %249 = vmatmul.bf16.gmra.mxu0 %v117
  %v250 = vpop.f32.mrf.mxu0
  %v251 = vadd.f32 %v53, %v250
  %v252 = vpop.f32.mrf.mxu0
  %v253 = vadd.f32 %v53, %v252
  %254 = vdwg.mxu0
  %255 = vmatpush.bf16.msra.mxu0 0
  %256 = vmatpush.bf16.msra.mxu0 0
  %257 = vmatpush.bf16.msra.mxu0 0
  %258 = vmatpush.bf16.msra.mxu0 0
  %259 = vmatpush.bf16.msra.mxu0 0
  %260 = vmatpush.bf16.msra.mxu0 0
  %261 = vmatpush.bf16.msra.mxu0 0
  %262 = vmatpush.bf16.msra.mxu0 %v171
  %263 = vmatmul.bf16.gmra.mxu0 %v183
  %v264 = vpop.f32.mrf.mxu0
  %v265 = vadd.f32 %v216, %v264
  %v266 = vpop.f32.mrf.mxu0
  %v267 = vadd.f32 %v218, %v266
  %268 = vmatmul.bf16.gmra.mxu0 %v186
  %v269 = vpop.f32.mrf.mxu0
  %v270 = vadd.f32 %v221, %v269
  %v271 = vpop.f32.mrf.mxu0
  %v272 = vadd.f32 %v223, %v271
  %273 = vmatmul.bf16.gmra.mxu0 %v189
  %v274 = vpop.f32.mrf.mxu0
  %v275 = vadd.f32 %v226, %v274
  %v276 = vpop.f32.mrf.mxu0
  %v277 = vadd.f32 %v228, %v276
  %278 = vmatmul.bf16.gmra.mxu0 %v192
  %v279 = vpop.f32.mrf.mxu0
  %v280 = vadd.f32 %v231, %v279
  %v281 = vpop.f32.mrf.mxu0
  %v282 = vadd.f32 %v233, %v281
  %283 = vmatmul.bf16.gmra.mxu0 %v195
  %v284 = vpop.f32.mrf.mxu0
  %v285 = vadd.f32 %v236, %v284
  %v286 = vpop.f32.mrf.mxu0
  %v287 = vadd.f32 %v238, %v286
  %288 = vmatmul.bf16.gmra.mxu0 %v198
  %v289 = vpop.f32.mrf.mxu0
  %v290 = vadd.f32 %v241, %v289
  %v291 = vpop.f32.mrf.mxu0
  %v292 = vadd.f32 %v243, %v291
  %293 = vmatmul.bf16.gmra.mxu0 %v201
  %v294 = vpop.f32.mrf.mxu0
  %v295 = vadd.f32 %v246, %v294
  %v296 = vpop.f32.mrf.mxu0
  %v297 = vadd.f32 %v248, %v296
  %298 = vmatmul.bf16.gmra.mxu0 %v204
  %v299 = vpop.f32.mrf.mxu0
  %v300 = vadd.f32 %v251, %v299
  %v301 = vpop.f32.mrf.mxu0
  %v302 = vadd.f32 %v253, %v301
  %303 = vdwg.mxu0
  %304 = vst [vmem:[%s3] sm:$0xff] %v265
  %305 = vst [vmem:[%s3 + $0x8] sm:$0xff] %v267
  %306 = vst [vmem:[%s3 + $0x10] sm:$0xff] %v270
  %307 = vst [vmem:[%s3 + $0x18] sm:$0xff] %v272
  %308 = vst [vmem:[%s3 + $0x20] sm:$0xff] %v275
  %309 = vst [vmem:[%s3 + $0x28] sm:$0xff] %v277
  %310 = vst [vmem:[%s3 + $0x30] sm:$0xff] %v280
  %311 = vst [vmem:[%s3 + $0x38] sm:$0xff] %v282
  %312 = vst [vmem:[%s3 + $0x40] sm:$0xff] %v285
  %313 = vst [vmem:[%s3 + $0x48] sm:$0xff] %v287
  %314 = vst [vmem:[%s3 + $0x50] sm:$0xff] %v290
  %315 = vst [vmem:[%s3 + $0x58] sm:$0xff] %v292
  %316 = vst [vmem:[%s3 + $0x60] sm:$0xff] %v295
  %317 = vst [vmem:[%s3 + $0x68] sm:$0xff] %v297
  %318 = vst [vmem:[%s3 + $0x70] sm:$0xff] %v300
  %319 = vst [vmem:[%s3 + $0x78] sm:$0xff] %v302
  %320 = vst [vmem:[%s4] sm:$0xff] 0.0
  %v321 = vadd.f32 %v265, %v267
  %v322 = vadd.f32 %v321, %v270
  %v323 = vadd.f32 %v322, %v272
  %v324 = vadd.f32 %v323, %v275
  %v325 = vadd.f32 %v324, %v277
  %v326 = vadd.f32 %v325, %v280
  %v327 = vadd.f32 %v326, %v282
  %v328 = vadd.f32 %v327, %v285
  %v329 = vadd.f32 %v328, %v287
  %v330 = vadd.f32 %v329, %v290
  %v331 = vadd.f32 %v330, %v292
  %v332 = vadd.f32 %v331, %v295
  %v333 = vadd.f32 %v332, %v297
  %v334 = vadd.f32 %v333, %v300
  %v335 = vadd.f32 %v334, %v302
  %v336 = vrot.slane %v335, 4
  %v337 = vadd.f32 %v335, %v336
  %v338 = vrot.slane %v337, 2
  %v339 = vadd.f32 %v337, %v338
  %v340 = vrot.slane %v339, 1
  %v341 = vadd.f32 %v339, %v340
  %342 = vst [vmem:[%s4] sm:$0x1] %v341
  %v343 = vmul.f32 %v265, %v265
  %v344 = vmul.f32 %v267, %v267
  %v345 = vmul.f32 %v270, %v270
  %v346 = vmul.f32 %v272, %v272
  %v347 = vmul.f32 %v275, %v275
  %v348 = vmul.f32 %v277, %v277
  %v349 = vmul.f32 %v280, %v280
  %v350 = vmul.f32 %v282, %v282
  %v351 = vmul.f32 %v285, %v285
  %v352 = vmul.f32 %v287, %v287
  %v353 = vmul.f32 %v290, %v290
  %v354 = vmul.f32 %v292, %v292
  %v355 = vmul.f32 %v295, %v295
  %v356 = vmul.f32 %v297, %v297
  %v357 = vmul.f32 %v300, %v300
  %v358 = vmul.f32 %v302, %v302
  %v359 = vadd.f32 %v343, %v344
  %v360 = vadd.f32 %v359, %v345
  %v361 = vadd.f32 %v360, %v346
  %v362 = vadd.f32 %v361, %v347
  %v363 = vadd.f32 %v362, %v348
  %v364 = vadd.f32 %v363, %v349
  %v365 = vadd.f32 %v364, %v350
  %v366 = vadd.f32 %v365, %v351
  %v367 = vadd.f32 %v366, %v352
  %v368 = vadd.f32 %v367, %v353
  %v369 = vadd.f32 %v368, %v354
  %v370 = vadd.f32 %v369, %v355
  %v371 = vadd.f32 %v370, %v356
  %v372 = vadd.f32 %v371, %v357
  %v373 = vadd.f32 %v372, %v358
  %v374 = vrot.slane %v373, 4
  %v375 = vadd.f32 %v373, %v374
  %v376 = vrot.slane %v375, 2
  %v377 = vadd.f32 %v375, %v376
  %v378 = vrot.slane %v377, 1
  %v379 = vadd.f32 %v377, %v378
  %380 = vst [vmem:[%s4 + $0x1] sm:$0x1] %v379
  // Predicated region
  $region14: #{encoder_forward.8} parent=0 // pred_check
    _
  $region15: #{encoder_forward.8} parent=0 // pred_check_branch
    %382 = sbr.rel (0) target = $region17
  $region16: #{encoder_forward.8} parent=0 // pred_region
    _
  $region17: #{encoder_forward.8} parent=0 // pred_fallthru
    _
  // Predicated region
  $region18: #{encoder_forward.8} parent=0 // pred_check
    _
  $region19: #{encoder_forward.8} parent=0 // pred_check_branch
    %384 = sbr.rel (0) target = $region21
  $region20: #{encoder_forward.8} parent=0 // pred_region
    _
  $region21: #{encoder_forward.8} parent=0 // pred_fallthru
    _
  // Predicated region
  $region22: #{encoder_forward.8} parent=0 // pred_check
    _
  $region23: #{encoder_forward.8} parent=0 // pred_check_branch
    %386 = sbr.rel (0) target = $region25
  $region24: #{encoder_forward.8} parent=0 // pred_region
    _
  $region25: #{encoder_forward.8} parent=0 // pred_fallthru
    _
  // Predicated region
  $region26: #{encoder_forward.8} parent=0 // pred_check
    _
  $region27: #{encoder_forward.8} parent=0 // pred_check_branch
    %388 = sbr.rel (0) target = $region29
  $region28: #{encoder_forward.8} parent=0 // pred_region
    _
  $region29: #{encoder_forward.8} parent=0 // pred_fallthru
    _

// kernel: encoder_forward.9
$region0: #{encoder_forward.9}
  #allocation0 [shape = 'u32[]', space=smem, size = 0x4, offset = 0x4, fixed_abs, tag = 'smem constant byte address 0x4 - core index']
  #allocation1 [shape = 'u32[72,128]{1,0:T(1,128)}', space=vmem, size = 0x9000, scoped, tag = 'internal scratch']
  %s0 = inlined_call_operand.vmem [shape: f32[2,8,8,128], index: 0, kind: input, shape index: {}]
  %s1 = inlined_call_operand.vmem [shape: f32[1,128], index: 1, kind: input, shape index: {}]
  %s2 = inlined_call_operand.vmem [shape: f32[1,128], index: 2, kind: input, shape index: {}]
  %s3 = inlined_call_operand.vmem [shape: f32[4,8], index: 3, kind: input, shape index: {}]
  %s4 = inlined_call_operand.vmem [shape: f32[2,4,4,128], index: 4, kind: output, shape index: {}]
  %s5 = sld [smem:[#allocation0]]
  $region49: #{encoder_forward.9} parent=0
    _
  %s7 = ssub.s32 1, %s5
  %s8 = scalar_select 0, %s7, %s5
  loop: start=0, step=1, limit=4
  $region2: #{encoder_forward.9} parent=0 // loop_pre_header
    _
  $region3: #{encoder_forward.9} parent=0 // loop_header
    %s10 = sphi 0, %s14
    %p11 = scmp.ge.s32.totalorder %s10, 4
    %s17 = sphi 0, %s29
    %s18 = sphi 0, %s25
    %s19 = sphi 0, %s17
    %s20 = sphi 0, %s18
    %s21 = sphi 0, %s19
    %s22 = sphi 0, %s20
    %s34 = sphi 0, %s36
    %s37 = sphi 0, %s34
    %s38 = sphi 0, %s37
    %s54 = sphi 0, %s38
    %s58 = sphi 0, %s58
    %s60 = sphi 0, %s58
    %s61 = sphi 0, %s60
    %s75 = sphi 0, %s61
    %s79 = sphi 0, %s79
    %s81 = sphi 0, %s79
    %s82 = sphi 0, %s81
    %s96 = sphi 0, %s82
    %s100 = sphi 0, %s100
    %s102 = sphi 0, %s100
    %s103 = sphi 0, %s102
    %s117 = sphi 0, %s103
    %s125 = sphi 0, %s127
    %s128 = sphi 0, %s125
    %s129 = sphi 0, %s128
    %s145 = sphi 0, %s129
  $region4: #{encoder_forward.9} parent=0 // loop_header_branch
    %13 = sbr.rel (%p11) target = $region8
  $region5: #{encoder_forward.9} parent=0 // loop_body
    %s15 = ssub.s32 %s10, 1
    %s16 = ssub.s32 %s10, 2
    %s23 = sadd.s32 1, %s18
    %p24 = scmp.ge.s32.totalorder %s23, 1
    %s25 = scalar_select %p24, 0, %s23
    %s26 = sadd.s32 1, %s17
    %s27 = scalar_select %p24, %s26, %s17
    %p28 = scmp.ge.s32.totalorder %s27, 2
    %s29 = scalar_select %p28, 0, %s27
    %s30 = ssub.s32 %s17, %s29
    %s31 = ssub.s32 %s18, %s25
    %s32 = sor.u32 %s30, %s31
    %p33 = scmp.eq.s32.totalorder %s32, 0
    %s35 = sadd.s32 %s34, 1
    %s36 = scalar_select %p33, %s34, %s35
    %p39 = pneg %p33
    %p40 = scmp.eq.s32.totalorder %s10, 1
    %p41 = por %p39, %p40
    %p42 = scmp.ne.s32.totalorder %s34, %s37
    %p43 = scmp.eq.s32.totalorder %s10, 0
    %p44 = por %p42, %p43
    %p45 = scmp.ne.s32.totalorder %s34, %s37
    %p46 = scmp.eq.s32.totalorder %s15, 1
    %p47 = por %p45, %p46
    %p48 = scmp.ne.s32.totalorder %s37, %s38
    %p49 = scmp.eq.s32.totalorder %s15, 0
    %p50 = por %p48, %p49
    %p51 = scmp.ne.s32.totalorder %s37, %s38
    %p52 = scmp.eq.s32.totalorder %s16, 1
    %p53 = por %p51, %p52
    %p55 = scmp.ne.s32.totalorder %s38, %s54
    %p56 = scmp.eq.s32.totalorder %s16, 0
    %p57 = por %p55, %p56
    %s59 = sadd.s32 %s58, 1
    %p62 = scmp.eq.s32.totalorder %s10, 1
    %p63 = scmp.ne.s32.totalorder %s58, %s60
    %p64 = scmp.eq.s32.totalorder %s10, 0
    %p65 = por %p63, %p64
    %p66 = scmp.ne.s32.totalorder %s58, %s60
    %p67 = scmp.eq.s32.totalorder %s15, 1
    %p68 = por %p66, %p67
    %p69 = scmp.ne.s32.totalorder %s60, %s61
    %p70 = scmp.eq.s32.totalorder %s15, 0
    %p71 = por %p69, %p70
    %p72 = scmp.ne.s32.totalorder %s60, %s61
    %p73 = scmp.eq.s32.totalorder %s16, 1
    %p74 = por %p72, %p73
    %p76 = scmp.ne.s32.totalorder %s61, %s75
    %p77 = scmp.eq.s32.totalorder %s16, 0
    %p78 = por %p76, %p77
    %s80 = sadd.s32 %s79, 1
    %p83 = scmp.eq.s32.totalorder %s10, 1
    %p84 = scmp.ne.s32.totalorder %s79, %s81
    %p85 = scmp.eq.s32.totalorder %s10, 0
    %p86 = por %p84, %p85
    %p87 = scmp.ne.s32.totalorder %s79, %s81
    %p88 = scmp.eq.s32.totalorder %s15, 1
    %p89 = por %p87, %p88
    %p90 = scmp.ne.s32.totalorder %s81, %s82
    %p91 = scmp.eq.s32.totalorder %s15, 0
    %p92 = por %p90, %p91
    %p93 = scmp.ne.s32.totalorder %s81, %s82
    %p94 = scmp.eq.s32.totalorder %s16, 1
    %p95 = por %p93, %p94
    %p97 = scmp.ne.s32.totalorder %s82, %s96
    %p98 = scmp.eq.s32.totalorder %s16, 0
    %p99 = por %p97, %p98
    %s101 = sadd.s32 %s100, 1
    %p104 = scmp.eq.s32.totalorder %s10, 1
    %p105 = scmp.ne.s32.totalorder %s100, %s102
    %p106 = scmp.eq.s32.totalorder %s10, 0
    %p107 = por %p105, %p106
    %p108 = scmp.ne.s32.totalorder %s100, %s102
    %p109 = scmp.eq.s32.totalorder %s15, 1
    %p110 = por %p108, %p109
    %p111 = scmp.ne.s32.totalorder %s102, %s103
    %p112 = scmp.eq.s32.totalorder %s15, 0
    %p113 = por %p111, %p112
    %p114 = scmp.ne.s32.totalorder %s102, %s103
    %p115 = scmp.eq.s32.totalorder %s16, 1
    %p116 = por %p114, %p115
    %p118 = scmp.ne.s32.totalorder %s103, %s117
    %p119 = scmp.eq.s32.totalorder %s16, 0
    %p120 = por %p118, %p119
    %s121 = ssub.s32 %s17, %s29
    %s122 = ssub.s32 %s18, %s25
    %s123 = sor.u32 %s121, %s122
    %p124 = scmp.eq.s32.totalorder %s123, 0
    %s126 = sadd.s32 %s125, 1
    %s127 = scalar_select %p124, %s125, %s126
    %p130 = pneg %p124
    %p131 = scmp.eq.s32.totalorder %s10, 1
    %p132 = por %p130, %p131
    %p133 = scmp.ne.s32.totalorder %s125, %s128
    %p134 = scmp.eq.s32.totalorder %s10, 0
    %p135 = por %p133, %p134
    %p136 = scmp.ne.s32.totalorder %s125, %s128
    %p137 = scmp.eq.s32.totalorder %s15, 1
    %p138 = por %p136, %p137
    %p139 = scmp.ne.s32.totalorder %s128, %s129
    %p140 = scmp.eq.s32.totalorder %s15, 0
    %p141 = por %p139, %p140
    %p142 = scmp.ne.s32.totalorder %s128, %s129
    %p143 = scmp.eq.s32.totalorder %s16, 1
    %p144 = por %p142, %p143
    %p146 = scmp.ne.s32.totalorder %s129, %s145
    %p147 = scmp.eq.s32.totalorder %s16, 0
    %p148 = por %p146, %p147
    %p149 = scmp.le.s32.totalorder 1, %s10
    %p150 = scmp.lt.s32.totalorder %s10, 3
    %p151 = pnand %p149, %p150
    %p152 = pneg %p151
    // Predicated region
    $region9: #{encoder_forward.9} parent=5 // pred_check
      _
    $region10: #{encoder_forward.9} parent=5 // pred_check_branch
      %154 = sbr.rel (%p151) target = $region12
    $region11: #{encoder_forward.9} parent=5 // pred_region
      %s155 = ssub.s32 %s10, 1
      // Predicated region
      $region13: #{encoder_forward.9} parent=11 // pred_check
        %p156 = pneg %p71
      $region14: #{encoder_forward.9} parent=11 // pred_check_branch
        %158 = sbr.rel (%p156) target = $region16
      $region15: #{encoder_forward.9} parent=11 // pred_region
        _
      $region16: #{encoder_forward.9} parent=11 // pred_fallthru
        _
      // Predicated region
      $region17: #{encoder_forward.9} parent=11 // pred_check
        %p159 = pneg %p92
      $region18: #{encoder_forward.9} parent=11 // pred_check_branch
        %161 = sbr.rel (%p159) target = $region20
      $region19: #{encoder_forward.9} parent=11 // pred_region
        _
      $region20: #{encoder_forward.9} parent=11 // pred_fallthru
        _
      // Predicated region
      $region21: #{encoder_forward.9} parent=11 // pred_check
        %p162 = pneg %p113
      $region22: #{encoder_forward.9} parent=11 // pred_check_branch
        %164 = sbr.rel (%p162) target = $region24
      $region23: #{encoder_forward.9} parent=11 // pred_region
        _
      $region24: #{encoder_forward.9} parent=11 // pred_fallthru
        _
    $region12: #{encoder_forward.9} parent=5 // pred_fallthru
      _
    %p165 = scmp.lt.s32.totalorder %s10, 2
    // Predicated region
    $region25: #{encoder_forward.9} parent=5 // pred_check
      %p166 = pneg %p165
    $region26: #{encoder_forward.9} parent=5 // pred_check_branch
      %168 = sbr.rel (%p166) target = $region28
    $region27: #{encoder_forward.9} parent=5 // pred_region
      // Predicated region
      $region29: #{encoder_forward.9} parent=27 // pred_check
        %p169 = pneg %p44
      $region30: #{encoder_forward.9} parent=27 // pred_check_branch
        %171 = sbr.rel (%p169) target = $region32
      $region31: #{encoder_forward.9} parent=27 // pred_region
        %s172 = smul.u32 8, %s18
        %p173 = scmp.lt.s32.totalorder %s17, 1
        %s174 = scalar_select %p173, %s17, 1
        %p175 = scmp.lt.s32.totalorder %s172, 7
        %s176 = scalar_select %p175, %s172, 7
        %s177 = smul.addr %s174, 8
        %s178 = sadd.s32 %s176, %s177
        %s179 = smul.addr %s178, 8
        %s180 = scalar_lea.vmem %s0, %s179
        %s181 = smul.u32 8, %s18
      $region32: #{encoder_forward.9} parent=27 // pred_fallthru
        _
    $region28: #{encoder_forward.9} parent=5 // pred_fallthru
      _
    %p182 = scmp.le.s32.totalorder 1, %s10
    %p183 = scmp.lt.s32.totalorder %s10, 3
    %p184 = pnand %p182, %p183
    %p185 = pneg %p184
    // Predicated region
    $region33: #{encoder_forward.9} parent=5 // pred_check
      _
    $region34: #{encoder_forward.9} parent=5 // pred_check_branch
      %187 = sbr.rel (%p184) target = $region36
    $region35: #{encoder_forward.9} parent=5 // pred_region
      %s188 = ssub.s32 %s10, 1
      %s189 = smul.u32 8, %s20
      %p190 = scmp.lt.s32.totalorder %s19, 1
      %s191 = scalar_select %p190, %s19, 1
      %p192 = scmp.lt.s32.totalorder %s189, 7
      %s193 = scalar_select %p192, %s189, 7
      %s194 = smul.addr %s191, 8
      %s195 = sadd.s32 %s193, %s194
      %s196 = smul.addr %s195, 8
      %s197 = scalar_lea.vmem %s0, %s196
      %p198 = pneg %p50
      %p199 = pneg %p47
      %p200 = pneg %p71
      %p201 = pneg %p68
      %p202 = pneg %p92
      %p203 = pneg %p89
      %p204 = pneg %p113
      %p205 = pneg %p110
      %p206 = pneg %p141
      %p207 = pneg %p138
      %s208 = smul.u32 4, %s20
      %p209 = scmp.lt.s32.totalorder %s19, 1
      %s210 = scalar_select %p209, %s19, 1
      %p211 = scmp.lt.s32.totalorder %s208, 3
      %s212 = scalar_select %p211, %s208, 3
      %s213 = smul.addr %s210, 4
      %s214 = sadd.s32 %s212, %s213
      %s215 = smul.addr %s214, 4
      %s216 = scalar_lea.vmem %s4, %s215
      %s217 = smul.u32 8, %s20
      %p218 = scmp.lt.s32.totalorder %s19, 1
      %s219 = scalar_select %p218, %s19, 1
      %p220 = scmp.lt.s32.totalorder %s217, 7
      %s221 = scalar_select %p220, %s217, 7
      %s222 = smul.addr %s219, 8
      %s223 = sadd.s32 %s221, %s222
      %s224 = smul.addr %s223, 8
      %s225 = scalar_lea.vmem %s0, %s224
      %s226 = smul.u32 8, %s20
      %s227 = smul.u32 4, %s20
      %p228 = scmp.lt.s32.totalorder %s19, 1
      %s229 = scalar_select %p228, %s19, 1
      %p230 = scmp.lt.s32.totalorder %s227, 3
      %s231 = scalar_select %p230, %s227, 3
      %s232 = smul.addr %s229, 4
      %s233 = sadd.s32 %s231, %s232
      %s234 = smul.addr %s233, 4
      %s235 = scalar_lea.vmem %s4, %s234
      %s236 = smul.u32 4, %s20
      %v237 = vld [vmem:[%s1] sm:$0x1]
      %v238 = vld [vmem:[%s2] sm:$0x1]
      %v239 = vld [vmem:[%s3] sm:$0xf]
      %v240 = vld [vmem:[%s225] sm:$0xff]
      %s241 = scalar_lea.vmem %s225, 8
      %v242 = vld [vmem:[%s241] sm:$0xff]
      %v244 = vperm.slane %v237, 0
      %v246 = vmul.f32 %v240, %v244
      %v248 = vperm.slane %v238, 0
      %v250 = vadd.f32 %v246, %v248
      %v251 = vmax.f32 %v250, 0.0
      %v252 = vmul.f32 %v242, %v244
      %v253 = vadd.f32 %v252, %v248
      %v254 = vmax.f32 %v253, 0.0
      %v255 = vadd.f32 %v251, %v254
      %vm256 = vcmask 64512
      %v258 = vsel %vm256, %v239, 0
      %260 = vmatpush.msra.mxu0 0.0
      %261 = vmatpush.msra.mxu0 0.0
      %262 = vmatpush.msra.mxu0 0.0
      %263 = vmatpush.msra.mxu0 0.0
      %264 = vmatpush.msra.mxu0 0.0
      %265 = vmatpush.msra.mxu0 0.0
      %266 = vmatpush.msra.mxu0 0.0
      %267 = vmatpush.msra.mxu0 0.0
      %268 = vmatpush.msra.mxu0 0.0
      %269 = vmatpush.msra.mxu0 0.0
      %270 = vmatpush.msra.mxu0 0.0
      %271 = vmatpush.msra.mxu0 0.0
      %272 = vmatpush.msra.mxu0 0.0
      %273 = vmatpush.msra.mxu0 0.0
      %274 = vmatpush.msra.mxu0 0.0
      %275 = vmatpush.msra.mxu0 %v255
      %276 = vmatmul.f32.gmra.mxu0 %v258
      %v277 = vpop.f32.mrf.mxu0
      %v278 = vadd.f32 0.0, %v277
      %279 = vdwg.mxu0
      %280 = vst [vmem:[%s235] sm:$0xf] %v278
      %s281 = scalar_lea.vmem %s225, 16
      %v282 = vld [vmem:[%s281] sm:$0xff]
      %s283 = scalar_lea.vmem %s225, 24
      %v284 = vld [vmem:[%s283] sm:$0xff]
      %v285 = vmul.f32 %v282, %v244
      %v286 = vadd.f32 %v285, %v248
      %v287 = vmax.f32 %v286, 0.0
      %v288 = vmul.f32 %v284, %v244
      %v289 = vadd.f32 %v288, %v248
      %v290 = vmax.f32 %v289, 0.0
      %v291 = vadd.f32 %v287, %v290
      %292 = vmatpush.msra.mxu0 0.0
      %293 = vmatpush.msra.mxu0 0.0
      %294 = vmatpush.msra.mxu0 0.0
      %295 = vmatpush.msra.mxu0 0.0
      %296 = vmatpush.msra.mxu0 0.0
      %297 = vmatpush.msra.mxu0 0.0
      %298 = vmatpush.msra.mxu0 0.0
      %299 = vmatpush.msra.mxu0 0.0
      %300 = vmatpush.msra.mxu0 0.0
      %301 = vmatpush.msra.mxu0 0.0
      %302 = vmatpush.msra.mxu0 0.0
      %303 = vmatpush.msra.mxu0 0.0
      %304 = vmatpush.msra.mxu0 0.0
      %305 = vmatpush.msra.mxu0 0.0
      %306 = vmatpush.msra.mxu0 0.0
      %307 = vmatpush.msra.mxu0 %v291
      %308 = vmatmul.f32.gmra.mxu0 %v258
      %v309 = vpop.f32.mrf.mxu0
      %v310 = vadd.f32 0.0, %v309
      %311 = vdwg.mxu0
      %s312 = scalar_lea.vmem %s235, 4
      %313 = vst [vmem:[%s312] sm:$0xf] %v310
      %s314 = scalar_lea.vmem %s225, 32
      %v315 = vld [vmem:[%s314] sm:$0xff]
      %s316 = scalar_lea.vmem %s225, 40
      %v317 = vld [vmem:[%s316] sm:$0xff]
      %v318 = vmul.f32 %v315, %v244
      %v319 = vadd.f32 %v318, %v248
      %v320 = vmax.f32 %v319, 0.0
      %v321 = vmul.f32 %v317, %v244
      %v322 = vadd.f32 %v321, %v248
      %v323 = vmax.f32 %v322, 0.0
      %v324 = vadd.f32 %v320, %v323
      %325 = vmatpush.msra.mxu0 0.0
      %326 = vmatpush.msra.mxu0 0.0
      %327 = vmatpush.msra.mxu0 0.0
      %328 = vmatpush.msra.mxu0 0.0
      %329 = vmatpush.msra.mxu0 0.0
      %330 = vmatpush.msra.mxu0 0.0
      %331 = vmatpush.msra.mxu0 0.0
      %332 = vmatpush.msra.mxu0 0.0
      %333 = vmatpush.msra.mxu0 0.0
      %334 = vmatpush.msra.mxu0 0.0
      %335 = vmatpush.msra.mxu0 0.0
      %336 = vmatpush.msra.mxu0 0.0
      %337 = vmatpush.msra.mxu0 0.0
      %338 = vmatpush.msra.mxu0 0.0
      %339 = vmatpush.msra.mxu0 0.0
      %340 = vmatpush.msra.mxu0 %v324
      %341 = vmatmul.f32.gmra.mxu0 %v258
      %v342 = vpop.f32.mrf.mxu0
      %v343 = vadd.f32 0.0, %v342
      %344 = vdwg.mxu0
      %s345 = scalar_lea.vmem %s235, 8
      %346 = vst [vmem:[%s345] sm:$0xf] %v343
      %s347 = scalar_lea.vmem %s225, 48
      %v348 = vld [vmem:[%s347] sm:$0xff]
      %s349 = scalar_lea.vmem %s225, 56
      %v350 = vld [vmem:[%s349] sm:$0xff]
      %v351 = vmul.f32 %v348, %v244
      %v352 = vadd.f32 %v351, %v248
      %v353 = vmax.f32 %v352, 0.0
      %v354 = vmul.f32 %v350, %v244
      %v355 = vadd.f32 %v354, %v248
      %v356 = vmax.f32 %v355, 0.0
      %v357 = vadd.f32 %v353, %v356
      %358 = vmatpush.msra.mxu0 0.0
      %359 = vmatpush.msra.mxu0 0.0
      %360 = vmatpush.msra.mxu0 0.0
      %361 = vmatpush.msra.mxu0 0.0
      %362 = vmatpush.msra.mxu0 0.0
      %363 = vmatpush.msra.mxu0 0.0
      %364 = vmatpush.msra.mxu0 0.0
      %365 = vmatpush.msra.mxu0 0.0
      %366 = vmatpush.msra.mxu0 0.0
      %367 = vmatpush.msra.mxu0 0.0
      %368 = vmatpush.msra.mxu0 0.0
      %369 = vmatpush.msra.mxu0 0.0
      %370 = vmatpush.msra.mxu0 0.0
      %371 = vmatpush.msra.mxu0 0.0
      %372 = vmatpush.msra.mxu0 0.0
      %373 = vmatpush.msra.mxu0 %v357
      %374 = vmatmul.f32.gmra.mxu0 %v258
      %v375 = vpop.f32.mrf.mxu0
      %v376 = vadd.f32 0.0, %v375
      %377 = vdwg.mxu0
      %s378 = scalar_lea.vmem %s235, 12
      %379 = vst [vmem:[%s378] sm:$0xf] %v376
      %s380 = smul.u32 4, %s20
      %p381 = scmp.lt.s32.totalorder %s19, 1
      %s382 = scalar_select %p381, %s19, 1
      %p383 = scmp.lt.s32.totalorder %s380, 3
      %s384 = scalar_select %p383, %s380, 3
      %s385 = smul.addr %s382, 4
      %s386 = sadd.s32 %s384, %s385
      %s387 = smul.addr %s386, 4
      %s388 = scalar_lea.vmem %s4, %s387
      // Predicated region
      $region37: #{encoder_forward.9} parent=35 // pred_check
        %p389 = pneg %p138
      $region38: #{encoder_forward.9} parent=35 // pred_check_branch
        %391 = sbr.rel (%p389) target = $region40
      $region39: #{encoder_forward.9} parent=35 // pred_region
        %s392 = smul.u32 4, %s20
      $region40: #{encoder_forward.9} parent=35 // pred_fallthru
        _
    $region36: #{encoder_forward.9} parent=5 // pred_fallthru
      _
    %p393 = scmp.le.s32.totalorder 2, %s10
    // Predicated region
    $region41: #{encoder_forward.9} parent=5 // pred_check
      %p394 = pneg %p393
    $region42: #{encoder_forward.9} parent=5 // pred_check_branch
      %396 = sbr.rel (%p394) target = $region44
    $region43: #{encoder_forward.9} parent=5 // pred_region
      %s397 = ssub.s32 %s10, 2
      // Predicated region
      $region45: #{encoder_forward.9} parent=43 // pred_check
        %p398 = pneg %p144
      $region46: #{encoder_forward.9} parent=43 // pred_check_branch
        %400 = sbr.rel (%p398) target = $region48
      $region47: #{encoder_forward.9} parent=43 // pred_region
        %s401 = smul.u32 4, %s22
        %p402 = scmp.lt.s32.totalorder %s21, 1
        %s403 = scalar_select %p402, %s21, 1
        %p404 = scmp.lt.s32.totalorder %s401, 3
        %s405 = scalar_select %p404, %s401, 3
        %s406 = smul.addr %s403, 4
        %s407 = sadd.s32 %s405, %s406
        %s408 = smul.addr %s407, 4
        %s409 = scalar_lea.vmem %s4, %s408
      $region48: #{encoder_forward.9} parent=43 // pred_fallthru
        _
    $region44: #{encoder_forward.9} parent=5 // pred_fallthru
      _
  $region6: #{encoder_forward.9} parent=0 // loop_footer
    %s14 = sadd.s32 1, %s10
  $region7: #{encoder_forward.9} parent=0 // loop_footer_branch
    %9 = sbr.rel target = $region3
  $region8: #{encoder_forward.9} parent=0 // loop_exit
    _

// kernel: encoder_forward.11
$region0: #{encoder_forward.11}
  #allocation0 [shape = 'u32[]', space=smem, size = 0x4, offset = 0x4, fixed_abs, tag = 'smem constant byte address 0x4 - core index']
  #allocation1 [shape = 'u32[72,128]{1,0:T(1,128)}', space=vmem, size = 0x9000, scoped, tag = 'internal scratch']
  %s0 = inlined_call_operand.vmem [shape: f32[2,4,4,128], index: 0, kind: input, shape index: {}]
  %s1 = inlined_call_operand.vmem [shape: f32[1,128], index: 1, kind: input, shape index: {}]
  %s2 = inlined_call_operand.vmem [shape: f32[1,128], index: 2, kind: input, shape index: {}]
  %s3 = inlined_call_operand.vmem [shape: f32[2,4], index: 3, kind: input, shape index: {}]
  %s4 = inlined_call_operand.vmem [shape: f32[2,2,2,128], index: 4, kind: output, shape index: {}]
  %s5 = sld [smem:[#allocation0]]
  $region49: #{encoder_forward.11} parent=0
    _
  %s7 = ssub.s32 1, %s5
  %s8 = scalar_select 0, %s7, %s5
  loop: start=0, step=1, limit=4
  $region2: #{encoder_forward.11} parent=0 // loop_pre_header
    _
  $region3: #{encoder_forward.11} parent=0 // loop_header
    %s10 = sphi 0, %s14
    %p11 = scmp.ge.s32.totalorder %s10, 4
    %s17 = sphi 0, %s29
    %s18 = sphi 0, %s25
    %s19 = sphi 0, %s17
    %s20 = sphi 0, %s18
    %s21 = sphi 0, %s19
    %s22 = sphi 0, %s20
    %s34 = sphi 0, %s36
    %s37 = sphi 0, %s34
    %s38 = sphi 0, %s37
    %s54 = sphi 0, %s38
    %s58 = sphi 0, %s58
    %s60 = sphi 0, %s58
    %s61 = sphi 0, %s60
    %s75 = sphi 0, %s61
    %s79 = sphi 0, %s79
    %s81 = sphi 0, %s79
    %s82 = sphi 0, %s81
    %s96 = sphi 0, %s82
    %s100 = sphi 0, %s100
    %s102 = sphi 0, %s100
    %s103 = sphi 0, %s102
    %s117 = sphi 0, %s103
    %s125 = sphi 0, %s127
    %s128 = sphi 0, %s125
    %s129 = sphi 0, %s128
    %s145 = sphi 0, %s129
  $region4: #{encoder_forward.11} parent=0 // loop_header_branch
    %13 = sbr.rel (%p11) target = $region8
  $region5: #{encoder_forward.11} parent=0 // loop_body
    %s15 = ssub.s32 %s10, 1
    %s16 = ssub.s32 %s10, 2
    %s23 = sadd.s32 1, %s18
    %p24 = scmp.ge.s32.totalorder %s23, 1
    %s25 = scalar_select %p24, 0, %s23
    %s26 = sadd.s32 1, %s17
    %s27 = scalar_select %p24, %s26, %s17
    %p28 = scmp.ge.s32.totalorder %s27, 2
    %s29 = scalar_select %p28, 0, %s27
    %s30 = ssub.s32 %s17, %s29
    %s31 = ssub.s32 %s18, %s25
    %s32 = sor.u32 %s30, %s31
    %p33 = scmp.eq.s32.totalorder %s32, 0
    %s35 = sadd.s32 %s34, 1
    %s36 = scalar_select %p33, %s34, %s35
    %p39 = pneg %p33
    %p40 = scmp.eq.s32.totalorder %s10, 1
    %p41 = por %p39, %p40
    %p42 = scmp.ne.s32.totalorder %s34, %s37
    %p43 = scmp.eq.s32.totalorder %s10, 0
    %p44 = por %p42, %p43
    %p45 = scmp.ne.s32.totalorder %s34, %s37
    %p46 = scmp.eq.s32.totalorder %s15, 1
    %p47 = por %p45, %p46
    %p48 = scmp.ne.s32.totalorder %s37, %s38
    %p49 = scmp.eq.s32.totalorder %s15, 0
    %p50 = por %p48, %p49
    %p51 = scmp.ne.s32.totalorder %s37, %s38
    %p52 = scmp.eq.s32.totalorder %s16, 1
    %p53 = por %p51, %p52
    %p55 = scmp.ne.s32.totalorder %s38, %s54
    %p56 = scmp.eq.s32.totalorder %s16, 0
    %p57 = por %p55, %p56
    %s59 = sadd.s32 %s58, 1
    %p62 = scmp.eq.s32.totalorder %s10, 1
    %p63 = scmp.ne.s32.totalorder %s58, %s60
    %p64 = scmp.eq.s32.totalorder %s10, 0
    %p65 = por %p63, %p64
    %p66 = scmp.ne.s32.totalorder %s58, %s60
    %p67 = scmp.eq.s32.totalorder %s15, 1
    %p68 = por %p66, %p67
    %p69 = scmp.ne.s32.totalorder %s60, %s61
    %p70 = scmp.eq.s32.totalorder %s15, 0
    %p71 = por %p69, %p70
    %p72 = scmp.ne.s32.totalorder %s60, %s61
    %p73 = scmp.eq.s32.totalorder %s16, 1
    %p74 = por %p72, %p73
    %p76 = scmp.ne.s32.totalorder %s61, %s75
    %p77 = scmp.eq.s32.totalorder %s16, 0
    %p78 = por %p76, %p77
    %s80 = sadd.s32 %s79, 1
    %p83 = scmp.eq.s32.totalorder %s10, 1
    %p84 = scmp.ne.s32.totalorder %s79, %s81
    %p85 = scmp.eq.s32.totalorder %s10, 0
    %p86 = por %p84, %p85
    %p87 = scmp.ne.s32.totalorder %s79, %s81
    %p88 = scmp.eq.s32.totalorder %s15, 1
    %p89 = por %p87, %p88
    %p90 = scmp.ne.s32.totalorder %s81, %s82
    %p91 = scmp.eq.s32.totalorder %s15, 0
    %p92 = por %p90, %p91
    %p93 = scmp.ne.s32.totalorder %s81, %s82
    %p94 = scmp.eq.s32.totalorder %s16, 1
    %p95 = por %p93, %p94
    %p97 = scmp.ne.s32.totalorder %s82, %s96
    %p98 = scmp.eq.s32.totalorder %s16, 0
    %p99 = por %p97, %p98
    %s101 = sadd.s32 %s100, 1
    %p104 = scmp.eq.s32.totalorder %s10, 1
    %p105 = scmp.ne.s32.totalorder %s100, %s102
    %p106 = scmp.eq.s32.totalorder %s10, 0
    %p107 = por %p105, %p106
    %p108 = scmp.ne.s32.totalorder %s100, %s102
    %p109 = scmp.eq.s32.totalorder %s15, 1
    %p110 = por %p108, %p109
    %p111 = scmp.ne.s32.totalorder %s102, %s103
    %p112 = scmp.eq.s32.totalorder %s15, 0
    %p113 = por %p111, %p112
    %p114 = scmp.ne.s32.totalorder %s102, %s103
    %p115 = scmp.eq.s32.totalorder %s16, 1
    %p116 = por %p114, %p115
    %p118 = scmp.ne.s32.totalorder %s103, %s117
    %p119 = scmp.eq.s32.totalorder %s16, 0
    %p120 = por %p118, %p119
    %s121 = ssub.s32 %s17, %s29
    %s122 = ssub.s32 %s18, %s25
    %s123 = sor.u32 %s121, %s122
    %p124 = scmp.eq.s32.totalorder %s123, 0
    %s126 = sadd.s32 %s125, 1
    %s127 = scalar_select %p124, %s125, %s126
    %p130 = pneg %p124
    %p131 = scmp.eq.s32.totalorder %s10, 1
    %p132 = por %p130, %p131
    %p133 = scmp.ne.s32.totalorder %s125, %s128
    %p134 = scmp.eq.s32.totalorder %s10, 0
    %p135 = por %p133, %p134
    %p136 = scmp.ne.s32.totalorder %s125, %s128
    %p137 = scmp.eq.s32.totalorder %s15, 1
    %p138 = por %p136, %p137
    %p139 = scmp.ne.s32.totalorder %s128, %s129
    %p140 = scmp.eq.s32.totalorder %s15, 0
    %p141 = por %p139, %p140
    %p142 = scmp.ne.s32.totalorder %s128, %s129
    %p143 = scmp.eq.s32.totalorder %s16, 1
    %p144 = por %p142, %p143
    %p146 = scmp.ne.s32.totalorder %s129, %s145
    %p147 = scmp.eq.s32.totalorder %s16, 0
    %p148 = por %p146, %p147
    %p149 = scmp.le.s32.totalorder 1, %s10
    %p150 = scmp.lt.s32.totalorder %s10, 3
    %p151 = pnand %p149, %p150
    %p152 = pneg %p151
    // Predicated region
    $region9: #{encoder_forward.11} parent=5 // pred_check
      _
    $region10: #{encoder_forward.11} parent=5 // pred_check_branch
      %154 = sbr.rel (%p151) target = $region12
    $region11: #{encoder_forward.11} parent=5 // pred_region
      %s155 = ssub.s32 %s10, 1
      // Predicated region
      $region13: #{encoder_forward.11} parent=11 // pred_check
        %p156 = pneg %p71
      $region14: #{encoder_forward.11} parent=11 // pred_check_branch
        %158 = sbr.rel (%p156) target = $region16
      $region15: #{encoder_forward.11} parent=11 // pred_region
        _
      $region16: #{encoder_forward.11} parent=11 // pred_fallthru
        _
      // Predicated region
      $region17: #{encoder_forward.11} parent=11 // pred_check
        %p159 = pneg %p92
      $region18: #{encoder_forward.11} parent=11 // pred_check_branch
        %161 = sbr.rel (%p159) target = $region20
      $region19: #{encoder_forward.11} parent=11 // pred_region
        _
      $region20: #{encoder_forward.11} parent=11 // pred_fallthru
        _
      // Predicated region
      $region21: #{encoder_forward.11} parent=11 // pred_check
        %p162 = pneg %p113
      $region22: #{encoder_forward.11} parent=11 // pred_check_branch
        %164 = sbr.rel (%p162) target = $region24
      $region23: #{encoder_forward.11} parent=11 // pred_region
        _
      $region24: #{encoder_forward.11} parent=11 // pred_fallthru
        _
    $region12: #{encoder_forward.11} parent=5 // pred_fallthru
      _
    %p165 = scmp.lt.s32.totalorder %s10, 2
    // Predicated region
    $region25: #{encoder_forward.11} parent=5 // pred_check
      %p166 = pneg %p165
    $region26: #{encoder_forward.11} parent=5 // pred_check_branch
      %168 = sbr.rel (%p166) target = $region28
    $region27: #{encoder_forward.11} parent=5 // pred_region
      // Predicated region
      $region29: #{encoder_forward.11} parent=27 // pred_check
        %p169 = pneg %p44
      $region30: #{encoder_forward.11} parent=27 // pred_check_branch
        %171 = sbr.rel (%p169) target = $region32
      $region31: #{encoder_forward.11} parent=27 // pred_region
        %s172 = smul.u32 4, %s18
        %p173 = scmp.lt.s32.totalorder %s17, 1
        %s174 = scalar_select %p173, %s17, 1
        %p175 = scmp.lt.s32.totalorder %s172, 3
        %s176 = scalar_select %p175, %s172, 3
        %s177 = smul.addr %s174, 4
        %s178 = sadd.s32 %s176, %s177
        %s179 = smul.addr %s178, 4
        %s180 = scalar_lea.vmem %s0, %s179
        %s181 = smul.u32 4, %s18
      $region32: #{encoder_forward.11} parent=27 // pred_fallthru
        _
    $region28: #{encoder_forward.11} parent=5 // pred_fallthru
      _
    %p182 = scmp.le.s32.totalorder 1, %s10
    %p183 = scmp.lt.s32.totalorder %s10, 3
    %p184 = pnand %p182, %p183
    %p185 = pneg %p184
    // Predicated region
    $region33: #{encoder_forward.11} parent=5 // pred_check
      _
    $region34: #{encoder_forward.11} parent=5 // pred_check_branch
      %187 = sbr.rel (%p184) target = $region36
    $region35: #{encoder_forward.11} parent=5 // pred_region
      %s188 = ssub.s32 %s10, 1
      %s189 = smul.u32 4, %s20
      %p190 = scmp.lt.s32.totalorder %s19, 1
      %s191 = scalar_select %p190, %s19, 1
      %p192 = scmp.lt.s32.totalorder %s189, 3
      %s193 = scalar_select %p192, %s189, 3
      %s194 = smul.addr %s191, 4
      %s195 = sadd.s32 %s193, %s194
      %s196 = smul.addr %s195, 4
      %s197 = scalar_lea.vmem %s0, %s196
      %p198 = pneg %p50
      %p199 = pneg %p47
      %p200 = pneg %p71
      %p201 = pneg %p68
      %p202 = pneg %p92
      %p203 = pneg %p89
      %p204 = pneg %p113
      %p205 = pneg %p110
      %p206 = pneg %p141
      %p207 = pneg %p138
      %s208 = smul.u32 2, %s20
      %p209 = scmp.lt.s32.totalorder %s19, 1
      %s210 = scalar_select %p209, %s19, 1
      %p211 = scmp.lt.s32.totalorder %s208, 1
      %s212 = scalar_select %p211, %s208, 1
      %s213 = smul.addr %s210, 2
      %s214 = sadd.s32 %s212, %s213
      %s215 = smul.addr %s214, 2
      %s216 = scalar_lea.vmem %s4, %s215
      %s217 = smul.u32 4, %s20
      %p218 = scmp.lt.s32.totalorder %s19, 1
      %s219 = scalar_select %p218, %s19, 1
      %p220 = scmp.lt.s32.totalorder %s217, 3
      %s221 = scalar_select %p220, %s217, 3
      %s222 = smul.addr %s219, 4
      %s223 = sadd.s32 %s221, %s222
      %s224 = smul.addr %s223, 4
      %s225 = scalar_lea.vmem %s0, %s224
      %s226 = smul.u32 4, %s20
      %s227 = smul.u32 2, %s20
      %p228 = scmp.lt.s32.totalorder %s19, 1
      %s229 = scalar_select %p228, %s19, 1
      %p230 = scmp.lt.s32.totalorder %s227, 1
      %s231 = scalar_select %p230, %s227, 1
      %s232 = smul.addr %s229, 2
      %s233 = sadd.s32 %s231, %s232
      %s234 = smul.addr %s233, 2
      %s235 = scalar_lea.vmem %s4, %s234
      %s236 = smul.u32 2, %s20
      %v237 = vld [vmem:[%s1] sm:$0x1]
      %v238 = vld [vmem:[%s2] sm:$0x1]
      %v239 = vld [vmem:[%s3] sm:$0x3]
      %v240 = vld [vmem:[%s225] sm:$0xf]
      %s241 = scalar_lea.vmem %s225, 4
      %v242 = vld [vmem:[%s241] sm:$0xf]
      %v244 = vperm.slane %v237, 0
      %v246 = vmul.f32 %v240, %v244
      %v248 = vperm.slane %v238, 0
      %v250 = vadd.f32 %v246, %v248
      %v251 = vmax.f32 %v250, 0.0
      %v252 = vmul.f32 %v242, %v244
      %v253 = vadd.f32 %v252, %v248
      %v254 = vmax.f32 %v253, 0.0
      %v255 = vadd.f32 %v251, %v254
      %vm256 = vcmask 31744
      %v258 = vsel %vm256, %v239, 0
      %vm260 = vcmask 1043456
      %v262 = vsel %vm260, %v255, 0
      %264 = vmatpush.msra.mxu0 0.0
      %265 = vmatpush.msra.mxu0 0.0
      %266 = vmatpush.msra.mxu0 0.0
      %267 = vmatpush.msra.mxu0 0.0
      %268 = vmatpush.msra.mxu0 0.0
      %269 = vmatpush.msra.mxu0 0.0
      %270 = vmatpush.msra.mxu0 0.0
      %271 = vmatpush.msra.mxu0 0.0
      %272 = vmatpush.msra.mxu0 0.0
      %273 = vmatpush.msra.mxu0 0.0
      %274 = vmatpush.msra.mxu0 0.0
      %275 = vmatpush.msra.mxu0 0.0
      %276 = vmatpush.msra.mxu0 0.0
      %277 = vmatpush.msra.mxu0 0.0
      %278 = vmatpush.msra.mxu0 0.0
      %279 = vmatpush.msra.mxu0 %v262
      %280 = vmatmul.f32.gmra.mxu0 %v258
      %v281 = vpop.f32.mrf.mxu0
      %v282 = vadd.f32 0.0, %v281
      %283 = vdwg.mxu0
      %284 = vst [vmem:[%s235] sm:$0x3] %v282
      %s285 = scalar_lea.vmem %s225, 8
      %v286 = vld [vmem:[%s285] sm:$0xf]
      %s287 = scalar_lea.vmem %s225, 12
      %v288 = vld [vmem:[%s287] sm:$0xf]
      %v289 = vmul.f32 %v286, %v244
      %v290 = vadd.f32 %v289, %v248
      %v291 = vmax.f32 %v290, 0.0
      %v292 = vmul.f32 %v288, %v244
      %v293 = vadd.f32 %v292, %v248
      %v294 = vmax.f32 %v293, 0.0
      %v295 = vadd.f32 %v291, %v294
      %v297 = vsel %vm260, %v295, 0
      %299 = vmatpush.msra.mxu0 0.0
      %300 = vmatpush.msra.mxu0 0.0
      %301 = vmatpush.msra.mxu0 0.0
      %302 = vmatpush.msra.mxu0 0.0
      %303 = vmatpush.msra.mxu0 0.0
      %304 = vmatpush.msra.mxu0 0.0
      %305 = vmatpush.msra.mxu0 0.0
      %306 = vmatpush.msra.mxu0 0.0
      %307 = vmatpush.msra.mxu0 0.0
      %308 = vmatpush.msra.mxu0 0.0
      %309 = vmatpush.msra.mxu0 0.0
      %310 = vmatpush.msra.mxu0 0.0
      %311 = vmatpush.msra.mxu0 0.0
      %312 = vmatpush.msra.mxu0 0.0
      %313 = vmatpush.msra.mxu0 0.0
      %314 = vmatpush.msra.mxu0 %v297
      %315 = vmatmul.f32.gmra.mxu0 %v258
      %v316 = vpop.f32.mrf.mxu0
      %v317 = vadd.f32 0.0, %v316
      %318 = vdwg.mxu0
      %s319 = scalar_lea.vmem %s235, 2
      %320 = vst [vmem:[%s319] sm:$0x3] %v317
      %s321 = smul.u32 2, %s20
      %p322 = scmp.lt.s32.totalorder %s19, 1
      %s323 = scalar_select %p322, %s19, 1
      %p324 = scmp.lt.s32.totalorder %s321, 1
      %s325 = scalar_select %p324, %s321, 1
      %s326 = smul.addr %s323, 2
      %s327 = sadd.s32 %s325, %s326
      %s328 = smul.addr %s327, 2
      %s329 = scalar_lea.vmem %s4, %s328
      // Predicated region
      $region37: #{encoder_forward.11} parent=35 // pred_check
        %p330 = pneg %p138
      $region38: #{encoder_forward.11} parent=35 // pred_check_branch
        %332 = sbr.rel (%p330) target = $region40
      $region39: #{encoder_forward.11} parent=35 // pred_region
        %s333 = smul.u32 2, %s20
      $region40: #{encoder_forward.11} parent=35 // pred_fallthru
        _
    $region36: #{encoder_forward.11} parent=5 // pred_fallthru
      _
    %p334 = scmp.le.s32.totalorder 2, %s10
    // Predicated region
    $region41: #{encoder_forward.11} parent=5 // pred_check
      %p335 = pneg %p334
    $region42: #{encoder_forward.11} parent=5 // pred_check_branch
      %337 = sbr.rel (%p335) target = $region44
    $region43: #{encoder_forward.11} parent=5 // pred_region
      %s338 = ssub.s32 %s10, 2
      // Predicated region
      $region45: #{encoder_forward.11} parent=43 // pred_check
        %p339 = pneg %p144
      $region46: #{encoder_forward.11} parent=43 // pred_check_branch
        %341 = sbr.rel (%p339) target = $region48
      $region47: #{encoder_forward.11} parent=43 // pred_region
        %s342 = smul.u32 2, %s22
        %p343 = scmp.lt.s32.totalorder %s21, 1
        %s344 = scalar_select %p343, %s21, 1
        %p345 = scmp.lt.s32.totalorder %s342, 1
        %s346 = scalar_select %p345, %s342, 1
        %s347 = smul.addr %s344, 2
        %s348 = sadd.s32 %s346, %s347
        %s349 = smul.addr %s348, 2
        %s350 = scalar_lea.vmem %s4, %s349
      $region48: #{encoder_forward.11} parent=43 // pred_fallthru
        _
    $region44: #{encoder_forward.11} parent=5 // pred_fallthru
      _
  $region6: #{encoder_forward.11} parent=0 // loop_footer
    %s14 = sadd.s32 1, %s10
  $region7: #{encoder_forward.11} parent=0 // loop_footer_branch
    %9 = sbr.rel target = $region3
  $region8: #{encoder_forward.11} parent=0 // loop_exit
    _

// kernel: encoder_forward.10
$region0: #{encoder_forward.10}
  #allocation0 [shape = 'u32[]', space=smem, size = 0x4, offset = 0x4, fixed_abs, tag = 'smem constant byte address 0x4 - core index']
  #allocation1 [shape = 'u32[72,128]{1,0:T(1,128)}', space=vmem, size = 0x9000, scoped, tag = 'internal scratch']
  %s0 = inlined_call_operand.vmem [shape: bf16[32,288], index: 0, kind: input, shape index: {}]
  %s1 = inlined_call_operand.vmem [shape: bf16[288,128], index: 1, kind: input, shape index: {}]
  %s2 = inlined_call_operand.vmem [shape: f32[1,128], index: 2, kind: input, shape index: {}]
  %s3 = inlined_call_operand.vmem [shape: f32[32,128], index: 3, kind: output, shape index: {0}]
  %s4 = inlined_call_operand.vmem [shape: f32[8,128], index: 4, kind: output, shape index: {1}]
  %5 = xla_tuple %s3, %s4
  %s6 = sld [smem:[#allocation0]]
  $region30: #{encoder_forward.10} parent=0
    _
  %s8 = ssub.s32 1, %s6
  %s9 = scalar_select 0, %s8, %s6
  // Predicated region
  $region2: #{encoder_forward.10} parent=0 // pred_check
    _
  $region3: #{encoder_forward.10} parent=0 // pred_check_branch
    %11 = sbr.rel (0) target = $region5
  $region4: #{encoder_forward.10} parent=0 // pred_region
    _
  $region5: #{encoder_forward.10} parent=0 // pred_fallthru
    _
  // Predicated region
  $region6: #{encoder_forward.10} parent=0 // pred_check
    _
  $region7: #{encoder_forward.10} parent=0 // pred_check_branch
    %13 = sbr.rel (0) target = $region9
  $region8: #{encoder_forward.10} parent=0 // pred_region
    _
  $region9: #{encoder_forward.10} parent=0 // pred_fallthru
    _
  // Predicated region
  $region10: #{encoder_forward.10} parent=0 // pred_check
    _
  $region11: #{encoder_forward.10} parent=0 // pred_check_branch
    %15 = sbr.rel (0) target = $region13
  $region12: #{encoder_forward.10} parent=0 // pred_region
    _
  $region13: #{encoder_forward.10} parent=0 // pred_fallthru
    _
  %v17 = vld [vmem:[%s0] sm:$0xff]
  %v18 = vld [vmem:[%s0 + $0x8] sm:$0xf]
  %v19 = vld [vmem:[%s0 + $0xc] sm:$0xff]
  %v20 = vld [vmem:[%s0 + $0x14] sm:$0xf]
  %v21 = vld [vmem:[%s0 + $0x18] sm:$0xff]
  %v22 = vld [vmem:[%s0 + $0x20] sm:$0xf]
  %v23 = vld [vmem:[%s0 + $0x24] sm:$0xff]
  %v24 = vld [vmem:[%s0 + $0x2c] sm:$0xf]
  %v25 = vld [vmem:[%s1] sm:$0xf]
  %v26 = vld [vmem:[%s1 + $0x4] sm:$0xf]
  %v27 = vld [vmem:[%s1 + $0x8] sm:$0xf]
  %v28 = vld [vmem:[%s1 + $0xc] sm:$0xf]
  %v29 = vld [vmem:[%s1 + $0x10] sm:$0xf]
  %v30 = vld [vmem:[%s1 + $0x14] sm:$0xf]
  %v31 = vld [vmem:[%s1 + $0x18] sm:$0xf]
  %v32 = vld [vmem:[%s1 + $0x1c] sm:$0xf]
  %v33 = vld [vmem:[%s1 + $0x20] sm:$0xf]
  %v34 = vld [vmem:[%s1 + $0x24] sm:$0xf]
  %v35 = vld [vmem:[%s1 + $0x28] sm:$0xf]
  %v36 = vld [vmem:[%s1 + $0x2c] sm:$0xf]
  %v37 = vld [vmem:[%s1 + $0x30] sm:$0xf]
  %v38 = vld [vmem:[%s1 + $0x34] sm:$0xf]
  %v39 = vld [vmem:[%s1 + $0x38] sm:$0xf]
  %v40 = vld [vmem:[%s1 + $0x3c] sm:$0xf]
  %v41 = vld [vmem:[%s1 + $0x40] sm:$0xf]
  %v42 = vld [vmem:[%s1 + $0x44] sm:$0xf]
  %v43 = vld [vmem:[%s1 + $0x48] sm:$0xf]
  %v44 = vld [vmem:[%s1 + $0x4c] sm:$0xf]
  %v45 = vld [vmem:[%s1 + $0x50] sm:$0xf]
  %v46 = vld [vmem:[%s1 + $0x54] sm:$0xf]
  %v47 = vld [vmem:[%s1 + $0x58] sm:$0xf]
  %v48 = vld [vmem:[%s1 + $0x5c] sm:$0xf]
  %v49 = vld [vmem:[%s1 + $0x60] sm:$0xf]
  %v50 = vld [vmem:[%s1 + $0x64] sm:$0xf]
  %v51 = vld [vmem:[%s1 + $0x68] sm:$0xf]
  %v52 = vld [vmem:[%s1 + $0x6c] sm:$0xf]
  %v53 = vld [vmem:[%s1 + $0x70] sm:$0xf]
  %v54 = vld [vmem:[%s1 + $0x74] sm:$0xf]
  %v55 = vld [vmem:[%s1 + $0x78] sm:$0xf]
  %v56 = vld [vmem:[%s1 + $0x7c] sm:$0xf]
  %v57 = vld [vmem:[%s1 + $0x80] sm:$0xf]
  %v58 = vld [vmem:[%s1 + $0x84] sm:$0xf]
  %v59 = vld [vmem:[%s1 + $0x88] sm:$0xf]
  %v60 = vld [vmem:[%s1 + $0x8c] sm:$0xf]
  %v61 = vld [vmem:[%s2] sm:$0x1]
  %v63 = vperm.slane %v61, 0
  %v73 = vunpack.c.l.b16 %v17
  %v74 = vunpack.c.h.b16 %v17
  %v75 = vunpack.c.l.b16 %v18
  %v76 = vunpack.c.l.b16 %v19
  %v77 = vunpack.c.h.b16 %v19
  %v78 = vunpack.c.l.b16 %v20
  %v79 = vunpack.c.l.b16 %v21
  %v80 = vunpack.c.h.b16 %v21
  %v81 = vunpack.c.l.b16 %v22
  %v82 = vunpack.c.l.b16 %v23
  %v83 = vunpack.c.h.b16 %v23
  %v84 = vunpack.c.l.b16 %v24
  %v85 = vpack.c.b16 %v76, %v73
  %v86 = vpack.c.b16 %v77, %v74
  %v87 = vpack.c.b16 %v78, %v75
  %v88 = vpack.c.b16 %v82, %v79
  %v89 = vpack.c.b16 %v83, %v80
  %v90 = vpack.c.b16 %v84, %v81
  %v131 = vunpack.c.l.b16 %v25
  %v132 = vunpack.c.l.b16 %v26
  %v133 = vunpack.c.l.b16 %v27
  %v134 = vunpack.c.l.b16 %v28
  %v135 = vunpack.c.l.b16 %v29
  %v136 = vunpack.c.l.b16 %v30
  %v137 = vunpack.c.l.b16 %v31
  %v138 = vunpack.c.l.b16 %v32
  %v139 = vunpack.c.l.b16 %v33
  %v140 = vunpack.c.l.b16 %v34
  %v141 = vunpack.c.l.b16 %v35
  %v142 = vunpack.c.l.b16 %v36
  %v143 = vunpack.c.l.b16 %v37
  %v144 = vunpack.c.l.b16 %v38
  %v145 = vunpack.c.l.b16 %v39
  %v146 = vunpack.c.l.b16 %v40
  %v147 = vunpack.c.l.b16 %v41
  %v148 = vunpack.c.l.b16 %v42
  %v149 = vunpack.c.l.b16 %v43
  %v150 = vunpack.c.l.b16 %v44
  %v151 = vunpack.c.l.b16 %v45
  %v152 = vunpack.c.l.b16 %v46
  %v153 = vunpack.c.l.b16 %v47
  %v154 = vunpack.c.l.b16 %v48
  %v155 = vunpack.c.l.b16 %v49
  %v156 = vunpack.c.l.b16 %v50
  %v157 = vunpack.c.l.b16 %v51
  %v158 = vunpack.c.l.b16 %v52
  %v159 = vunpack.c.l.b16 %v53
  %v160 = vunpack.c.l.b16 %v54
  %v161 = vunpack.c.l.b16 %v55
  %v162 = vunpack.c.l.b16 %v56
  %v163 = vunpack.c.l.b16 %v57
  %v164 = vunpack.c.l.b16 %v58
  %v165 = vunpack.c.l.b16 %v59
  %v166 = vunpack.c.l.b16 %v60
  %v167 = vpack.c.b16 %v132, %v131
  %v168 = vpack.c.b16 %v134, %v133
  %v169 = vpack.c.b16 %v136, %v135
  %v170 = vpack.c.b16 %v138, %v137
  %v171 = vpack.c.b16 %v140, %v139
  %v172 = vpack.c.b16 %v142, %v141
  %v173 = vpack.c.b16 %v144, %v143
  %v174 = vpack.c.b16 %v146, %v145
  %v175 = vpack.c.b16 %v148, %v147
  %v176 = vpack.c.b16 %v150, %v149
  %v177 = vpack.c.b16 %v152, %v151
  %v178 = vpack.c.b16 %v154, %v153
  %v179 = vpack.c.b16 %v156, %v155
  %v180 = vpack.c.b16 %v158, %v157
  %v181 = vpack.c.b16 %v160, %v159
  %v182 = vpack.c.b16 %v162, %v161
  %v183 = vpack.c.b16 %v164, %v163
  %v184 = vpack.c.b16 %v166, %v165
  %vm203 = vcmask 261120
  %v205 = vsel %vm203, %v87, 0
  %v208 = vsel %vm203, %v90, 0
  %210 = vmatpush.bf16.msra.mxu0 %v174
  %211 = vmatpush.bf16.msra.mxu0 %v173
  %212 = vmatpush.bf16.msra.mxu0 %v172
  %213 = vmatpush.bf16.msra.mxu0 %v171
  %214 = vmatpush.bf16.msra.mxu0 %v170
  %215 = vmatpush.bf16.msra.mxu0 %v169
  %216 = vmatpush.bf16.msra.mxu0 %v168
  %217 = vmatpush.bf16.msra.mxu0 %v167
  %218 = vmatmul.bf16.gmra.mxu0 %v85
  %v219 = vpop.f32.mrf.mxu0
  %v220 = vadd.f32 %v63, %v219
  %v221 = vpop.f32.mrf.mxu0
  %v222 = vadd.f32 %v63, %v221
  %223 = vmatmul.bf16.gmra.mxu0 %v88
  %v224 = vpop.f32.mrf.mxu0
  %v225 = vadd.f32 %v63, %v224
  %v226 = vpop.f32.mrf.mxu0
  %v227 = vadd.f32 %v63, %v226
  %228 = vdwg.mxu0
  %229 = vmatpush.bf16.msra.mxu0 %v182
  %230 = vmatpush.bf16.msra.mxu0 %v181
  %231 = vmatpush.bf16.msra.mxu0 %v180
  %232 = vmatpush.bf16.msra.mxu0 %v179
  %233 = vmatpush.bf16.msra.mxu0 %v178
  %234 = vmatpush.bf16.msra.mxu0 %v177
  %235 = vmatpush.bf16.msra.mxu0 %v176
  %236 = vmatpush.bf16.msra.mxu0 %v175
  %237 = vmatmul.bf16.gmra.mxu0 %v86
  %v238 = vpop.f32.mrf.mxu0
  %v239 = vadd.f32 %v220, %v238
  %v240 = vpop.f32.mrf.mxu0
  %v241 = vadd.f32 %v222, %v240
  %242 = vmatmul.bf16.gmra.mxu0 %v89
  %v243 = vpop.f32.mrf.mxu0
  %v244 = vadd.f32 %v225, %v243
  %v245 = vpop.f32.mrf.mxu0
  %v246 = vadd.f32 %v227, %v245
  %247 = vdwg.mxu0
  %248 = vmatpush.bf16.msra.mxu0 0
  %249 = vmatpush.bf16.msra.mxu0 0
  %250 = vmatpush.bf16.msra.mxu0 0
  %251 = vmatpush.bf16.msra.mxu0 0
  %252 = vmatpush.bf16.msra.mxu0 0
  %253 = vmatpush.bf16.msra.mxu0 0
  %254 = vmatpush.bf16.msra.mxu0 %v184
  %255 = vmatpush.bf16.msra.mxu0 %v183
  %256 = vmatmul.bf16.gmra.mxu0 %v205
  %v257 = vpop.f32.mrf.mxu0
  %v258 = vadd.f32 %v239, %v257
  %v259 = vpop.f32.mrf.mxu0
  %v260 = vadd.f32 %v241, %v259
  %261 = vmatmul.bf16.gmra.mxu0 %v208
  %v262 = vpop.f32.mrf.mxu0
  %v263 = vadd.f32 %v244, %v262
  %v264 = vpop.f32.mrf.mxu0
  %v265 = vadd.f32 %v246, %v264
  %266 = vdwg.mxu0
  %267 = vst [vmem:[%s3] sm:$0xff] %v258
  %268 = vst [vmem:[%s3 + $0x8] sm:$0xff] %v260
  %269 = vst [vmem:[%s3 + $0x10] sm:$0xff] %v263
  %270 = vst [vmem:[%s3 + $0x18] sm:$0xff] %v265
  %271 = vst [vmem:[%s4] sm:$0xff] 0.0
  %v272 = vadd.f32 %v258, %v260
  %v273 = vadd.f32 %v272, %v263
  %v274 = vadd.f32 %v273, %v265
  %v275 = vrot.slane %v274, 4
  %v276 = vadd.f32 %v274, %v275
  %v277 = vrot.slane %v276, 2
  %v278 = vadd.f32 %v276, %v277
  %v279 = vrot.slane %v278, 1
  %v280 = vadd.f32 %v278, %v279
  %281 = vst [vmem:[%s4] sm:$0x1] %v280
  %v282 = vmul.f32 %v258, %v258
  %v283 = vmul.f32 %v260, %v260
  %v284 = vmul.f32 %v263, %v263
  %v285 = vmul.f32 %v265, %v265
  %v286 = vadd.f32 %v282, %v283
  %v287 = vadd.f32 %v286, %v284
  %v288 = vadd.f32 %v287, %v285
  %v289 = vrot.slane %v288, 4
  %v290 = vadd.f32 %v288, %v289
  %v291 = vrot.slane %v290, 2
  %v292 = vadd.f32 %v290, %v291
  %v293 = vrot.slane %v292, 1
  %v294 = vadd.f32 %v292, %v293
  %295 = vst [vmem:[%s4 + $0x1] sm:$0x1] %v294
  // Predicated region
  $region14: #{encoder_forward.10} parent=0 // pred_check
    _
  $region15: #{encoder_forward.10} parent=0 // pred_check_branch
    %297 = sbr.rel (0) target = $region17
  $region16: #{encoder_forward.10} parent=0 // pred_region
    _
  $region17: #{encoder_forward.10} parent=0 // pred_fallthru
    _
  // Predicated region
  $region18: #{encoder_forward.10} parent=0 // pred_check
    _
  $region19: #{encoder_forward.10} parent=0 // pred_check_branch
    %299 = sbr.rel (0) target = $region21
  $region20: #{encoder_forward.10} parent=0 // pred_region
    _
  $region21: #{encoder_forward.10} parent=0 // pred_fallthru
    _
  // Predicated region
  $region22: #{encoder_forward.10} parent=0 // pred_check
    _
  $region23: #{encoder_forward.10} parent=0 // pred_check_branch
    %301 = sbr.rel (0) target = $region25
  $region24: #{encoder_forward.10} parent=0 // pred_region
    _
  $region25: #{encoder_forward.10} parent=0 // pred_fallthru
    _
  // Predicated region
  $region26: #{encoder_forward.10} parent=0 // pred_check
    _
  $region27: #{encoder_forward.10} parent=0 // pred_check_branch
    %303 = sbr.rel (0) target = $region29
  $region28: #{encoder_forward.10} parent=0 // pred_region
    _
  $region29: #{encoder_forward.10} parent=0 // pred_fallthru
    _

</llo_original>
